<compile_context>
chip_gen: v7x
topology: tpu7x:2x2x1
jax: 0.10.0
libtpu: 0.0.40
codegen_flags: <defaults>
</compile_context>

<pallas_src>
import functools

import jax
import jax.numpy as jnp
from jax import lax
from jax.experimental import pallas as pl
from jax.experimental.pallas import tpu as pltpu

# ------------------------------- config (small) -------------------------------
VOCAB_SIZE = 128
HIDDEN = 32
NUM_HEADS = 4
HEAD_DIM = HIDDEN // NUM_HEADS
NUM_LAYERS = 2
INTERMEDIATE = 64
MAX_POS = 64
TYPE_VOCAB = 2
DEC_INTERMEDIATE = 48
FEATURE_DIM = 16
LN_EPS = 1e-12

BATCH = 2
SEQ = 8
CLS_IDX = (0, 2, 5)          # cls_idx passed to forward (static)


# ------------------------------- helpers --------------------------------------
def _full_spec(shape):
    """BlockSpec covering the entire array (grid=(1,))."""
    n = len(shape)
    return pl.BlockSpec(shape, lambda i, _n=n: (0,) * _n)


# ------------------------------- fused kernel ----------------------------------
def _fused_forward_kernel(
    # activations / precomputed constants
    emb_ref, amask_ref, hmask_ref, segsum_ref, expand_ref, sel_ref,
    # embedding layernorm
    emb_ln_g_ref, emb_ln_b_ref,
    # stacked encoder layer weights (leading dim = NUM_LAYERS)
    wq_ref, bq_ref, wk_ref, bk_ref, wv_ref, bv_ref,
    wo_ref, bo_ref, ln1_g_ref, ln1_b_ref,
    wi_ref, bi_ref, wo2_ref, bo2_ref, ln2_g_ref, ln2_b_ref,
    # GRU (gate order r,z,n; pre-transposed so x @ W == torch x @ W_ih.T)
    gru_wih_ref, gru_whh_ref, gru_bih_ref, gru_bhh_ref,
    # decoder MLP
    dec_w1_ref, dec_b1_ref, dec_w2_ref, dec_b2_ref,
    # outputs
    enc_out_ref, latent_ref, rnn_h_ref,
    # scratch
    rnn_buf,
    *, num_heads, head_dim, num_layers, num_cls):
    f32 = jnp.float32
    hidden = num_heads * head_dim
    scale = 1.0 / (head_dim ** 0.5)

    def layernorm(x, g, b):
        mu = jnp.mean(x, axis=-1, keepdims=True)
        var = jnp.mean((x - mu) ** 2, axis=-1, keepdims=True)
        return (x - mu) * lax.rsqrt(var + LN_EPS) * g + b

    def gelu(x):  # tanh-approx GELU (see TODO above)
        c = 0.7978845608028654  # sqrt(2/pi)
        return 0.5 * x * (1.0 + jnp.tanh(c * (x + 0.044715 * x * x * x)))

    # Constants loaded ONCE and reused across layers (no per-layer rebuilds).
    amask = amask_ref[...]       # [R, NH*R] additive (0 / -1e9), incl. cross-batch
    hmask = hmask_ref[...]       # [NH*R, H] block-diagonal head mask
    segsum = segsum_ref[...]     # [NH*R, NH*R] block-diag ones (per-head denom sum)
    expand = expand_ref[...]     # [NH*R, R] row-replication (heads onto sublanes)

    # ---------------- embedding LayerNorm ----------------
    h = layernorm(emb_ref[...], emb_ln_g_ref[...], emb_ln_b_ref[...])   # [R, H]

    # ---------------- encoder layers ----------------
    for l in range(num_layers):
        # Q projection on original rows; K/V projected on head-replicated rows so
        # ONE score and ONE context matmul cover all batches and all heads.
        q = jnp.dot(h, wq_ref[l], preferred_element_type=f32) + bq_ref[l]     # [R, H]
        x_rep = jnp.dot(expand, h, preferred_element_type=f32)               # [NH*R, H]
        kexp = (jnp.dot(x_rep, wk_ref[l], preferred_element_type=f32)
                + bk_ref[l]) * hmask                                          # [NH*R, H]
        vexp = (jnp.dot(x_rep, wv_ref[l], preferred_element_type=f32)
                + bv_ref[l]) * hmask                                          # [NH*R, H]

        # scores: contract feature dim of q with feature dim of kexp (no transpose)
        s = lax.dot_general(q, kexp, (((1,), (1,)), ((), ())),
                            preferred_element_type=f32) * scale + amask       # [R, NH*R]

        # softmax: row-global max (identical shift within each head segment),
        # per-head denominators via block-diag-ones matmul (segment sum on MXU).
        m = jnp.max(s, axis=-1, keepdims=True)
        e = jnp.exp(s - m)                        # masked cols underflow to 0
        denom = jnp.dot(e, segsum, preferred_element_type=f32)                # [R, NH*R]
        p = e * pl.reciprocal(denom, approx=True)

        ctx = jnp.dot(p, vexp, preferred_element_type=f32)                    # [R, H]

        attn_out = jnp.dot(ctx, wo_ref[l], preferred_element_type=f32) + bo_ref[l]
        h = layernorm(h + attn_out, ln1_g_ref[l], ln1_b_ref[l])
        inter = gelu(jnp.dot(h, wi_ref[l], preferred_element_type=f32) + bi_ref[l])
        ffn = jnp.dot(inter, wo2_ref[l], preferred_element_type=f32) + bo2_ref[l]
        h = layernorm(h + ffn, ln2_g_ref[l], ln2_b_ref[l])

    enc_out_ref[...] = h                          # last_hidden_state (flattened)

    # ---------------- cls gather: one-hot selection matmul (no slices/concat) ----
    cls_rows = jnp.dot(sel_ref[...], h, preferred_element_type=f32)           # [T, H]

    # ---------------- GRU (batch=1, batch_first); zero initial hidden ------------
    # Input contribution hoisted out of the recurrence: one matmul for all steps.
    xg = jnp.dot(cls_rows, gru_wih_ref[...], preferred_element_type=f32) + gru_bih_ref[...]
    hs = jnp.zeros((1, hidden), f32)
    for t in range(num_cls):                      # tiny static trip-count -> unroll
        gh = jnp.dot(hs, gru_whh_ref[...], preferred_element_type=f32) + gru_bhh_ref[...]
        xr = xg[t:t + 1, 0:hidden]
        xz = xg[t:t + 1, hidden:2 * hidden]
        xn = xg[t:t + 1, 2 * hidden:3 * hidden]
        hr = gh[:, 0:hidden]
        hz = gh[:, hidden:2 * hidden]
        hn = gh[:, 2 * hidden:3 * hidden]
        r = jax.nn.sigmoid(xr + hr)
        z = jax.nn.sigmoid(xz + hz)
        n = jnp.tanh(xn + r * hn)
        hs = (1.0 - z) * n + z * hs
        rnn_buf[t:t + 1, :] = hs                  # direct row write (no list+concat)
    rnn_h_ref[...] = hs

    rnn_out = rnn_buf[0:num_cls, :]               # [T, H] == rnn_out[-1, :, :]

    # ---------------- decoder: Linear -> ELU -> Dropout(eval=id) -> Linear --------
    d1 = jnp.dot(rnn_out, dec_w1_ref[...], preferred_element_type=f32) + dec_b1_ref[...]
    elu = jnp.where(d1 > 0, d1, jnp.exp(jnp.minimum(d1, 0.0)) - 1.0)   # alpha=1, no inf branch
    latent_ref[...] = (jnp.dot(elu, dec_w2_ref[...], preferred_element_type=f32)
                       + dec_b2_ref[...])


# ------------------------------- params ----------------------------------------
def init_params(key):
    keys = iter(jax.random.split(key, 64))

    def w(shape, scale=0.02):
        return (scale * jax.random.normal(next(keys), shape)).astype(jnp.float32)

    params = {
        "word_emb": w((VOCAB_SIZE, HIDDEN)),
        "pos_emb": w((MAX_POS, HIDDEN)),
        "type_emb": w((TYPE_VOCAB, HIDDEN)),
        "emb_ln_g": jnp.ones((1, HIDDEN), jnp.float32),
        "emb_ln_b": jnp.zeros((1, HIDDEN), jnp.float32),
        "layers": [],
    }
    for _ in range(NUM_LAYERS):
        params["layers"].append({
            "wq": w((HIDDEN, HIDDEN)), "bq": jnp.zeros((1, HIDDEN), jnp.float32),
            "wk": w((HIDDEN, HIDDEN)), "bk": jnp.zeros((1, HIDDEN), jnp.float32),
            "wv": w((HIDDEN, HIDDEN)), "bv": jnp.zeros((1, HIDDEN), jnp.float32),
            "wo": w((HIDDEN, HIDDEN)), "bo": jnp.zeros((1, HIDDEN), jnp.float32),
            "ln1_g": jnp.ones((1, HIDDEN), jnp.float32),
            "ln1_b": jnp.zeros((1, HIDDEN), jnp.float32),
            "wi": w((HIDDEN, INTERMEDIATE)), "bi": jnp.zeros((1, INTERMEDIATE), jnp.float32),
            "wo2": w((INTERMEDIATE, HIDDEN)), "bo2": jnp.zeros((1, HIDDEN), jnp.float32),
            "ln2_g": jnp.ones((1, HIDDEN), jnp.float32),
            "ln2_b": jnp.zeros((1, HIDDEN), jnp.float32),
        })
    params["gru"] = {
        # gate order (r, z, n); pre-transposed vs torch W_ih/W_hh so x @ W applies.
        "wih": w((HIDDEN, 3 * HIDDEN)),
        "whh": w((HIDDEN, 3 * HIDDEN)),
        "bih": jnp.zeros((1, 3 * HIDDEN), jnp.float32),
        "bhh": jnp.zeros((1, 3 * HIDDEN), jnp.float32),
    }
    params["dec"] = {
        "w1": w((HIDDEN, DEC_INTERMEDIATE)),
        "b1": jnp.zeros((1, DEC_INTERMEDIATE), jnp.float32),
        "w2": w((DEC_INTERMEDIATE, FEATURE_DIM)),
        "b2": jnp.zeros((1, FEATURE_DIM), jnp.float32),
    }
    return params


# ------------------------------- forward (glue + one pallas_call) --------------
def speaker_cluster_bert_forward(params, input_ids, cls_idx, attention_mask, token_type_ids):
    B, S = input_ids.shape
    R = B * S
    NHR = NUM_HEADS * R
    T = len(cls_idx)

    # Embedding gathers stay in XLA (glue); everything else is in the fused kernel.
    pos_ids = jnp.arange(S)
    emb = (jnp.take(params["word_emb"], input_ids, axis=0)
           + jnp.take(params["pos_emb"], pos_ids, axis=0)[None, :, :]
           + jnp.take(params["type_emb"], token_type_ids, axis=0)).reshape(R, HIDDEN)

    # Precomputed constants (layer-invariant): kept small, resident in VMEM.
    # Column order of the score matrix: j = head*R + (batch*S + s).
    rows = jnp.arange(R)
    key_valid = attention_mask.astype(jnp.float32).reshape(R)                 # [R]
    same_batch = (rows[:, None] // S == rows[None, :] // S).astype(jnp.float32)
    m0 = (1.0 - same_batch * key_valid[None, :]) * -1e9                       # [R, R]
    amask = jnp.tile(m0, (1, NUM_HEADS))                                      # [R, NHR]

    jj = jnp.arange(NHR)
    dd = jnp.arange(HIDDEN)
    hmask = (jj[:, None] // R == dd[None, :] // HEAD_DIM).astype(jnp.float32)  # [NHR, H]
    segsum = (jj[:, None] // R == jj[None, :] // R).astype(jnp.float32)        # [NHR, NHR]
    expand = (jj[:, None] % R == rows[None, :]).astype(jnp.float32)            # [NHR, R]
    sel = jax.nn.one_hot(jnp.asarray(cls_idx, jnp.int32), R, dtype=jnp.float32)  # [T, R]

    L = params["layers"]
    stack = lambda name: jnp.stack([lyr[name] for lyr in L], axis=0)

    args = (
        emb, amask, hmask, segsum, expand, sel,
        params["emb_ln_g"], params["emb_ln_b"],
        stack("wq"), stack("bq"), stack("wk"), stack("bk"), stack("wv"), stack("bv"),
        stack("wo"), stack("bo"), stack("ln1_g"), stack("ln1_b"),
        stack("wi"), stack("bi"), stack("wo2"), stack("bo2"),
        stack("ln2_g"), stack("ln2_b"),
        params["gru"]["wih"], params["gru"]["whh"],
        params["gru"]["bih"], params["gru"]["bhh"],
        params["dec"]["w1"], params["dec"]["b1"],
        params["dec"]["w2"], params["dec"]["b2"],
    )

    kernel = functools.partial(
        _fused_forward_kernel,
        num_heads=NUM_HEADS, head_dim=HEAD_DIM,
        num_layers=NUM_LAYERS, num_cls=T)

    enc_out, latent, rnn_h = pl.pallas_call(
        kernel,
        grid=(1,),
        in_specs=[_full_spec(a.shape) for a in args],
        out_specs=(_full_spec((R, HIDDEN)),
                   _full_spec((T, FEATURE_DIM)),
                   _full_spec((1, HIDDEN))),
        out_shape=(jax.ShapeDtypeStruct((R, HIDDEN), jnp.float32),
                   jax.ShapeDtypeStruct((T, FEATURE_DIM), jnp.float32),
                   jax.ShapeDtypeStruct((1, HIDDEN), jnp.float32)),
        scratch_shapes=[pltpu.VMEM((8, HIDDEN), jnp.float32)],   # GRU output slab
        compiler_params=pltpu.CompilerParams(
            dimension_semantics=("arbitrary",)),
    )(*args)

    return latent, enc_out.reshape(B, S, HIDDEN), rnn_h


# ------------------------------- main -------------------------------------------
if __name__ == "__main__":
    key = jax.random.PRNGKey(0)
    pkey, ikey = jax.random.split(key)
    params = init_params(pkey)

    input_ids = jax.random.randint(ikey, (BATCH, SEQ), 0, VOCAB_SIZE, dtype=jnp.int32)
    attention_mask = jnp.ones((BATCH, SEQ), jnp.int32).at[1, SEQ - 1].set(0)
    token_type_ids = jnp.zeros((BATCH, SEQ), jnp.int32)

    latent, encoder_out, rnn_h = speaker_cluster_bert_forward(
        params, input_ids, CLS_IDX, attention_mask, token_type_ids)
    jax.block_until_ready((latent, encoder_out, rnn_h))

    assert latent.shape == (len(CLS_IDX), FEATURE_DIM)
    assert encoder_out.shape == (BATCH, SEQ, HIDDEN)
    assert rnn_h.shape == (1, HIDDEN)
    assert bool(jnp.all(jnp.isfinite(latent)))
    assert bool(jnp.all(jnp.isfinite(encoder_out)))
    print("KERNEL_OK")
</pallas_src>

<mosaic_0001>
module attributes {stable_mosaic.version = 11 : i64} {
  func.func @_fused_forward_kernel(%arg0: i32, %arg1: memref<16x32xf32, #tpu.memory_space<vmem>>, %arg2: memref<16x64xf32, #tpu.memory_space<vmem>>, %arg3: memref<64x32xf32, #tpu.memory_space<vmem>>, %arg4: memref<64x64xf32, #tpu.memory_space<vmem>>, %arg5: memref<64x16xf32, #tpu.memory_space<vmem>>, %arg6: memref<3x16xf32, #tpu.memory_space<vmem>>, %arg7: memref<1x32xf32, #tpu.memory_space<vmem>>, %arg8: memref<1x32xf32, #tpu.memory_space<vmem>>, %arg9: memref<2x32x32xf32, #tpu.memory_space<vmem>>, %arg10: memref<2x1x32xf32, #tpu.memory_space<vmem>>, %arg11: memref<2x32x32xf32, #tpu.memory_space<vmem>>, %arg12: memref<2x1x32xf32, #tpu.memory_space<vmem>>, %arg13: memref<2x32x32xf32, #tpu.memory_space<vmem>>, %arg14: memref<2x1x32xf32, #tpu.memory_space<vmem>>, %arg15: memref<2x32x32xf32, #tpu.memory_space<vmem>>, %arg16: memref<2x1x32xf32, #tpu.memory_space<vmem>>, %arg17: memref<2x1x32xf32, #tpu.memory_space<vmem>>, %arg18: memref<2x1x32xf32, #tpu.memory_space<vmem>>, %arg19: memref<2x32x64xf32, #tpu.memory_space<vmem>>, %arg20: memref<2x1x64xf32, #tpu.memory_space<vmem>>, %arg21: memref<2x64x32xf32, #tpu.memory_space<vmem>>, %arg22: memref<2x1x32xf32, #tpu.memory_space<vmem>>, %arg23: memref<2x1x32xf32, #tpu.memory_space<vmem>>, %arg24: memref<2x1x32xf32, #tpu.memory_space<vmem>>, %arg25: memref<32x96xf32, #tpu.memory_space<vmem>>, %arg26: memref<32x96xf32, #tpu.memory_space<vmem>>, %arg27: memref<1x96xf32, #tpu.memory_space<vmem>>, %arg28: memref<1x96xf32, #tpu.memory_space<vmem>>, %arg29: memref<32x48xf32, #tpu.memory_space<vmem>>, %arg30: memref<1x48xf32, #tpu.memory_space<vmem>>, %arg31: memref<48x16xf32, #tpu.memory_space<vmem>>, %arg32: memref<1x16xf32, #tpu.memory_space<vmem>>, %arg33: memref<16x32xf32, #tpu.memory_space<vmem>>, %arg34: memref<3x16xf32, #tpu.memory_space<vmem>>, %arg35: memref<1x32xf32, #tpu.memory_space<vmem>>, %arg36: memref<8x32xf32, #tpu.memory_space<vmem>>) attributes {dimension_semantics = [#tpu.dimension_semantics<arbitrary>], iteration_bounds = array<i64: 1>, scalar_prefetch = 0 : i64, scratch_operands = 1 : i64, tpu.core_type = #tpu.core_type<tc>, window_params = [{pipeline_mode = #tpu.pipeline_mode<synchronous>, transform_indices = @transform_0, window_bounds = array<i64: 16, 32>}, {pipeline_mode = #tpu.pipeline_mode<synchronous>, transform_indices = @transform_1, window_bounds = array<i64: 16, 64>}, {pipeline_mode = #tpu.pipeline_mode<synchronous>, transform_indices = @transform_2, window_bounds = array<i64: 64, 32>}, {pipeline_mode = #tpu.pipeline_mode<synchronous>, transform_indices = @transform_3, window_bounds = array<i64: 64, 64>}, {pipeline_mode = #tpu.pipeline_mode<synchronous>, transform_indices = @transform_4, window_bounds = array<i64: 64, 16>}, {pipeline_mode = #tpu.pipeline_mode<synchronous>, transform_indices = @transform_5, window_bounds = array<i64: 3, 16>}, {pipeline_mode = #tpu.pipeline_mode<synchronous>, transform_indices = @transform_6, window_bounds = array<i64: 1, 32>}, {pipeline_mode = #tpu.pipeline_mode<synchronous>, transform_indices = @transform_7, window_bounds = array<i64: 1, 32>}, {pipeline_mode = #tpu.pipeline_mode<synchronous>, transform_indices = @transform_8, window_bounds = array<i64: 2, 32, 32>}, {pipeline_mode = #tpu.pipeline_mode<synchronous>, transform_indices = @transform_9, window_bounds = array<i64: 2, 1, 32>}, {pipeline_mode = #tpu.pipeline_mode<synchronous>, transform_indices = @transform_10, window_bounds = array<i64: 2, 32, 32>}, {pipeline_mode = #tpu.pipeline_mode<synchronous>, transform_indices = @transform_11, window_bounds = array<i64: 2, 1, 32>}, {pipeline_mode = #tpu.pipeline_mode<synchronous>, transform_indices = @transform_12, window_bounds = array<i64: 2, 32, 32>}, {pipeline_mode = #tpu.pipeline_mode<synchronous>, transform_indices = @transform_13, window_bounds = array<i64: 2, 1, 32>}, {pipeline_mode = #tpu.pipeline_mode<synchronous>, transform_indices = @transform_14, window_bounds = array<i64: 2, 32, 32>}, {pipeline_mode = #tpu.pipeline_mode<synchronous>, transform_indices = @transform_15, window_bounds = array<i64: 2, 1, 32>}, {pipeline_mode = #tpu.pipeline_mode<synchronous>, transform_indices = @transform_16, window_bounds = array<i64: 2, 1, 32>}, {pipeline_mode = #tpu.pipeline_mode<synchronous>, transform_indices = @transform_17, window_bounds = array<i64: 2, 1, 32>}, {pipeline_mode = #tpu.pipeline_mode<synchronous>, transform_indices = @transform_18, window_bounds = array<i64: 2, 32, 64>}, {pipeline_mode = #tpu.pipeline_mode<synchronous>, transform_indices = @transform_19, window_bounds = array<i64: 2, 1, 64>}, {pipeline_mode = #tpu.pipeline_mode<synchronous>, transform_indices = @transform_20, window_bounds = array<i64: 2, 64, 32>}, {pipeline_mode = #tpu.pipeline_mode<synchronous>, transform_indices = @transform_21, window_bounds = array<i64: 2, 1, 32>}, {pipeline_mode = #tpu.pipeline_mode<synchronous>, transform_indices = @transform_22, window_bounds = array<i64: 2, 1, 32>}, {pipeline_mode = #tpu.pipeline_mode<synchronous>, transform_indices = @transform_23, window_bounds = array<i64: 2, 1, 32>}, {pipeline_mode = #tpu.pipeline_mode<synchronous>, transform_indices = @transform_24, window_bounds = array<i64: 32, 96>}, {pipeline_mode = #tpu.pipeline_mode<synchronous>, transform_indices = @transform_25, window_bounds = array<i64: 32, 96>}, {pipeline_mode = #tpu.pipeline_mode<synchronous>, transform_indices = @transform_26, window_bounds = array<i64: 1, 96>}, {pipeline_mode = #tpu.pipeline_mode<synchronous>, transform_indices = @transform_27, window_bounds = array<i64: 1, 96>}, {pipeline_mode = #tpu.pipeline_mode<synchronous>, transform_indices = @transform_28, window_bounds = array<i64: 32, 48>}, {pipeline_mode = #tpu.pipeline_mode<synchronous>, transform_indices = @transform_29, window_bounds = array<i64: 1, 48>}, {pipeline_mode = #tpu.pipeline_mode<synchronous>, transform_indices = @transform_30, window_bounds = array<i64: 48, 16>}, {pipeline_mode = #tpu.pipeline_mode<synchronous>, transform_indices = @transform_31, window_bounds = array<i64: 1, 16>}, {pipeline_mode = #tpu.pipeline_mode<synchronous>, transform_indices = @transform_32, window_bounds = array<i64: 16, 32>}, {pipeline_mode = #tpu.pipeline_mode<synchronous>, transform_indices = @transform_33, window_bounds = array<i64: 3, 16>}, {pipeline_mode = #tpu.pipeline_mode<synchronous>, transform_indices = @transform_34, window_bounds = array<i64: 1, 32>}]} {
    %c0 = arith.constant 0 : index
    %c0_0 = arith.constant 0 : index
    %0 = vector.load %arg2[%c0, %c0_0] : memref<16x64xf32, #tpu.memory_space<vmem>>, vector<16x64xf32>
    %c0_1 = arith.constant 0 : index
    %c0_2 = arith.constant 0 : index
    %1 = vector.load %arg3[%c0_1, %c0_2] : memref<64x32xf32, #tpu.memory_space<vmem>>, vector<64x32xf32>
    %c0_3 = arith.constant 0 : index
    %c0_4 = arith.constant 0 : index
    %2 = vector.load %arg4[%c0_3, %c0_4] : memref<64x64xf32, #tpu.memory_space<vmem>>, vector<64x64xf32>
    %c0_5 = arith.constant 0 : index
    %c0_6 = arith.constant 0 : index
    %3 = vector.load %arg5[%c0_5, %c0_6] : memref<64x16xf32, #tpu.memory_space<vmem>>, vector<64x16xf32>
    %c0_7 = arith.constant 0 : index
    %c0_8 = arith.constant 0 : index
    %4 = vector.load %arg1[%c0_7, %c0_8] : memref<16x32xf32, #tpu.memory_space<vmem>>, vector<16x32xf32>
    %c0_9 = arith.constant 0 : index
    %c0_10 = arith.constant 0 : index
    %5 = vector.load %arg7[%c0_9, %c0_10] : memref<1x32xf32, #tpu.memory_space<vmem>>, vector<1x32xf32>
    %c0_11 = arith.constant 0 : index
    %c0_12 = arith.constant 0 : index
    %6 = vector.load %arg8[%c0_11, %c0_12] : memref<1x32xf32, #tpu.memory_space<vmem>>, vector<1x32xf32>
    %cst = arith.constant dense<0.000000e+00> : vector<16xf32>
    %7 = vector.multi_reduction <add>, %4, %cst [1] : vector<16x32xf32> to vector<16xf32>
    %8 = vector.shape_cast %7 : vector<16xf32> to vector<16x1xf32>
    %cst_13 = arith.constant 3.200000e+01 : f32
    %9 = vector.broadcast %cst_13 : f32 to vector<16x1xf32>
    %10 = arith.divf %8, %9 : vector<16x1xf32>
    %11 = vector.broadcast %10 : vector<16x1xf32> to vector<16x32xf32>
    %12 = arith.subf %4, %11 : vector<16x32xf32>
    %13 = arith.mulf %12, %12 : vector<16x32xf32>
    %cst_14 = arith.constant dense<0.000000e+00> : vector<16xf32>
    %14 = vector.multi_reduction <add>, %13, %cst_14 [1] : vector<16x32xf32> to vector<16xf32>
    %15 = vector.shape_cast %14 : vector<16xf32> to vector<16x1xf32>
    %cst_15 = arith.constant 3.200000e+01 : f32
    %16 = vector.broadcast %cst_15 : f32 to vector<16x1xf32>
    %17 = arith.divf %15, %16 : vector<16x1xf32>
    %18 = vector.broadcast %10 : vector<16x1xf32> to vector<16x32xf32>
    %19 = arith.subf %4, %18 : vector<16x32xf32>
    %cst_16 = arith.constant 9.99999996E-13 : f32
    %20 = vector.broadcast %cst_16 : f32 to vector<16x1xf32>
    %21 = arith.addf %17, %20 : vector<16x1xf32>
    %22 = math.rsqrt %21 : vector<16x1xf32>
    %23 = vector.broadcast %22 : vector<16x1xf32> to vector<16x32xf32>
    %24 = arith.mulf %19, %23 : vector<16x32xf32>
    %25 = vector.broadcast %5 : vector<1x32xf32> to vector<16x32xf32>
    %26 = arith.mulf %24, %25 : vector<16x32xf32>
    %27 = vector.broadcast %6 : vector<1x32xf32> to vector<16x32xf32>
    %28 = arith.addf %26, %27 : vector<16x32xf32>
    %c0_17 = arith.constant 0 : index
    %c0_18 = arith.constant 0 : index
    %c0_19 = arith.constant 0 : index
    %29 = vector.load %arg9[%c0_17, %c0_18, %c0_19] : memref<2x32x32xf32, #tpu.memory_space<vmem>>, vector<1x32x32xf32>
    %30 = vector.shape_cast %29 : vector<1x32x32xf32> to vector<32x32xf32>
    %cst_20 = arith.constant dense<0.000000e+00> : vector<16x32xf32>
    %31 = tpu.matmul %28, %30, %cst_20 {dimension_numbers = #tpu.dot_dimension_numbers<[1], [0], [0], [1], [0, 0, 1, 1], [], []>} : vector<16x32xf32>, vector<32x32xf32>, vector<16x32xf32> -> vector<16x32xf32>
    %c0_21 = arith.constant 0 : index
    %c0_22 = arith.constant 0 : index
    %c0_23 = arith.constant 0 : index
    %32 = vector.load %arg10[%c0_21, %c0_22, %c0_23] : memref<2x1x32xf32, #tpu.memory_space<vmem>>, vector<1x1x32xf32>
    %33 = vector.shape_cast %32 : vector<1x1x32xf32> to vector<1x32xf32>
    %34 = vector.broadcast %33 : vector<1x32xf32> to vector<16x32xf32>
    %35 = arith.addf %31, %34 : vector<16x32xf32>
    %cst_24 = arith.constant dense<0.000000e+00> : vector<64x32xf32>
    %36 = tpu.matmul %3, %28, %cst_24 {dimension_numbers = #tpu.dot_dimension_numbers<[1], [0], [0], [1], [0, 0, 1, 1], [], []>} : vector<64x16xf32>, vector<16x32xf32>, vector<64x32xf32> -> vector<64x32xf32>
    %c0_25 = arith.constant 0 : index
    %c0_26 = arith.constant 0 : index
    %c0_27 = arith.constant 0 : index
    %37 = vector.load %arg11[%c0_25, %c0_26, %c0_27] : memref<2x32x32xf32, #tpu.memory_space<vmem>>, vector<1x32x32xf32>
    %38 = vector.shape_cast %37 : vector<1x32x32xf32> to vector<32x32xf32>
    %cst_28 = arith.constant dense<0.000000e+00> : vector<64x32xf32>
    %39 = tpu.matmul %36, %38, %cst_28 {dimension_numbers = #tpu.dot_dimension_numbers<[1], [0], [0], [1], [0, 0, 1, 1], [], []>} : vector<64x32xf32>, vector<32x32xf32>, vector<64x32xf32> -> vector<64x32xf32>
    %c0_29 = arith.constant 0 : index
    %c0_30 = arith.constant 0 : index
    %c0_31 = arith.constant 0 : index
    %40 = vector.load %arg12[%c0_29, %c0_30, %c0_31] : memref<2x1x32xf32, #tpu.memory_space<vmem>>, vector<1x1x32xf32>
    %41 = vector.shape_cast %40 : vector<1x1x32xf32> to vector<1x32xf32>
    %42 = vector.broadcast %41 : vector<1x32xf32> to vector<64x32xf32>
    %43 = arith.addf %39, %42 : vector<64x32xf32>
    %44 = arith.mulf %43, %1 : vector<64x32xf32>
    %c0_32 = arith.constant 0 : index
    %c0_33 = arith.constant 0 : index
    %c0_34 = arith.constant 0 : index
    %45 = vector.load %arg13[%c0_32, %c0_33, %c0_34] : memref<2x32x32xf32, #tpu.memory_space<vmem>>, vector<1x32x32xf32>
    %46 = vector.shape_cast %45 : vector<1x32x32xf32> to vector<32x32xf32>
    %cst_35 = arith.constant dense<0.000000e+00> : vector<64x32xf32>
    %47 = tpu.matmul %36, %46, %cst_35 {dimension_numbers = #tpu.dot_dimension_numbers<[1], [0], [0], [1], [0, 0, 1, 1], [], []>} : vector<64x32xf32>, vector<32x32xf32>, vector<64x32xf32> -> vector<64x32xf32>
    %c0_36 = arith.constant 0 : index
    %c0_37 = arith.constant 0 : index
    %c0_38 = arith.constant 0 : index
    %48 = vector.load %arg14[%c0_36, %c0_37, %c0_38] : memref<2x1x32xf32, #tpu.memory_space<vmem>>, vector<1x1x32xf32>
    %49 = vector.shape_cast %48 : vector<1x1x32xf32> to vector<1x32xf32>
    %50 = vector.broadcast %49 : vector<1x32xf32> to vector<64x32xf32>
    %51 = arith.addf %47, %50 : vector<64x32xf32>
    %52 = arith.mulf %51, %1 : vector<64x32xf32>
    %cst_39 = arith.constant dense<0.000000e+00> : vector<16x64xf32>
    %53 = tpu.matmul %35, %44, %cst_39 {dimension_numbers = #tpu.dot_dimension_numbers<[1], [1], [0], [0], [0, 0, 1, 0], [], []>} : vector<16x32xf32>, vector<64x32xf32>, vector<16x64xf32> -> vector<16x64xf32>
    %cst_40 = arith.constant 0.353553385 : f32
    %54 = vector.broadcast %cst_40 : f32 to vector<16x64xf32>
    %55 = arith.mulf %53, %54 : vector<16x64xf32>
    %56 = arith.addf %55, %0 : vector<16x64xf32>
    %cst_41 = arith.constant dense<0xFF800000> : vector<16xf32>
    %57 = vector.multi_reduction <maximumf>, %56, %cst_41 [1] : vector<16x64xf32> to vector<16xf32>
    %58 = vector.shape_cast %57 : vector<16xf32> to vector<16x1xf32>
    %59 = vector.broadcast %58 : vector<16x1xf32> to vector<16x64xf32>
    %60 = arith.subf %56, %59 : vector<16x64xf32>
    %61 = math.exp %60 : vector<16x64xf32>
    %cst_42 = arith.constant dense<0.000000e+00> : vector<16x64xf32>
    %62 = tpu.matmul %61, %2, %cst_42 {dimension_numbers = #tpu.dot_dimension_numbers<[1], [0], [0], [1], [0, 0, 1, 1], [], []>} : vector<16x64xf32>, vector<64x64xf32>, vector<16x64xf32> -> vector<16x64xf32>
    %63 = tpu.reciprocal %62 {approx = true} : vector<16x64xf32> -> vector<16x64xf32>
    %64 = arith.mulf %61, %63 : vector<16x64xf32>
    %cst_43 = arith.constant dense<0.000000e+00> : vector<16x32xf32>
    %65 = tpu.matmul %64, %52, %cst_43 {dimension_numbers = #tpu.dot_dimension_numbers<[1], [0], [0], [1], [0, 0, 1, 1], [], []>} : vector<16x64xf32>, vector<64x32xf32>, vector<16x32xf32> -> vector<16x32xf32>
    %c0_44 = arith.constant 0 : index
    %c0_45 = arith.constant 0 : index
    %c0_46 = arith.constant 0 : index
    %66 = vector.load %arg15[%c0_44, %c0_45, %c0_46] : memref<2x32x32xf32, #tpu.memory_space<vmem>>, vector<1x32x32xf32>
    %67 = vector.shape_cast %66 : vector<1x32x32xf32> to vector<32x32xf32>
    %cst_47 = arith.constant dense<0.000000e+00> : vector<16x32xf32>
    %68 = tpu.matmul %65, %67, %cst_47 {dimension_numbers = #tpu.dot_dimension_numbers<[1], [0], [0], [1], [0, 0, 1, 1], [], []>} : vector<16x32xf32>, vector<32x32xf32>, vector<16x32xf32> -> vector<16x32xf32>
    %c0_48 = arith.constant 0 : index
    %c0_49 = arith.constant 0 : index
    %c0_50 = arith.constant 0 : index
    %69 = vector.load %arg16[%c0_48, %c0_49, %c0_50] : memref<2x1x32xf32, #tpu.memory_space<vmem>>, vector<1x1x32xf32>
    %70 = vector.shape_cast %69 : vector<1x1x32xf32> to vector<1x32xf32>
    %71 = vector.broadcast %70 : vector<1x32xf32> to vector<16x32xf32>
    %72 = arith.addf %68, %71 : vector<16x32xf32>
    %73 = arith.addf %28, %72 : vector<16x32xf32>
    %c0_51 = arith.constant 0 : index
    %c0_52 = arith.constant 0 : index
    %c0_53 = arith.constant 0 : index
    %74 = vector.load %arg17[%c0_51, %c0_52, %c0_53] : memref<2x1x32xf32, #tpu.memory_space<vmem>>, vector<1x1x32xf32>
    %75 = vector.shape_cast %74 : vector<1x1x32xf32> to vector<1x32xf32>
    %c0_54 = arith.constant 0 : index
    %c0_55 = arith.constant 0 : index
    %c0_56 = arith.constant 0 : index
    %76 = vector.load %arg18[%c0_54, %c0_55, %c0_56] : memref<2x1x32xf32, #tpu.memory_space<vmem>>, vector<1x1x32xf32>
    %77 = vector.shape_cast %76 : vector<1x1x32xf32> to vector<1x32xf32>
    %cst_57 = arith.constant dense<0.000000e+00> : vector<16xf32>
    %78 = vector.multi_reduction <add>, %73, %cst_57 [1] : vector<16x32xf32> to vector<16xf32>
    %79 = vector.shape_cast %78 : vector<16xf32> to vector<16x1xf32>
    %cst_58 = arith.constant 3.200000e+01 : f32
    %80 = vector.broadcast %cst_58 : f32 to vector<16x1xf32>
    %81 = arith.divf %79, %80 : vector<16x1xf32>
    %82 = vector.broadcast %81 : vector<16x1xf32> to vector<16x32xf32>
    %83 = arith.subf %73, %82 : vector<16x32xf32>
    %84 = arith.mulf %83, %83 : vector<16x32xf32>
    %cst_59 = arith.constant dense<0.000000e+00> : vector<16xf32>
    %85 = vector.multi_reduction <add>, %84, %cst_59 [1] : vector<16x32xf32> to vector<16xf32>
    %86 = vector.shape_cast %85 : vector<16xf32> to vector<16x1xf32>
    %cst_60 = arith.constant 3.200000e+01 : f32
    %87 = vector.broadcast %cst_60 : f32 to vector<16x1xf32>
    %88 = arith.divf %86, %87 : vector<16x1xf32>
    %89 = vector.broadcast %81 : vector<16x1xf32> to vector<16x32xf32>
    %90 = arith.subf %73, %89 : vector<16x32xf32>
    %cst_61 = arith.constant 9.99999996E-13 : f32
    %91 = vector.broadcast %cst_61 : f32 to vector<16x1xf32>
    %92 = arith.addf %88, %91 : vector<16x1xf32>
    %93 = math.rsqrt %92 : vector<16x1xf32>
    %94 = vector.broadcast %93 : vector<16x1xf32> to vector<16x32xf32>
    %95 = arith.mulf %90, %94 : vector<16x32xf32>
    %96 = vector.broadcast %75 : vector<1x32xf32> to vector<16x32xf32>
    %97 = arith.mulf %95, %96 : vector<16x32xf32>
    %98 = vector.broadcast %77 : vector<1x32xf32> to vector<16x32xf32>
    %99 = arith.addf %97, %98 : vector<16x32xf32>
    %c0_62 = arith.constant 0 : index
    %c0_63 = arith.constant 0 : index
    %c0_64 = arith.constant 0 : index
    %100 = vector.load %arg19[%c0_62, %c0_63, %c0_64] : memref<2x32x64xf32, #tpu.memory_space<vmem>>, vector<1x32x64xf32>
    %101 = vector.shape_cast %100 : vector<1x32x64xf32> to vector<32x64xf32>
    %cst_65 = arith.constant dense<0.000000e+00> : vector<16x64xf32>
    %102 = tpu.matmul %99, %101, %cst_65 {dimension_numbers = #tpu.dot_dimension_numbers<[1], [0], [0], [1], [0, 0, 1, 1], [], []>} : vector<16x32xf32>, vector<32x64xf32>, vector<16x64xf32> -> vector<16x64xf32>
    %c0_66 = arith.constant 0 : index
    %c0_67 = arith.constant 0 : index
    %c0_68 = arith.constant 0 : index
    %103 = vector.load %arg20[%c0_66, %c0_67, %c0_68] : memref<2x1x64xf32, #tpu.memory_space<vmem>>, vector<1x1x64xf32>
    %104 = vector.shape_cast %103 : vector<1x1x64xf32> to vector<1x64xf32>
    %105 = vector.broadcast %104 : vector<1x64xf32> to vector<16x64xf32>
    %106 = arith.addf %102, %105 : vector<16x64xf32>
    %cst_69 = arith.constant 5.000000e-01 : f32
    %107 = vector.broadcast %cst_69 : f32 to vector<16x64xf32>
    %108 = arith.mulf %107, %106 : vector<16x64xf32>
    %cst_70 = arith.constant 4.471500e-02 : f32
    %109 = vector.broadcast %cst_70 : f32 to vector<16x64xf32>
    %110 = arith.mulf %109, %106 : vector<16x64xf32>
    %111 = arith.mulf %110, %106 : vector<16x64xf32>
    %112 = arith.mulf %111, %106 : vector<16x64xf32>
    %113 = arith.addf %106, %112 : vector<16x64xf32>
    %cst_71 = arith.constant 0.797884583 : f32
    %114 = vector.broadcast %cst_71 : f32 to vector<16x64xf32>
    %115 = arith.mulf %114, %113 : vector<16x64xf32>
    %116 = math.tanh %115 : vector<16x64xf32>
    %cst_72 = arith.constant 1.000000e+00 : f32
    %117 = vector.broadcast %cst_72 : f32 to vector<16x64xf32>
    %118 = arith.addf %117, %116 : vector<16x64xf32>
    %119 = arith.mulf %108, %118 : vector<16x64xf32>
    %c0_73 = arith.constant 0 : index
    %c0_74 = arith.constant 0 : index
    %c0_75 = arith.constant 0 : index
    %120 = vector.load %arg21[%c0_73, %c0_74, %c0_75] : memref<2x64x32xf32, #tpu.memory_space<vmem>>, vector<1x64x32xf32>
    %121 = vector.shape_cast %120 : vector<1x64x32xf32> to vector<64x32xf32>
    %cst_76 = arith.constant dense<0.000000e+00> : vector<16x32xf32>
    %122 = tpu.matmul %119, %121, %cst_76 {dimension_numbers = #tpu.dot_dimension_numbers<[1], [0], [0], [1], [0, 0, 1, 1], [], []>} : vector<16x64xf32>, vector<64x32xf32>, vector<16x32xf32> -> vector<16x32xf32>
    %c0_77 = arith.constant 0 : index
    %c0_78 = arith.constant 0 : index
    %c0_79 = arith.constant 0 : index
    %123 = vector.load %arg22[%c0_77, %c0_78, %c0_79] : memref<2x1x32xf32, #tpu.memory_space<vmem>>, vector<1x1x32xf32>
    %124 = vector.shape_cast %123 : vector<1x1x32xf32> to vector<1x32xf32>
    %125 = vector.broadcast %124 : vector<1x32xf32> to vector<16x32xf32>
    %126 = arith.addf %122, %125 : vector<16x32xf32>
    %127 = arith.addf %99, %126 : vector<16x32xf32>
    %c0_80 = arith.constant 0 : index
    %c0_81 = arith.constant 0 : index
    %c0_82 = arith.constant 0 : index
    %128 = vector.load %arg23[%c0_80, %c0_81, %c0_82] : memref<2x1x32xf32, #tpu.memory_space<vmem>>, vector<1x1x32xf32>
    %129 = vector.shape_cast %128 : vector<1x1x32xf32> to vector<1x32xf32>
    %c0_83 = arith.constant 0 : index
    %c0_84 = arith.constant 0 : index
    %c0_85 = arith.constant 0 : index
    %130 = vector.load %arg24[%c0_83, %c0_84, %c0_85] : memref<2x1x32xf32, #tpu.memory_space<vmem>>, vector<1x1x32xf32>
    %131 = vector.shape_cast %130 : vector<1x1x32xf32> to vector<1x32xf32>
    %cst_86 = arith.constant dense<0.000000e+00> : vector<16xf32>
    %132 = vector.multi_reduction <add>, %127, %cst_86 [1] : vector<16x32xf32> to vector<16xf32>
    %133 = vector.shape_cast %132 : vector<16xf32> to vector<16x1xf32>
    %cst_87 = arith.constant 3.200000e+01 : f32
    %134 = vector.broadcast %cst_87 : f32 to vector<16x1xf32>
    %135 = arith.divf %133, %134 : vector<16x1xf32>
    %136 = vector.broadcast %135 : vector<16x1xf32> to vector<16x32xf32>
    %137 = arith.subf %127, %136 : vector<16x32xf32>
    %138 = arith.mulf %137, %137 : vector<16x32xf32>
    %cst_88 = arith.constant dense<0.000000e+00> : vector<16xf32>
    %139 = vector.multi_reduction <add>, %138, %cst_88 [1] : vector<16x32xf32> to vector<16xf32>
    %140 = vector.shape_cast %139 : vector<16xf32> to vector<16x1xf32>
    %cst_89 = arith.constant 3.200000e+01 : f32
    %141 = vector.broadcast %cst_89 : f32 to vector<16x1xf32>
    %142 = arith.divf %140, %141 : vector<16x1xf32>
    %143 = vector.broadcast %135 : vector<16x1xf32> to vector<16x32xf32>
    %144 = arith.subf %127, %143 : vector<16x32xf32>
    %cst_90 = arith.constant 9.99999996E-13 : f32
    %145 = vector.broadcast %cst_90 : f32 to vector<16x1xf32>
    %146 = arith.addf %142, %145 : vector<16x1xf32>
    %147 = math.rsqrt %146 : vector<16x1xf32>
    %148 = vector.broadcast %147 : vector<16x1xf32> to vector<16x32xf32>
    %149 = arith.mulf %144, %148 : vector<16x32xf32>
    %150 = vector.broadcast %129 : vector<1x32xf32> to vector<16x32xf32>
    %151 = arith.mulf %149, %150 : vector<16x32xf32>
    %152 = vector.broadcast %131 : vector<1x32xf32> to vector<16x32xf32>
    %153 = arith.addf %151, %152 : vector<16x32xf32>
    %c1 = arith.constant 1 : index
    %c0_91 = arith.constant 0 : index
    %c0_92 = arith.constant 0 : index
    %154 = vector.load %arg9[%c1, %c0_91, %c0_92] : memref<2x32x32xf32, #tpu.memory_space<vmem>>, vector<1x32x32xf32>
    %155 = vector.shape_cast %154 : vector<1x32x32xf32> to vector<32x32xf32>
    %cst_93 = arith.constant dense<0.000000e+00> : vector<16x32xf32>
    %156 = tpu.matmul %153, %155, %cst_93 {dimension_numbers = #tpu.dot_dimension_numbers<[1], [0], [0], [1], [0, 0, 1, 1], [], []>} : vector<16x32xf32>, vector<32x32xf32>, vector<16x32xf32> -> vector<16x32xf32>
    %c1_94 = arith.constant 1 : index
    %c0_95 = arith.constant 0 : index
    %c0_96 = arith.constant 0 : index
    %157 = vector.load %arg10[%c1_94, %c0_95, %c0_96] : memref<2x1x32xf32, #tpu.memory_space<vmem>>, vector<1x1x32xf32>
    %158 = vector.shape_cast %157 : vector<1x1x32xf32> to vector<1x32xf32>
    %159 = vector.broadcast %158 : vector<1x32xf32> to vector<16x32xf32>
    %160 = arith.addf %156, %159 : vector<16x32xf32>
    %cst_97 = arith.constant dense<0.000000e+00> : vector<64x32xf32>
    %161 = tpu.matmul %3, %153, %cst_97 {dimension_numbers = #tpu.dot_dimension_numbers<[1], [0], [0], [1], [0, 0, 1, 1], [], []>} : vector<64x16xf32>, vector<16x32xf32>, vector<64x32xf32> -> vector<64x32xf32>
    %c1_98 = arith.constant 1 : index
    %c0_99 = arith.constant 0 : index
    %c0_100 = arith.constant 0 : index
    %162 = vector.load %arg11[%c1_98, %c0_99, %c0_100] : memref<2x32x32xf32, #tpu.memory_space<vmem>>, vector<1x32x32xf32>
    %163 = vector.shape_cast %162 : vector<1x32x32xf32> to vector<32x32xf32>
    %cst_101 = arith.constant dense<0.000000e+00> : vector<64x32xf32>
    %164 = tpu.matmul %161, %163, %cst_101 {dimension_numbers = #tpu.dot_dimension_numbers<[1], [0], [0], [1], [0, 0, 1, 1], [], []>} : vector<64x32xf32>, vector<32x32xf32>, vector<64x32xf32> -> vector<64x32xf32>
    %c1_102 = arith.constant 1 : index
    %c0_103 = arith.constant 0 : index
    %c0_104 = arith.constant 0 : index
    %165 = vector.load %arg12[%c1_102, %c0_103, %c0_104] : memref<2x1x32xf32, #tpu.memory_space<vmem>>, vector<1x1x32xf32>
    %166 = vector.shape_cast %165 : vector<1x1x32xf32> to vector<1x32xf32>
    %167 = vector.broadcast %166 : vector<1x32xf32> to vector<64x32xf32>
    %168 = arith.addf %164, %167 : vector<64x32xf32>
    %169 = arith.mulf %168, %1 : vector<64x32xf32>
    %c1_105 = arith.constant 1 : index
    %c0_106 = arith.constant 0 : index
    %c0_107 = arith.constant 0 : index
    %170 = vector.load %arg13[%c1_105, %c0_106, %c0_107] : memref<2x32x32xf32, #tpu.memory_space<vmem>>, vector<1x32x32xf32>
    %171 = vector.shape_cast %170 : vector<1x32x32xf32> to vector<32x32xf32>
    %cst_108 = arith.constant dense<0.000000e+00> : vector<64x32xf32>
    %172 = tpu.matmul %161, %171, %cst_108 {dimension_numbers = #tpu.dot_dimension_numbers<[1], [0], [0], [1], [0, 0, 1, 1], [], []>} : vector<64x32xf32>, vector<32x32xf32>, vector<64x32xf32> -> vector<64x32xf32>
    %c1_109 = arith.constant 1 : index
    %c0_110 = arith.constant 0 : index
    %c0_111 = arith.constant 0 : index
    %173 = vector.load %arg14[%c1_109, %c0_110, %c0_111] : memref<2x1x32xf32, #tpu.memory_space<vmem>>, vector<1x1x32xf32>
    %174 = vector.shape_cast %173 : vector<1x1x32xf32> to vector<1x32xf32>
    %175 = vector.broadcast %174 : vector<1x32xf32> to vector<64x32xf32>
    %176 = arith.addf %172, %175 : vector<64x32xf32>
    %177 = arith.mulf %176, %1 : vector<64x32xf32>
    %cst_112 = arith.constant dense<0.000000e+00> : vector<16x64xf32>
    %178 = tpu.matmul %160, %169, %cst_112 {dimension_numbers = #tpu.dot_dimension_numbers<[1], [1], [0], [0], [0, 0, 1, 0], [], []>} : vector<16x32xf32>, vector<64x32xf32>, vector<16x64xf32> -> vector<16x64xf32>
    %cst_113 = arith.constant 0.353553385 : f32
    %179 = vector.broadcast %cst_113 : f32 to vector<16x64xf32>
    %180 = arith.mulf %178, %179 : vector<16x64xf32>
    %181 = arith.addf %180, %0 : vector<16x64xf32>
    %cst_114 = arith.constant dense<0xFF800000> : vector<16xf32>
    %182 = vector.multi_reduction <maximumf>, %181, %cst_114 [1] : vector<16x64xf32> to vector<16xf32>
    %183 = vector.shape_cast %182 : vector<16xf32> to vector<16x1xf32>
    %184 = vector.broadcast %183 : vector<16x1xf32> to vector<16x64xf32>
    %185 = arith.subf %181, %184 : vector<16x64xf32>
    %186 = math.exp %185 : vector<16x64xf32>
    %cst_115 = arith.constant dense<0.000000e+00> : vector<16x64xf32>
    %187 = tpu.matmul %186, %2, %cst_115 {dimension_numbers = #tpu.dot_dimension_numbers<[1], [0], [0], [1], [0, 0, 1, 1], [], []>} : vector<16x64xf32>, vector<64x64xf32>, vector<16x64xf32> -> vector<16x64xf32>
    %188 = tpu.reciprocal %187 {approx = true} : vector<16x64xf32> -> vector<16x64xf32>
    %189 = arith.mulf %186, %188 : vector<16x64xf32>
    %cst_116 = arith.constant dense<0.000000e+00> : vector<16x32xf32>
    %190 = tpu.matmul %189, %177, %cst_116 {dimension_numbers = #tpu.dot_dimension_numbers<[1], [0], [0], [1], [0, 0, 1, 1], [], []>} : vector<16x64xf32>, vector<64x32xf32>, vector<16x32xf32> -> vector<16x32xf32>
    %c1_117 = arith.constant 1 : index
    %c0_118 = arith.constant 0 : index
    %c0_119 = arith.constant 0 : index
    %191 = vector.load %arg15[%c1_117, %c0_118, %c0_119] : memref<2x32x32xf32, #tpu.memory_space<vmem>>, vector<1x32x32xf32>
    %192 = vector.shape_cast %191 : vector<1x32x32xf32> to vector<32x32xf32>
    %cst_120 = arith.constant dense<0.000000e+00> : vector<16x32xf32>
    %193 = tpu.matmul %190, %192, %cst_120 {dimension_numbers = #tpu.dot_dimension_numbers<[1], [0], [0], [1], [0, 0, 1, 1], [], []>} : vector<16x32xf32>, vector<32x32xf32>, vector<16x32xf32> -> vector<16x32xf32>
    %c1_121 = arith.constant 1 : index
    %c0_122 = arith.constant 0 : index
    %c0_123 = arith.constant 0 : index
    %194 = vector.load %arg16[%c1_121, %c0_122, %c0_123] : memref<2x1x32xf32, #tpu.memory_space<vmem>>, vector<1x1x32xf32>
    %195 = vector.shape_cast %194 : vector<1x1x32xf32> to vector<1x32xf32>
    %196 = vector.broadcast %195 : vector<1x32xf32> to vector<16x32xf32>
    %197 = arith.addf %193, %196 : vector<16x32xf32>
    %198 = arith.addf %153, %197 : vector<16x32xf32>
    %c1_124 = arith.constant 1 : index
    %c0_125 = arith.constant 0 : index
    %c0_126 = arith.constant 0 : index
    %199 = vector.load %arg17[%c1_124, %c0_125, %c0_126] : memref<2x1x32xf32, #tpu.memory_space<vmem>>, vector<1x1x32xf32>
    %200 = vector.shape_cast %199 : vector<1x1x32xf32> to vector<1x32xf32>
    %c1_127 = arith.constant 1 : index
    %c0_128 = arith.constant 0 : index
    %c0_129 = arith.constant 0 : index
    %201 = vector.load %arg18[%c1_127, %c0_128, %c0_129] : memref<2x1x32xf32, #tpu.memory_space<vmem>>, vector<1x1x32xf32>
    %202 = vector.shape_cast %201 : vector<1x1x32xf32> to vector<1x32xf32>
    %cst_130 = arith.constant dense<0.000000e+00> : vector<16xf32>
    %203 = vector.multi_reduction <add>, %198, %cst_130 [1] : vector<16x32xf32> to vector<16xf32>
    %204 = vector.shape_cast %203 : vector<16xf32> to vector<16x1xf32>
    %cst_131 = arith.constant 3.200000e+01 : f32
    %205 = vector.broadcast %cst_131 : f32 to vector<16x1xf32>
    %206 = arith.divf %204, %205 : vector<16x1xf32>
    %207 = vector.broadcast %206 : vector<16x1xf32> to vector<16x32xf32>
    %208 = arith.subf %198, %207 : vector<16x32xf32>
    %209 = arith.mulf %208, %208 : vector<16x32xf32>
    %cst_132 = arith.constant dense<0.000000e+00> : vector<16xf32>
    %210 = vector.multi_reduction <add>, %209, %cst_132 [1] : vector<16x32xf32> to vector<16xf32>
    %211 = vector.shape_cast %210 : vector<16xf32> to vector<16x1xf32>
    %cst_133 = arith.constant 3.200000e+01 : f32
    %212 = vector.broadcast %cst_133 : f32 to vector<16x1xf32>
    %213 = arith.divf %211, %212 : vector<16x1xf32>
    %214 = vector.broadcast %206 : vector<16x1xf32> to vector<16x32xf32>
    %215 = arith.subf %198, %214 : vector<16x32xf32>
    %cst_134 = arith.constant 9.99999996E-13 : f32
    %216 = vector.broadcast %cst_134 : f32 to vector<16x1xf32>
    %217 = arith.addf %213, %216 : vector<16x1xf32>
    %218 = math.rsqrt %217 : vector<16x1xf32>
    %219 = vector.broadcast %218 : vector<16x1xf32> to vector<16x32xf32>
    %220 = arith.mulf %215, %219 : vector<16x32xf32>
    %221 = vector.broadcast %200 : vector<1x32xf32> to vector<16x32xf32>
    %222 = arith.mulf %220, %221 : vector<16x32xf32>
    %223 = vector.broadcast %202 : vector<1x32xf32> to vector<16x32xf32>
    %224 = arith.addf %222, %223 : vector<16x32xf32>
    %c1_135 = arith.constant 1 : index
    %c0_136 = arith.constant 0 : index
    %c0_137 = arith.constant 0 : index
    %225 = vector.load %arg19[%c1_135, %c0_136, %c0_137] : memref<2x32x64xf32, #tpu.memory_space<vmem>>, vector<1x32x64xf32>
    %226 = vector.shape_cast %225 : vector<1x32x64xf32> to vector<32x64xf32>
    %cst_138 = arith.constant dense<0.000000e+00> : vector<16x64xf32>
    %227 = tpu.matmul %224, %226, %cst_138 {dimension_numbers = #tpu.dot_dimension_numbers<[1], [0], [0], [1], [0, 0, 1, 1], [], []>} : vector<16x32xf32>, vector<32x64xf32>, vector<16x64xf32> -> vector<16x64xf32>
    %c1_139 = arith.constant 1 : index
    %c0_140 = arith.constant 0 : index
    %c0_141 = arith.constant 0 : index
    %228 = vector.load %arg20[%c1_139, %c0_140, %c0_141] : memref<2x1x64xf32, #tpu.memory_space<vmem>>, vector<1x1x64xf32>
    %229 = vector.shape_cast %228 : vector<1x1x64xf32> to vector<1x64xf32>
    %230 = vector.broadcast %229 : vector<1x64xf32> to vector<16x64xf32>
    %231 = arith.addf %227, %230 : vector<16x64xf32>
    %cst_142 = arith.constant 5.000000e-01 : f32
    %232 = vector.broadcast %cst_142 : f32 to vector<16x64xf32>
    %233 = arith.mulf %232, %231 : vector<16x64xf32>
    %cst_143 = arith.constant 4.471500e-02 : f32
    %234 = vector.broadcast %cst_143 : f32 to vector<16x64xf32>
    %235 = arith.mulf %234, %231 : vector<16x64xf32>
    %236 = arith.mulf %235, %231 : vector<16x64xf32>
    %237 = arith.mulf %236, %231 : vector<16x64xf32>
    %238 = arith.addf %231, %237 : vector<16x64xf32>
    %cst_144 = arith.constant 0.797884583 : f32
    %239 = vector.broadcast %cst_144 : f32 to vector<16x64xf32>
    %240 = arith.mulf %239, %238 : vector<16x64xf32>
    %241 = math.tanh %240 : vector<16x64xf32>
    %cst_145 = arith.constant 1.000000e+00 : f32
    %242 = vector.broadcast %cst_145 : f32 to vector<16x64xf32>
    %243 = arith.addf %242, %241 : vector<16x64xf32>
    %244 = arith.mulf %233, %243 : vector<16x64xf32>
    %c1_146 = arith.constant 1 : index
    %c0_147 = arith.constant 0 : index
    %c0_148 = arith.constant 0 : index
    %245 = vector.load %arg21[%c1_146, %c0_147, %c0_148] : memref<2x64x32xf32, #tpu.memory_space<vmem>>, vector<1x64x32xf32>
    %246 = vector.shape_cast %245 : vector<1x64x32xf32> to vector<64x32xf32>
    %cst_149 = arith.constant dense<0.000000e+00> : vector<16x32xf32>
    %247 = tpu.matmul %244, %246, %cst_149 {dimension_numbers = #tpu.dot_dimension_numbers<[1], [0], [0], [1], [0, 0, 1, 1], [], []>} : vector<16x64xf32>, vector<64x32xf32>, vector<16x32xf32> -> vector<16x32xf32>
    %c1_150 = arith.constant 1 : index
    %c0_151 = arith.constant 0 : index
    %c0_152 = arith.constant 0 : index
    %248 = vector.load %arg22[%c1_150, %c0_151, %c0_152] : memref<2x1x32xf32, #tpu.memory_space<vmem>>, vector<1x1x32xf32>
    %249 = vector.shape_cast %248 : vector<1x1x32xf32> to vector<1x32xf32>
    %250 = vector.broadcast %249 : vector<1x32xf32> to vector<16x32xf32>
    %251 = arith.addf %247, %250 : vector<16x32xf32>
    %252 = arith.addf %224, %251 : vector<16x32xf32>
    %c1_153 = arith.constant 1 : index
    %c0_154 = arith.constant 0 : index
    %c0_155 = arith.constant 0 : index
    %253 = vector.load %arg23[%c1_153, %c0_154, %c0_155] : memref<2x1x32xf32, #tpu.memory_space<vmem>>, vector<1x1x32xf32>
    %254 = vector.shape_cast %253 : vector<1x1x32xf32> to vector<1x32xf32>
    %c1_156 = arith.constant 1 : index
    %c0_157 = arith.constant 0 : index
    %c0_158 = arith.constant 0 : index
    %255 = vector.load %arg24[%c1_156, %c0_157, %c0_158] : memref<2x1x32xf32, #tpu.memory_space<vmem>>, vector<1x1x32xf32>
    %256 = vector.shape_cast %255 : vector<1x1x32xf32> to vector<1x32xf32>
    %cst_159 = arith.constant dense<0.000000e+00> : vector<16xf32>
    %257 = vector.multi_reduction <add>, %252, %cst_159 [1] : vector<16x32xf32> to vector<16xf32>
    %258 = vector.shape_cast %257 : vector<16xf32> to vector<16x1xf32>
    %cst_160 = arith.constant 3.200000e+01 : f32
    %259 = vector.broadcast %cst_160 : f32 to vector<16x1xf32>
    %260 = arith.divf %258, %259 : vector<16x1xf32>
    %261 = vector.broadcast %260 : vector<16x1xf32> to vector<16x32xf32>
    %262 = arith.subf %252, %261 : vector<16x32xf32>
    %263 = arith.mulf %262, %262 : vector<16x32xf32>
    %cst_161 = arith.constant dense<0.000000e+00> : vector<16xf32>
    %264 = vector.multi_reduction <add>, %263, %cst_161 [1] : vector<16x32xf32> to vector<16xf32>
    %265 = vector.shape_cast %264 : vector<16xf32> to vector<16x1xf32>
    %cst_162 = arith.constant 3.200000e+01 : f32
    %266 = vector.broadcast %cst_162 : f32 to vector<16x1xf32>
    %267 = arith.divf %265, %266 : vector<16x1xf32>
    %268 = vector.broadcast %260 : vector<16x1xf32> to vector<16x32xf32>
    %269 = arith.subf %252, %268 : vector<16x32xf32>
    %cst_163 = arith.constant 9.99999996E-13 : f32
    %270 = vector.broadcast %cst_163 : f32 to vector<16x1xf32>
    %271 = arith.addf %267, %270 : vector<16x1xf32>
    %272 = math.rsqrt %271 : vector<16x1xf32>
    %273 = vector.broadcast %272 : vector<16x1xf32> to vector<16x32xf32>
    %274 = arith.mulf %269, %273 : vector<16x32xf32>
    %275 = vector.broadcast %254 : vector<1x32xf32> to vector<16x32xf32>
    %276 = arith.mulf %274, %275 : vector<16x32xf32>
    %277 = vector.broadcast %256 : vector<1x32xf32> to vector<16x32xf32>
    %278 = arith.addf %276, %277 : vector<16x32xf32>
    %c0_164 = arith.constant 0 : index
    %c0_165 = arith.constant 0 : index
    %279 = vector.load %arg33[%c0_164, %c0_165] : memref<16x32xf32, #tpu.memory_space<vmem>>, vector<16x32xf32>
    tpu.vector_store %arg33[%c0_164, %c0_165], %278 {strides = array<i32>} : memref<16x32xf32, #tpu.memory_space<vmem>>, vector<16x32xf32>,
    %c0_166 = arith.constant 0 : index
    %c0_167 = arith.constant 0 : index
    %280 = vector.load %arg6[%c0_166, %c0_167] : memref<3x16xf32, #tpu.memory_space<vmem>>, vector<3x16xf32>
    %cst_168 = arith.constant dense<0.000000e+00> : vector<3x32xf32>
    %281 = tpu.matmul %280, %278, %cst_168 {dimension_numbers = #tpu.dot_dimension_numbers<[1], [0], [0], [1], [0, 0, 1, 1], [], []>} : vector<3x16xf32>, vector<16x32xf32>, vector<3x32xf32> -> vector<3x32xf32>
    %c0_169 = arith.constant 0 : index
    %c0_170 = arith.constant 0 : index
    %282 = vector.load %arg25[%c0_169, %c0_170] : memref<32x96xf32, #tpu.memory_space<vmem>>, vector<32x96xf32>
    %cst_171 = arith.constant dense<0.000000e+00> : vector<3x96xf32>
    %283 = tpu.matmul %281, %282, %cst_171 {dimension_numbers = #tpu.dot_dimension_numbers<[1], [0], [0], [1], [0, 0, 1, 1], [], []>} : vector<3x32xf32>, vector<32x96xf32>, vector<3x96xf32> -> vector<3x96xf32>
    %c0_172 = arith.constant 0 : index
    %c0_173 = arith.constant 0 : index
    %284 = vector.load %arg27[%c0_172, %c0_173] : memref<1x96xf32, #tpu.memory_space<vmem>>, vector<1x96xf32>
    %285 = vector.broadcast %284 : vector<1x96xf32> to vector<3x96xf32>
    %286 = arith.addf %283, %285 : vector<3x96xf32>
    %cst_174 = arith.constant 0.000000e+00 : f32
    %287 = vector.broadcast %cst_174 : f32 to vector<1x32xf32>
    %c0_175 = arith.constant 0 : index
    %c0_176 = arith.constant 0 : index
    %288 = vector.load %arg26[%c0_175, %c0_176] : memref<32x96xf32, #tpu.memory_space<vmem>>, vector<32x96xf32>
    %cst_177 = arith.constant dense<0.000000e+00> : vector<1x96xf32>
    %289 = tpu.matmul %287, %288, %cst_177 {dimension_numbers = #tpu.dot_dimension_numbers<[1], [0], [0], [1], [0, 0, 1, 1], [], []>} : vector<1x32xf32>, vector<32x96xf32>, vector<1x96xf32> -> vector<1x96xf32>
    %c0_178 = arith.constant 0 : index
    %c0_179 = arith.constant 0 : index
    %290 = vector.load %arg28[%c0_178, %c0_179] : memref<1x96xf32, #tpu.memory_space<vmem>>, vector<1x96xf32>
    %291 = arith.addf %289, %290 : vector<1x96xf32>
    %292 = vector.extract_strided_slice %286 {offsets = [0, 0], sizes = [1, 32], strides = [1, 1]} : vector<3x96xf32> to vector<1x32xf32>
    %293 = vector.extract_strided_slice %286 {offsets = [0, 32], sizes = [1, 32], strides = [1, 1]} : vector<3x96xf32> to vector<1x32xf32>
    %294 = vector.extract_strided_slice %286 {offsets = [0, 64], sizes = [1, 32], strides = [1, 1]} : vector<3x96xf32> to vector<1x32xf32>
    %295 = vector.extract_strided_slice %291 {offsets = [0, 0], sizes = [1, 32], strides = [1, 1]} : vector<1x96xf32> to vector<1x32xf32>
    %296 = vector.extract_strided_slice %291 {offsets = [0, 32], sizes = [1, 32], strides = [1, 1]} : vector<1x96xf32> to vector<1x32xf32>
    %297 = vector.extract_strided_slice %291 {offsets = [0, 64], sizes = [1, 32], strides = [1, 1]} : vector<1x96xf32> to vector<1x32xf32>
    %298 = arith.addf %292, %295 : vector<1x32xf32>
    %299 = arith.negf %298 : vector<1x32xf32>
    %300 = math.exp %299 : vector<1x32xf32>
    %cst_180 = arith.constant 1.000000e+00 : f32
    %301 = vector.broadcast %cst_180 : f32 to vector<1x32xf32>
    %302 = arith.addf %301, %300 : vector<1x32xf32>
    %303 = arith.divf %301, %302 : vector<1x32xf32>
    %304 = arith.addf %293, %296 : vector<1x32xf32>
    %305 = arith.negf %304 : vector<1x32xf32>
    %306 = math.exp %305 : vector<1x32xf32>
    %cst_181 = arith.constant 1.000000e+00 : f32
    %307 = vector.broadcast %cst_181 : f32 to vector<1x32xf32>
    %308 = arith.addf %307, %306 : vector<1x32xf32>
    %309 = arith.divf %307, %308 : vector<1x32xf32>
    %310 = arith.mulf %303, %297 : vector<1x32xf32>
    %311 = arith.addf %294, %310 : vector<1x32xf32>
    %312 = math.tanh %311 : vector<1x32xf32>
    %cst_182 = arith.constant 1.000000e+00 : f32
    %313 = vector.broadcast %cst_182 : f32 to vector<1x32xf32>
    %314 = arith.subf %313, %309 : vector<1x32xf32>
    %315 = arith.mulf %314, %312 : vector<1x32xf32>
    %316 = arith.mulf %309, %287 : vector<1x32xf32>
    %317 = arith.addf %315, %316 : vector<1x32xf32>
    %c0_183 = arith.constant 0 : index
    %c0_184 = arith.constant 0 : index
    %318 = vector.load %arg36[%c0_183, %c0_184] : memref<8x32xf32, #tpu.memory_space<vmem>>, vector<1x32xf32>
    tpu.vector_store %arg36[%c0_183, %c0_184], %317 {strides = array<i32>} : memref<8x32xf32, #tpu.memory_space<vmem>>, vector<1x32xf32>,
    %c0_185 = arith.constant 0 : index
    %c0_186 = arith.constant 0 : index
    %319 = vector.load %arg26[%c0_185, %c0_186] : memref<32x96xf32, #tpu.memory_space<vmem>>, vector<32x96xf32>
    %cst_187 = arith.constant dense<0.000000e+00> : vector<1x96xf32>
    %320 = tpu.matmul %317, %319, %cst_187 {dimension_numbers = #tpu.dot_dimension_numbers<[1], [0], [0], [1], [0, 0, 1, 1], [], []>} : vector<1x32xf32>, vector<32x96xf32>, vector<1x96xf32> -> vector<1x96xf32>
    %c0_188 = arith.constant 0 : index
    %c0_189 = arith.constant 0 : index
    %321 = vector.load %arg28[%c0_188, %c0_189] : memref<1x96xf32, #tpu.memory_space<vmem>>, vector<1x96xf32>
    %322 = arith.addf %320, %321 : vector<1x96xf32>
    %323 = vector.extract_strided_slice %286 {offsets = [1, 0], sizes = [1, 32], strides = [1, 1]} : vector<3x96xf32> to vector<1x32xf32>
    %324 = vector.extract_strided_slice %286 {offsets = [1, 32], sizes = [1, 32], strides = [1, 1]} : vector<3x96xf32> to vector<1x32xf32>
    %325 = vector.extract_strided_slice %286 {offsets = [1, 64], sizes = [1, 32], strides = [1, 1]} : vector<3x96xf32> to vector<1x32xf32>
    %326 = vector.extract_strided_slice %322 {offsets = [0, 0], sizes = [1, 32], strides = [1, 1]} : vector<1x96xf32> to vector<1x32xf32>
    %327 = vector.extract_strided_slice %322 {offsets = [0, 32], sizes = [1, 32], strides = [1, 1]} : vector<1x96xf32> to vector<1x32xf32>
    %328 = vector.extract_strided_slice %322 {offsets = [0, 64], sizes = [1, 32], strides = [1, 1]} : vector<1x96xf32> to vector<1x32xf32>
    %329 = arith.addf %323, %326 : vector<1x32xf32>
    %330 = arith.negf %329 : vector<1x32xf32>
    %331 = math.exp %330 : vector<1x32xf32>
    %cst_190 = arith.constant 1.000000e+00 : f32
    %332 = vector.broadcast %cst_190 : f32 to vector<1x32xf32>
    %333 = arith.addf %332, %331 : vector<1x32xf32>
    %334 = arith.divf %332, %333 : vector<1x32xf32>
    %335 = arith.addf %324, %327 : vector<1x32xf32>
    %336 = arith.negf %335 : vector<1x32xf32>
    %337 = math.exp %336 : vector<1x32xf32>
    %cst_191 = arith.constant 1.000000e+00 : f32
    %338 = vector.broadcast %cst_191 : f32 to vector<1x32xf32>
    %339 = arith.addf %338, %337 : vector<1x32xf32>
    %340 = arith.divf %338, %339 : vector<1x32xf32>
    %341 = arith.mulf %334, %328 : vector<1x32xf32>
    %342 = arith.addf %325, %341 : vector<1x32xf32>
    %343 = math.tanh %342 : vector<1x32xf32>
    %cst_192 = arith.constant 1.000000e+00 : f32
    %344 = vector.broadcast %cst_192 : f32 to vector<1x32xf32>
    %345 = arith.subf %344, %340 : vector<1x32xf32>
    %346 = arith.mulf %345, %343 : vector<1x32xf32>
    %347 = arith.mulf %340, %317 : vector<1x32xf32>
    %348 = arith.addf %346, %347 : vector<1x32xf32>
    %c1_193 = arith.constant 1 : index
    %c0_194 = arith.constant 0 : index
    %349 = vector.load %arg36[%c1_193, %c0_194] : memref<8x32xf32, #tpu.memory_space<vmem>>, vector<1x32xf32>
    tpu.vector_store %arg36[%c1_193, %c0_194], %348 {strides = array<i32>} : memref<8x32xf32, #tpu.memory_space<vmem>>, vector<1x32xf32>,
    %c0_195 = arith.constant 0 : index
    %c0_196 = arith.constant 0 : index
    %350 = vector.load %arg26[%c0_195, %c0_196] : memref<32x96xf32, #tpu.memory_space<vmem>>, vector<32x96xf32>
    %cst_197 = arith.constant dense<0.000000e+00> : vector<1x96xf32>
    %351 = tpu.matmul %348, %350, %cst_197 {dimension_numbers = #tpu.dot_dimension_numbers<[1], [0], [0], [1], [0, 0, 1, 1], [], []>} : vector<1x32xf32>, vector<32x96xf32>, vector<1x96xf32> -> vector<1x96xf32>
    %c0_198 = arith.constant 0 : index
    %c0_199 = arith.constant 0 : index
    %352 = vector.load %arg28[%c0_198, %c0_199] : memref<1x96xf32, #tpu.memory_space<vmem>>, vector<1x96xf32>
    %353 = arith.addf %351, %352 : vector<1x96xf32>
    %354 = vector.extract_strided_slice %286 {offsets = [2, 0], sizes = [1, 32], strides = [1, 1]} : vector<3x96xf32> to vector<1x32xf32>
    %355 = vector.extract_strided_slice %286 {offsets = [2, 32], sizes = [1, 32], strides = [1, 1]} : vector<3x96xf32> to vector<1x32xf32>
    %356 = vector.extract_strided_slice %286 {offsets = [2, 64], sizes = [1, 32], strides = [1, 1]} : vector<3x96xf32> to vector<1x32xf32>
    %357 = vector.extract_strided_slice %353 {offsets = [0, 0], sizes = [1, 32], strides = [1, 1]} : vector<1x96xf32> to vector<1x32xf32>
    %358 = vector.extract_strided_slice %353 {offsets = [0, 32], sizes = [1, 32], strides = [1, 1]} : vector<1x96xf32> to vector<1x32xf32>
    %359 = vector.extract_strided_slice %353 {offsets = [0, 64], sizes = [1, 32], strides = [1, 1]} : vector<1x96xf32> to vector<1x32xf32>
    %360 = arith.addf %354, %357 : vector<1x32xf32>
    %361 = arith.negf %360 : vector<1x32xf32>
    %362 = math.exp %361 : vector<1x32xf32>
    %cst_200 = arith.constant 1.000000e+00 : f32
    %363 = vector.broadcast %cst_200 : f32 to vector<1x32xf32>
    %364 = arith.addf %363, %362 : vector<1x32xf32>
    %365 = arith.divf %363, %364 : vector<1x32xf32>
    %366 = arith.addf %355, %358 : vector<1x32xf32>
    %367 = arith.negf %366 : vector<1x32xf32>
    %368 = math.exp %367 : vector<1x32xf32>
    %cst_201 = arith.constant 1.000000e+00 : f32
    %369 = vector.broadcast %cst_201 : f32 to vector<1x32xf32>
    %370 = arith.addf %369, %368 : vector<1x32xf32>
    %371 = arith.divf %369, %370 : vector<1x32xf32>
    %372 = arith.mulf %365, %359 : vector<1x32xf32>
    %373 = arith.addf %356, %372 : vector<1x32xf32>
    %374 = math.tanh %373 : vector<1x32xf32>
    %cst_202 = arith.constant 1.000000e+00 : f32
    %375 = vector.broadcast %cst_202 : f32 to vector<1x32xf32>
    %376 = arith.subf %375, %371 : vector<1x32xf32>
    %377 = arith.mulf %376, %374 : vector<1x32xf32>
    %378 = arith.mulf %371, %348 : vector<1x32xf32>
    %379 = arith.addf %377, %378 : vector<1x32xf32>
    %c2 = arith.constant 2 : index
    %c0_203 = arith.constant 0 : index
    %380 = vector.load %arg36[%c2, %c0_203] : memref<8x32xf32, #tpu.memory_space<vmem>>, vector<1x32xf32>
    tpu.vector_store %arg36[%c2, %c0_203], %379 {strides = array<i32>} : memref<8x32xf32, #tpu.memory_space<vmem>>, vector<1x32xf32>,
    %c0_204 = arith.constant 0 : index
    %c0_205 = arith.constant 0 : index
    %381 = vector.load %arg35[%c0_204, %c0_205] : memref<1x32xf32, #tpu.memory_space<vmem>>, vector<1x32xf32>
    tpu.vector_store %arg35[%c0_204, %c0_205], %379 {strides = array<i32>} : memref<1x32xf32, #tpu.memory_space<vmem>>, vector<1x32xf32>,
    %c0_206 = arith.constant 0 : index
    %c0_207 = arith.constant 0 : index
    %382 = vector.load %arg36[%c0_206, %c0_207] : memref<8x32xf32, #tpu.memory_space<vmem>>, vector<3x32xf32>
    %c0_208 = arith.constant 0 : index
    %c0_209 = arith.constant 0 : index
    %383 = vector.load %arg29[%c0_208, %c0_209] : memref<32x48xf32, #tpu.memory_space<vmem>>, vector<32x48xf32>
    %cst_210 = arith.constant dense<0.000000e+00> : vector<3x48xf32>
    %384 = tpu.matmul %382, %383, %cst_210 {dimension_numbers = #tpu.dot_dimension_numbers<[1], [0], [0], [1], [0, 0, 1, 1], [], []>} : vector<3x32xf32>, vector<32x48xf32>, vector<3x48xf32> -> vector<3x48xf32>
    %c0_211 = arith.constant 0 : index
    %c0_212 = arith.constant 0 : index
    %385 = vector.load %arg30[%c0_211, %c0_212] : memref<1x48xf32, #tpu.memory_space<vmem>>, vector<1x48xf32>
    %386 = vector.broadcast %385 : vector<1x48xf32> to vector<3x48xf32>
    %387 = arith.addf %384, %386 : vector<3x48xf32>
    %cst_213 = arith.constant 0.000000e+00 : f32
    %388 = vector.broadcast %cst_213 : f32 to vector<3x48xf32>
    %389 = arith.cmpf ogt, %387, %388 : vector<3x48xf32>
    %cst_214 = arith.constant 0.000000e+00 : f32
    %390 = vector.broadcast %cst_214 : f32 to vector<3x48xf32>
    %391 = arith.minimumf %387, %390 : vector<3x48xf32>
    %392 = math.exp %391 : vector<3x48xf32>
    %cst_215 = arith.constant 1.000000e+00 : f32
    %393 = vector.broadcast %cst_215 : f32 to vector<3x48xf32>
    %394 = arith.subf %392, %393 : vector<3x48xf32>
    %395 = arith.select %389, %387, %394 : vector<3x48xi1>, vector<3x48xf32>
    %c0_216 = arith.constant 0 : index
    %c0_217 = arith.constant 0 : index
    %396 = vector.load %arg31[%c0_216, %c0_217] : memref<48x16xf32, #tpu.memory_space<vmem>>, vector<48x16xf32>
    %cst_218 = arith.constant dense<0.000000e+00> : vector<3x16xf32>
    %397 = tpu.matmul %395, %396, %cst_218 {dimension_numbers = #tpu.dot_dimension_numbers<[1], [0], [0], [1], [0, 0, 1, 1], [], []>} : vector<3x48xf32>, vector<48x16xf32>, vector<3x16xf32> -> vector<3x16xf32>
    %c0_219 = arith.constant 0 : index
    %c0_220 = arith.constant 0 : index
    %398 = vector.load %arg32[%c0_219, %c0_220] : memref<1x16xf32, #tpu.memory_space<vmem>>, vector<1x16xf32>
    %399 = vector.broadcast %398 : vector<1x16xf32> to vector<3x16xf32>
    %400 = arith.addf %397, %399 : vector<3x16xf32>
    %c0_221 = arith.constant 0 : index
    %c0_222 = arith.constant 0 : index
    %401 = vector.load %arg34[%c0_221, %c0_222] : memref<3x16xf32, #tpu.memory_space<vmem>>, vector<3x16xf32>
    tpu.vector_store %arg34[%c0_221, %c0_222], %400 {strides = array<i32>} : memref<3x16xf32, #tpu.memory_space<vmem>>, vector<3x16xf32>,
    return
  }
  func.func @transform_0(%arg0: i32) -> (i32, i32) {
    %c0_i32 = arith.constant 0 : i32
    %c0_i32_0 = arith.constant 0 : i32
    %c0_i32_1 = arith.constant 0 : i32
    return %c0_i32, %c0_i32_0 : i32, i32
  }
  func.func @transform_1(%arg0: i32) -> (i32, i32) {
    %c0_i32 = arith.constant 0 : i32
    %c0_i32_0 = arith.constant 0 : i32
    %c0_i32_1 = arith.constant 0 : i32
    return %c0_i32, %c0_i32_0 : i32, i32
  }
  func.func @transform_2(%arg0: i32) -> (i32, i32) {
    %c0_i32 = arith.constant 0 : i32
    %c0_i32_0 = arith.constant 0 : i32
    %c0_i32_1 = arith.constant 0 : i32
    return %c0_i32, %c0_i32_0 : i32, i32
  }
  func.func @transform_3(%arg0: i32) -> (i32, i32) {
    %c0_i32 = arith.constant 0 : i32
    %c0_i32_0 = arith.constant 0 : i32
    %c0_i32_1 = arith.constant 0 : i32
    return %c0_i32, %c0_i32_0 : i32, i32
  }
  func.func @transform_4(%arg0: i32) -> (i32, i32) {
    %c0_i32 = arith.constant 0 : i32
    %c0_i32_0 = arith.constant 0 : i32
    %c0_i32_1 = arith.constant 0 : i32
    return %c0_i32, %c0_i32_0 : i32, i32
  }
  func.func @transform_5(%arg0: i32) -> (i32, i32) {
    %c0_i32 = arith.constant 0 : i32
    %c0_i32_0 = arith.constant 0 : i32
    %c0_i32_1 = arith.constant 0 : i32
    return %c0_i32, %c0_i32_0 : i32, i32
  }
  func.func @transform_6(%arg0: i32) -> (i32, i32) {
    %c0_i32 = arith.constant 0 : i32
    %c0_i32_0 = arith.constant 0 : i32
    %c0_i32_1 = arith.constant 0 : i32
    return %c0_i32, %c0_i32_0 : i32, i32
  }
  func.func @transform_7(%arg0: i32) -> (i32, i32) {
    %c0_i32 = arith.constant 0 : i32
    %c0_i32_0 = arith.constant 0 : i32
    %c0_i32_1 = arith.constant 0 : i32
    return %c0_i32, %c0_i32_0 : i32, i32
  }
  func.func @transform_8(%arg0: i32) -> (i32, i32, i32) {
    %c0_i32 = arith.constant 0 : i32
    %c0_i32_0 = arith.constant 0 : i32
    %c0_i32_1 = arith.constant 0 : i32
    %c0_i32_2 = arith.constant 0 : i32
    return %c0_i32, %c0_i32_0, %c0_i32_1 : i32, i32, i32
  }
  func.func @transform_9(%arg0: i32) -> (i32, i32, i32) {
    %c0_i32 = arith.constant 0 : i32
    %c0_i32_0 = arith.constant 0 : i32
    %c0_i32_1 = arith.constant 0 : i32
    %c0_i32_2 = arith.constant 0 : i32
    return %c0_i32, %c0_i32_0, %c0_i32_1 : i32, i32, i32
  }
  func.func @transform_10(%arg0: i32) -> (i32, i32, i32) {
    %c0_i32 = arith.constant 0 : i32
    %c0_i32_0 = arith.constant 0 : i32
    %c0_i32_1 = arith.constant 0 : i32
    %c0_i32_2 = arith.constant 0 : i32
    return %c0_i32, %c0_i32_0, %c0_i32_1 : i32, i32, i32
  }
  func.func @transform_11(%arg0: i32) -> (i32, i32, i32) {
    %c0_i32 = arith.constant 0 : i32
    %c0_i32_0 = arith.constant 0 : i32
    %c0_i32_1 = arith.constant 0 : i32
    %c0_i32_2 = arith.constant 0 : i32
    return %c0_i32, %c0_i32_0, %c0_i32_1 : i32, i32, i32
  }
  func.func @transform_12(%arg0: i32) -> (i32, i32, i32) {
    %c0_i32 = arith.constant 0 : i32
    %c0_i32_0 = arith.constant 0 : i32
    %c0_i32_1 = arith.constant 0 : i32
    %c0_i32_2 = arith.constant 0 : i32
    return %c0_i32, %c0_i32_0, %c0_i32_1 : i32, i32, i32
  }
  func.func @transform_13(%arg0: i32) -> (i32, i32, i32) {
    %c0_i32 = arith.constant 0 : i32
    %c0_i32_0 = arith.constant 0 : i32
    %c0_i32_1 = arith.constant 0 : i32
    %c0_i32_2 = arith.constant 0 : i32
    return %c0_i32, %c0_i32_0, %c0_i32_1 : i32, i32, i32
  }
  func.func @transform_14(%arg0: i32) -> (i32, i32, i32) {
    %c0_i32 = arith.constant 0 : i32
    %c0_i32_0 = arith.constant 0 : i32
    %c0_i32_1 = arith.constant 0 : i32
    %c0_i32_2 = arith.constant 0 : i32
    return %c0_i32, %c0_i32_0, %c0_i32_1 : i32, i32, i32
  }
  func.func @transform_15(%arg0: i32) -> (i32, i32, i32) {
    %c0_i32 = arith.constant 0 : i32
    %c0_i32_0 = arith.constant 0 : i32
    %c0_i32_1 = arith.constant 0 : i32
    %c0_i32_2 = arith.constant 0 : i32
    return %c0_i32, %c0_i32_0, %c0_i32_1 : i32, i32, i32
  }
  func.func @transform_16(%arg0: i32) -> (i32, i32, i32) {
    %c0_i32 = arith.constant 0 : i32
    %c0_i32_0 = arith.constant 0 : i32
    %c0_i32_1 = arith.constant 0 : i32
    %c0_i32_2 = arith.constant 0 : i32
    return %c0_i32, %c0_i32_0, %c0_i32_1 : i32, i32, i32
  }
  func.func @transform_17(%arg0: i32) -> (i32, i32, i32) {
    %c0_i32 = arith.constant 0 : i32
    %c0_i32_0 = arith.constant 0 : i32
    %c0_i32_1 = arith.constant 0 : i32
    %c0_i32_2 = arith.constant 0 : i32
    return %c0_i32, %c0_i32_0, %c0_i32_1 : i32, i32, i32
  }
  func.func @transform_18(%arg0: i32) -> (i32, i32, i32) {
    %c0_i32 = arith.constant 0 : i32
    %c0_i32_0 = arith.constant 0 : i32
    %c0_i32_1 = arith.constant 0 : i32
    %c0_i32_2 = arith.constant 0 : i32
    return %c0_i32, %c0_i32_0, %c0_i32_1 : i32, i32, i32
  }
  func.func @transform_19(%arg0: i32) -> (i32, i32, i32) {
    %c0_i32 = arith.constant 0 : i32
    %c0_i32_0 = arith.constant 0 : i32
    %c0_i32_1 = arith.constant 0 : i32
    %c0_i32_2 = arith.constant 0 : i32
    return %c0_i32, %c0_i32_0, %c0_i32_1 : i32, i32, i32
  }
  func.func @transform_20(%arg0: i32) -> (i32, i32, i32) {
    %c0_i32 = arith.constant 0 : i32
    %c0_i32_0 = arith.constant 0 : i32
    %c0_i32_1 = arith.constant 0 : i32
    %c0_i32_2 = arith.constant 0 : i32
    return %c0_i32, %c0_i32_0, %c0_i32_1 : i32, i32, i32
  }
  func.func @transform_21(%arg0: i32) -> (i32, i32, i32) {
    %c0_i32 = arith.constant 0 : i32
    %c0_i32_0 = arith.constant 0 : i32
    %c0_i32_1 = arith.constant 0 : i32
    %c0_i32_2 = arith.constant 0 : i32
    return %c0_i32, %c0_i32_0, %c0_i32_1 : i32, i32, i32
  }
  func.func @transform_22(%arg0: i32) -> (i32, i32, i32) {
    %c0_i32 = arith.constant 0 : i32
    %c0_i32_0 = arith.constant 0 : i32
    %c0_i32_1 = arith.constant 0 : i32
    %c0_i32_2 = arith.constant 0 : i32
    return %c0_i32, %c0_i32_0, %c0_i32_1 : i32, i32, i32
  }
  func.func @transform_23(%arg0: i32) -> (i32, i32, i32) {
    %c0_i32 = arith.constant 0 : i32
    %c0_i32_0 = arith.constant 0 : i32
    %c0_i32_1 = arith.constant 0 : i32
    %c0_i32_2 = arith.constant 0 : i32
    return %c0_i32, %c0_i32_0, %c0_i32_1 : i32, i32, i32
  }
  func.func @transform_24(%arg0: i32) -> (i32, i32) {
    %c0_i32 = arith.constant 0 : i32
    %c0_i32_0 = arith.constant 0 : i32
    %c0_i32_1 = arith.constant 0 : i32
    return %c0_i32, %c0_i32_0 : i32, i32
  }
  func.func @transform_25(%arg0: i32) -> (i32, i32) {
    %c0_i32 = arith.constant 0 : i32
    %c0_i32_0 = arith.constant 0 : i32
    %c0_i32_1 = arith.constant 0 : i32
    return %c0_i32, %c0_i32_0 : i32, i32
  }
  func.func @transform_26(%arg0: i32) -> (i32, i32) {
    %c0_i32 = arith.constant 0 : i32
    %c0_i32_0 = arith.constant 0 : i32
    %c0_i32_1 = arith.constant 0 : i32
    return %c0_i32, %c0_i32_0 : i32, i32
  }
  func.func @transform_27(%arg0: i32) -> (i32, i32) {
    %c0_i32 = arith.constant 0 : i32
    %c0_i32_0 = arith.constant 0 : i32
    %c0_i32_1 = arith.constant 0 : i32
    return %c0_i32, %c0_i32_0 : i32, i32
  }
  func.func @transform_28(%arg0: i32) -> (i32, i32) {
    %c0_i32 = arith.constant 0 : i32
    %c0_i32_0 = arith.constant 0 : i32
    %c0_i32_1 = arith.constant 0 : i32
    return %c0_i32, %c0_i32_0 : i32, i32
  }
  func.func @transform_29(%arg0: i32) -> (i32, i32) {
    %c0_i32 = arith.constant 0 : i32
    %c0_i32_0 = arith.constant 0 : i32
    %c0_i32_1 = arith.constant 0 : i32
    return %c0_i32, %c0_i32_0 : i32, i32
  }
  func.func @transform_30(%arg0: i32) -> (i32, i32) {
    %c0_i32 = arith.constant 0 : i32
    %c0_i32_0 = arith.constant 0 : i32
    %c0_i32_1 = arith.constant 0 : i32
    return %c0_i32, %c0_i32_0 : i32, i32
  }
  func.func @transform_31(%arg0: i32) -> (i32, i32) {
    %c0_i32 = arith.constant 0 : i32
    %c0_i32_0 = arith.constant 0 : i32
    %c0_i32_1 = arith.constant 0 : i32
    return %c0_i32, %c0_i32_0 : i32, i32
  }
  func.func @transform_32(%arg0: i32) -> (i32, i32) {
    %c0_i32 = arith.constant 0 : i32
    %c0_i32_0 = arith.constant 0 : i32
    %c0_i32_1 = arith.constant 0 : i32
    return %c0_i32, %c0_i32_0 : i32, i32
  }
  func.func @transform_33(%arg0: i32) -> (i32, i32) {
    %c0_i32 = arith.constant 0 : i32
    %c0_i32_0 = arith.constant 0 : i32
    %c0_i32_1 = arith.constant 0 : i32
    return %c0_i32, %c0_i32_0 : i32, i32
  }
  func.func @transform_34(%arg0: i32) -> (i32, i32) {
    %c0_i32 = arith.constant 0 : i32
    %c0_i32_0 = arith.constant 0 : i32
    %c0_i32_1 = arith.constant 0 : i32
    return %c0_i32, %c0_i32_0 : i32, i32
  }
}

</mosaic_0001>

<llo_original>
// kernel: tpu_custom_call.1
$region0: #{tpu_custom_call.1}
  #allocation0 [shape = 'u32[]', space=smem, size = 0x4, offset = 0x4, fixed_abs, tag = 'smem constant byte address 0x4 - core index']
  #allocation1 [shape = 'u32[144,128]{1,0:T(1,128)}', space=vmem, size = 0x12000, scoped, tag = 'internal scratch']
  #allocation2 [shape = 'f32[8,32]{1,0:T(8,128)}', space=vmem, size = 0x1000, scoped, tag = 'scratch operand']
  %s0 = inlined_call_operand.smem [shape: u32[35], index: -1, kind: input, shape index: {}]
  %s1 = sld [smem:[%s0]]
  %s2 = scalar_lea.smem %s0, 1
  %s3 = sld [smem:[%s2]]
  %s4 = scalar_lea.smem %s0, 2
  %s5 = sld [smem:[%s4]]
  %s6 = scalar_lea.smem %s0, 3
  %s7 = sld [smem:[%s6]]
  %s8 = scalar_lea.smem %s0, 4
  %s9 = sld [smem:[%s8]]
  %s10 = scalar_lea.smem %s0, 5
  %s11 = sld [smem:[%s10]]
  %s12 = scalar_lea.smem %s0, 6
  %s13 = sld [smem:[%s12]]
  %s14 = scalar_lea.smem %s0, 7
  %s15 = sld [smem:[%s14]]
  %s16 = scalar_lea.smem %s0, 8
  %s17 = sld [smem:[%s16]]
  %s18 = scalar_lea.smem %s0, 9
  %s19 = sld [smem:[%s18]]
  %s20 = scalar_lea.smem %s0, 10
  %s21 = sld [smem:[%s20]]
  %s22 = scalar_lea.smem %s0, 11
  %s23 = sld [smem:[%s22]]
  %s24 = scalar_lea.smem %s0, 12
  %s25 = sld [smem:[%s24]]
  %s26 = scalar_lea.smem %s0, 13
  %s27 = sld [smem:[%s26]]
  %s28 = scalar_lea.smem %s0, 14
  %s29 = sld [smem:[%s28]]
  %s30 = scalar_lea.smem %s0, 15
  %s31 = sld [smem:[%s30]]
  %s32 = scalar_lea.smem %s0, 16
  %s33 = sld [smem:[%s32]]
  %s34 = scalar_lea.smem %s0, 17
  %s35 = sld [smem:[%s34]]
  %s36 = scalar_lea.smem %s0, 18
  %s37 = sld [smem:[%s36]]
  %s38 = scalar_lea.smem %s0, 19
  %s39 = sld [smem:[%s38]]
  %s40 = scalar_lea.smem %s0, 20
  %s41 = sld [smem:[%s40]]
  %s42 = scalar_lea.smem %s0, 21
  %s43 = sld [smem:[%s42]]
  %s44 = scalar_lea.smem %s0, 22
  %s45 = sld [smem:[%s44]]
  %s46 = scalar_lea.smem %s0, 23
  %s47 = sld [smem:[%s46]]
  %s48 = scalar_lea.smem %s0, 24
  %s49 = sld [smem:[%s48]]
  %s50 = scalar_lea.smem %s0, 25
  %s51 = sld [smem:[%s50]]
  %s52 = scalar_lea.smem %s0, 26
  %s53 = sld [smem:[%s52]]
  %s54 = scalar_lea.smem %s0, 27
  %s55 = sld [smem:[%s54]]
  %s56 = scalar_lea.smem %s0, 28
  %s57 = sld [smem:[%s56]]
  %s58 = scalar_lea.smem %s0, 29
  %s59 = sld [smem:[%s58]]
  %s60 = scalar_lea.smem %s0, 30
  %s61 = sld [smem:[%s60]]
  %s62 = scalar_lea.smem %s0, 31
  %s63 = sld [smem:[%s62]]
  %s64 = scalar_lea.smem %s0, 32
  %s65 = sld [smem:[%s64]]
  %s66 = scalar_lea.smem %s0, 33
  %s67 = sld [smem:[%s66]]
  %s68 = scalar_lea.smem %s0, 34
  %s69 = sld [smem:[%s68]]
  %70 = xla_tuple %s65, %s67, %s69
  %s71 = sld [smem:[#allocation0]]
  $region222: #{tpu_custom_call.1} parent=0
    _
  %s73 = ssub.s32 1, %s71
  %s74 = scalar_select 0, %s73, %s71
  $region1: #{tpu_custom_call.1} parent=0
    #allocation3 [shape = 'u8[8192]{0}', space=vmem, size = 0x2000, scoped, tag = 'input window, operand 0, single buffered']
    #allocation4 [shape = 's32[1]{0}', space=sflag, size = 0x4, scoped, tag = 'scoped memory for tpu_custom_call.1']
    #allocation5 [shape = 's32[1]{0}', space=sflag, size = 0x4, scoped, tag = 'scoped memory for tpu_custom_call.1']
    #allocation6 [shape = 'u8[8192]{0}', space=vmem, size = 0x2000, scoped, tag = 'input window, operand 1, single buffered']
    #allocation7 [shape = 's32[1]{0}', space=sflag, size = 0x4, scoped, tag = 'scoped memory for tpu_custom_call.1']
    #allocation8 [shape = 'u8[2048]{0}', space=vmem, size = 0x800, scoped, tag = 'input window, operand 5, single buffered']
    #allocation9 [shape = 'u8[512]{0}', space=vmem, size = 0x400, scoped, tag = 'input window, operand 6, single buffered']
    #allocation10 [shape = 's32[1]{0}', space=sflag, size = 0x4, scoped, tag = 'scoped memory for tpu_custom_call.1']
    #allocation11 [shape = 'u8[512]{0}', space=vmem, size = 0x400, scoped, tag = 'input window, operand 7, single buffered']
    #allocation12 [shape = 'u8[1024]{0}', space=vmem, size = 0x400, scoped, tag = 'input window, operand 11, single buffered']
    #allocation13 [shape = 's32[1]{0}', space=sflag, size = 0x4, scoped, tag = 'scoped memory for tpu_custom_call.1']
    #allocation14 [shape = 'u8[1024]{0}', space=vmem, size = 0x400, scoped, tag = 'input window, operand 13, single buffered']
    #allocation15 [shape = 'u8[1024]{0}', space=vmem, size = 0x400, scoped, tag = 'input window, operand 15, single buffered']
    #allocation16 [shape = 's32[1]{0}', space=sflag, size = 0x4, scoped, tag = 'scoped memory for tpu_custom_call.1']
    #allocation17 [shape = 'u8[1024]{0}', space=vmem, size = 0x400, scoped, tag = 'input window, operand 16, single buffered']
    #allocation18 [shape = 'u8[1024]{0}', space=vmem, size = 0x400, scoped, tag = 'input window, operand 17, single buffered']
    #allocation19 [shape = 's32[1]{0}', space=sflag, size = 0x4, scoped, tag = 'scoped memory for tpu_custom_call.1']
    #allocation20 [shape = 'u8[1024]{0}', space=vmem, size = 0x400, scoped, tag = 'input window, operand 19, single buffered']
    #allocation21 [shape = 'u8[1024]{0}', space=vmem, size = 0x400, scoped, tag = 'input window, operand 21, single buffered']
    #allocation22 [shape = 's32[1]{0}', space=sflag, size = 0x4, scoped, tag = 'scoped memory for tpu_custom_call.1']
    #allocation23 [shape = 'u8[1024]{0}', space=vmem, size = 0x400, scoped, tag = 'input window, operand 22, single buffered']
    #allocation24 [shape = 'u8[1024]{0}', space=vmem, size = 0x400, scoped, tag = 'input window, operand 23, single buffered']
    #allocation25 [shape = 's32[1]{0}', space=sflag, size = 0x4, scoped, tag = 'scoped memory for tpu_custom_call.1']
    #allocation26 [shape = 'u8[512]{0}', space=vmem, size = 0x400, scoped, tag = 'input window, operand 26, single buffered']
    #allocation27 [shape = 'u8[512]{0}', space=vmem, size = 0x400, scoped, tag = 'input window, operand 27, single buffered']
    #allocation28 [shape = 's32[1]{0}', space=sflag, size = 0x4, scoped, tag = 'scoped memory for tpu_custom_call.1']
    #allocation29 [shape = 'u8[16384]{0}', space=vmem, size = 0x4000, scoped, tag = 'input window, operand 28, single buffered']
    #allocation30 [shape = 'u8[8192]{0}', space=vmem, size = 0x2000, scoped, tag = 'output window, operand 0, single buffered']
    #allocation31 [shape = 'u8[2048]{0}', space=vmem, size = 0x800, scoped, tag = 'output window, operand 1, single buffered']
    #allocation32 [shape = 's32[1]{0}', space=sflag, size = 0x4, scoped, tag = 'scoped memory for tpu_custom_call.1']
    #allocation33 [shape = 'u8[512]{0}', space=vmem, size = 0x400, scoped, tag = 'output window, operand 2, single buffered']
    %75 = vsyncpa [#allocation4], 0
    %76 = vsyncpa [#allocation7], 0
    %77 = vsyncpa [#allocation10], 0
    %78 = vsyncpa [#allocation13], 0
    %79 = vsyncpa [#allocation16], 0
    %80 = vsyncpa [#allocation19], 0
    %81 = vsyncpa [#allocation22], 0
    %82 = vsyncpa [#allocation25], 0
    %83 = vsyncpa [#allocation28], 0
    %84 = vsyncpa [#allocation5], 0
    %85 = vsyncpa [#allocation32], 0
    // Predicated region
    $region2: #{tpu_custom_call.1} parent=1 // pred_check
      _
    $region3: #{tpu_custom_call.1} parent=1 // pred_check_branch
      %87 = sbr.rel (0) target = $region5
    $region4: #{tpu_custom_call.1} parent=1 // pred_region
      %s89 = ssub.s32 256, 256
      %90 = vsyncadd [#allocation4], %s89
      %s91 = sshll.u32 [#allocation3], 4
      %s92 = int_to_ptr.vmem [resolvable:$true] %s91
      %97 = dma.hbm_to_vmem [thread:$0]  %s1, 256, %s92, [#allocation4], 128, 128, 8
    $region5: #{tpu_custom_call.1} parent=1 // pred_fallthru
      _
    // Predicated region
    $region6: #{tpu_custom_call.1} parent=1 // pred_check
      _
    $region7: #{tpu_custom_call.1} parent=1 // pred_check_branch
      %99 = sbr.rel (0) target = $region9
    $region8: #{tpu_custom_call.1} parent=1 // pred_region
      %s101 = ssub.s32 256, 256
      %102 = vsyncadd [#allocation7], %s101
      %s103 = sshll.u32 [#allocation6], 4
      %s104 = int_to_ptr.vmem [resolvable:$true] %s103
      %109 = dma.hbm_to_vmem [thread:$0]  %s3, 256, %s104, [#allocation7], 128, 128, 8
    $region9: #{tpu_custom_call.1} parent=1 // pred_fallthru
      _
    // Predicated region
    $region10: #{tpu_custom_call.1} parent=1 // pred_check
      _
    $region11: #{tpu_custom_call.1} parent=1 // pred_check_branch
      %111 = sbr.rel (0) target = $region13
    $region12: #{tpu_custom_call.1} parent=1 // pred_region
      _
    $region13: #{tpu_custom_call.1} parent=1 // pred_fallthru
      _
    // Predicated region
    $region14: #{tpu_custom_call.1} parent=1 // pred_check
      _
    $region15: #{tpu_custom_call.1} parent=1 // pred_check_branch
      %113 = sbr.rel (0) target = $region17
    $region16: #{tpu_custom_call.1} parent=1 // pred_region
      _
    $region17: #{tpu_custom_call.1} parent=1 // pred_fallthru
      _
    // Predicated region
    $region18: #{tpu_custom_call.1} parent=1 // pred_check
      _
    $region19: #{tpu_custom_call.1} parent=1 // pred_check_branch
      %115 = sbr.rel (0) target = $region21
    $region20: #{tpu_custom_call.1} parent=1 // pred_region
      _
    $region21: #{tpu_custom_call.1} parent=1 // pred_fallthru
      _
    // Predicated region
    $region22: #{tpu_custom_call.1} parent=1 // pred_check
      _
    $region23: #{tpu_custom_call.1} parent=1 // pred_check_branch
      %117 = sbr.rel (0) target = $region25
    $region24: #{tpu_custom_call.1} parent=1 // pred_region
      %s119 = ssub.s32 64, 64
      %120 = vsyncadd [#allocation7], %s119
      %s122 = sshll.u32 [#allocation8], 4
      %s123 = int_to_ptr.vmem [resolvable:$true] %s122
      %125 = dma.hbm_to_vmem [thread:$0]  %s11, 64, %s123, [#allocation7]
    $region25: #{tpu_custom_call.1} parent=1 // pred_fallthru
      _
    // Predicated region
    $region26: #{tpu_custom_call.1} parent=1 // pred_check
      _
    $region27: #{tpu_custom_call.1} parent=1 // pred_check_branch
      %127 = sbr.rel (0) target = $region29
    $region28: #{tpu_custom_call.1} parent=1 // pred_region
      %s129 = ssub.s32 16, 16
      %130 = vsyncadd [#allocation10], %s129
      %s132 = sshll.u32 [#allocation9], 4
      %s133 = int_to_ptr.vmem [resolvable:$true] %s132
      %135 = dma.hbm_to_vmem [thread:$0]  %s13, 16, %s133, [#allocation10]
    $region29: #{tpu_custom_call.1} parent=1 // pred_fallthru
      _
    // Predicated region
    $region30: #{tpu_custom_call.1} parent=1 // pred_check
      _
    $region31: #{tpu_custom_call.1} parent=1 // pred_check_branch
      %137 = sbr.rel (0) target = $region33
    $region32: #{tpu_custom_call.1} parent=1 // pred_region
      %s139 = ssub.s32 16, 16
      %140 = vsyncadd [#allocation10], %s139
      %s142 = sshll.u32 [#allocation11], 4
      %s143 = int_to_ptr.vmem [resolvable:$true] %s142
      %145 = dma.hbm_to_vmem [thread:$0]  %s15, 16, %s143, [#allocation10]
    $region33: #{tpu_custom_call.1} parent=1 // pred_fallthru
      _
    // Predicated region
    $region34: #{tpu_custom_call.1} parent=1 // pred_check
      _
    $region35: #{tpu_custom_call.1} parent=1 // pred_check_branch
      %147 = sbr.rel (0) target = $region37
    $region36: #{tpu_custom_call.1} parent=1 // pred_region
      _
    $region37: #{tpu_custom_call.1} parent=1 // pred_fallthru
      _
    // Predicated region
    $region38: #{tpu_custom_call.1} parent=1 // pred_check
      _
    $region39: #{tpu_custom_call.1} parent=1 // pred_check_branch
      %149 = sbr.rel (0) target = $region41
    $region40: #{tpu_custom_call.1} parent=1 // pred_region
      _
    $region41: #{tpu_custom_call.1} parent=1 // pred_fallthru
      _
    // Predicated region
    $region42: #{tpu_custom_call.1} parent=1 // pred_check
      _
    $region43: #{tpu_custom_call.1} parent=1 // pred_check_branch
      %151 = sbr.rel (0) target = $region45
    $region44: #{tpu_custom_call.1} parent=1 // pred_region
      _
    $region45: #{tpu_custom_call.1} parent=1 // pred_fallthru
      _
    // Predicated region
    $region46: #{tpu_custom_call.1} parent=1 // pred_check
      _
    $region47: #{tpu_custom_call.1} parent=1 // pred_check_branch
      %153 = sbr.rel (0) target = $region49
    $region48: #{tpu_custom_call.1} parent=1 // pred_region
      %s155 = ssub.s32 32, 32
      %156 = vsyncadd [#allocation13], %s155
      %s157 = sshll.u32 [#allocation12], 4
      %s158 = int_to_ptr.vmem [resolvable:$true] %s157
      %163 = dma.hbm_to_vmem [thread:$0]  %s23, 32, %s158, [#allocation13], 16, 16, 1
    $region49: #{tpu_custom_call.1} parent=1 // pred_fallthru
      _
    // Predicated region
    $region50: #{tpu_custom_call.1} parent=1 // pred_check
      _
    $region51: #{tpu_custom_call.1} parent=1 // pred_check_branch
      %165 = sbr.rel (0) target = $region53
    $region52: #{tpu_custom_call.1} parent=1 // pred_region
      _
    $region53: #{tpu_custom_call.1} parent=1 // pred_fallthru
      _
    // Predicated region
    $region54: #{tpu_custom_call.1} parent=1 // pred_check
      _
    $region55: #{tpu_custom_call.1} parent=1 // pred_check_branch
      %167 = sbr.rel (0) target = $region57
    $region56: #{tpu_custom_call.1} parent=1 // pred_region
      %s169 = ssub.s32 32, 32
      %170 = vsyncadd [#allocation13], %s169
      %s171 = sshll.u32 [#allocation14], 4
      %s172 = int_to_ptr.vmem [resolvable:$true] %s171
      %177 = dma.hbm_to_vmem [thread:$0]  %s27, 32, %s172, [#allocation13], 16, 16, 1
    $region57: #{tpu_custom_call.1} parent=1 // pred_fallthru
      _
    // Predicated region
    $region58: #{tpu_custom_call.1} parent=1 // pred_check
      _
    $region59: #{tpu_custom_call.1} parent=1 // pred_check_branch
      %179 = sbr.rel (0) target = $region61
    $region60: #{tpu_custom_call.1} parent=1 // pred_region
      _
    $region61: #{tpu_custom_call.1} parent=1 // pred_fallthru
      _
    // Predicated region
    $region62: #{tpu_custom_call.1} parent=1 // pred_check
      _
    $region63: #{tpu_custom_call.1} parent=1 // pred_check_branch
      %181 = sbr.rel (0) target = $region65
    $region64: #{tpu_custom_call.1} parent=1 // pred_region
      %s183 = ssub.s32 32, 32
      %184 = vsyncadd [#allocation16], %s183
      %s185 = sshll.u32 [#allocation15], 4
      %s186 = int_to_ptr.vmem [resolvable:$true] %s185
      %191 = dma.hbm_to_vmem [thread:$0]  %s31, 32, %s186, [#allocation16], 16, 16, 1
    $region65: #{tpu_custom_call.1} parent=1 // pred_fallthru
      _
    // Predicated region
    $region66: #{tpu_custom_call.1} parent=1 // pred_check
      _
    $region67: #{tpu_custom_call.1} parent=1 // pred_check_branch
      %193 = sbr.rel (0) target = $region69
    $region68: #{tpu_custom_call.1} parent=1 // pred_region
      %s195 = ssub.s32 32, 32
      %196 = vsyncadd [#allocation16], %s195
      %s197 = sshll.u32 [#allocation17], 4
      %s198 = int_to_ptr.vmem [resolvable:$true] %s197
      %203 = dma.hbm_to_vmem [thread:$0]  %s33, 32, %s198, [#allocation16], 16, 16, 1
    $region69: #{tpu_custom_call.1} parent=1 // pred_fallthru
      _
    // Predicated region
    $region70: #{tpu_custom_call.1} parent=1 // pred_check
      _
    $region71: #{tpu_custom_call.1} parent=1 // pred_check_branch
      %205 = sbr.rel (0) target = $region73
    $region72: #{tpu_custom_call.1} parent=1 // pred_region
      %s207 = ssub.s32 32, 32
      %208 = vsyncadd [#allocation19], %s207
      %s209 = sshll.u32 [#allocation18], 4
      %s210 = int_to_ptr.vmem [resolvable:$true] %s209
      %215 = dma.hbm_to_vmem [thread:$0]  %s35, 32, %s210, [#allocation19], 16, 16, 1
    $region73: #{tpu_custom_call.1} parent=1 // pred_fallthru
      _
    // Predicated region
    $region74: #{tpu_custom_call.1} parent=1 // pred_check
      _
    $region75: #{tpu_custom_call.1} parent=1 // pred_check_branch
      %217 = sbr.rel (0) target = $region77
    $region76: #{tpu_custom_call.1} parent=1 // pred_region
      _
    $region77: #{tpu_custom_call.1} parent=1 // pred_fallthru
      _
    // Predicated region
    $region78: #{tpu_custom_call.1} parent=1 // pred_check
      _
    $region79: #{tpu_custom_call.1} parent=1 // pred_check_branch
      %219 = sbr.rel (0) target = $region81
    $region80: #{tpu_custom_call.1} parent=1 // pred_region
      %s221 = ssub.s32 32, 32
      %222 = vsyncadd [#allocation19], %s221
      %s223 = sshll.u32 [#allocation20], 4
      %s224 = int_to_ptr.vmem [resolvable:$true] %s223
      %229 = dma.hbm_to_vmem [thread:$0]  %s39, 32, %s224, [#allocation19], 16, 16, 1
    $region81: #{tpu_custom_call.1} parent=1 // pred_fallthru
      _
    // Predicated region
    $region82: #{tpu_custom_call.1} parent=1 // pred_check
      _
    $region83: #{tpu_custom_call.1} parent=1 // pred_check_branch
      %231 = sbr.rel (0) target = $region85
    $region84: #{tpu_custom_call.1} parent=1 // pred_region
      _
    $region85: #{tpu_custom_call.1} parent=1 // pred_fallthru
      _
    // Predicated region
    $region86: #{tpu_custom_call.1} parent=1 // pred_check
      _
    $region87: #{tpu_custom_call.1} parent=1 // pred_check_branch
      %233 = sbr.rel (0) target = $region89
    $region88: #{tpu_custom_call.1} parent=1 // pred_region
      %s235 = ssub.s32 32, 32
      %236 = vsyncadd [#allocation22], %s235
      %s237 = sshll.u32 [#allocation21], 4
      %s238 = int_to_ptr.vmem [resolvable:$true] %s237
      %243 = dma.hbm_to_vmem [thread:$0]  %s43, 32, %s238, [#allocation22], 16, 16, 1
    $region89: #{tpu_custom_call.1} parent=1 // pred_fallthru
      _
    // Predicated region
    $region90: #{tpu_custom_call.1} parent=1 // pred_check
      _
    $region91: #{tpu_custom_call.1} parent=1 // pred_check_branch
      %245 = sbr.rel (0) target = $region93
    $region92: #{tpu_custom_call.1} parent=1 // pred_region
      %s247 = ssub.s32 32, 32
      %248 = vsyncadd [#allocation22], %s247
      %s249 = sshll.u32 [#allocation23], 4
      %s250 = int_to_ptr.vmem [resolvable:$true] %s249
      %255 = dma.hbm_to_vmem [thread:$0]  %s45, 32, %s250, [#allocation22], 16, 16, 1
    $region93: #{tpu_custom_call.1} parent=1 // pred_fallthru
      _
    // Predicated region
    $region94: #{tpu_custom_call.1} parent=1 // pred_check
      _
    $region95: #{tpu_custom_call.1} parent=1 // pred_check_branch
      %257 = sbr.rel (0) target = $region97
    $region96: #{tpu_custom_call.1} parent=1 // pred_region
      %s259 = ssub.s32 32, 32
      %260 = vsyncadd [#allocation25], %s259
      %s261 = sshll.u32 [#allocation24], 4
      %s262 = int_to_ptr.vmem [resolvable:$true] %s261
      %267 = dma.hbm_to_vmem [thread:$0]  %s47, 32, %s262, [#allocation25], 16, 16, 1
    $region97: #{tpu_custom_call.1} parent=1 // pred_fallthru
      _
    // Predicated region
    $region98: #{tpu_custom_call.1} parent=1 // pred_check
      _
    $region99: #{tpu_custom_call.1} parent=1 // pred_check_branch
      %269 = sbr.rel (0) target = $region101
    $region100: #{tpu_custom_call.1} parent=1 // pred_region
      _
    $region101: #{tpu_custom_call.1} parent=1 // pred_fallthru
      _
    // Predicated region
    $region102: #{tpu_custom_call.1} parent=1 // pred_check
      _
    $region103: #{tpu_custom_call.1} parent=1 // pred_check_branch
      %271 = sbr.rel (0) target = $region105
    $region104: #{tpu_custom_call.1} parent=1 // pred_region
      _
    $region105: #{tpu_custom_call.1} parent=1 // pred_fallthru
      _
    // Predicated region
    $region106: #{tpu_custom_call.1} parent=1 // pred_check
      _
    $region107: #{tpu_custom_call.1} parent=1 // pred_check_branch
      %273 = sbr.rel (0) target = $region109
    $region108: #{tpu_custom_call.1} parent=1 // pred_region
      %s275 = ssub.s32 16, 16
      %276 = vsyncadd [#allocation25], %s275
      %s278 = sshll.u32 [#allocation26], 4
      %s279 = int_to_ptr.vmem [resolvable:$true] %s278
      %281 = dma.hbm_to_vmem [thread:$0]  %s53, 16, %s279, [#allocation25]
    $region109: #{tpu_custom_call.1} parent=1 // pred_fallthru
      _
    // Predicated region
    $region110: #{tpu_custom_call.1} parent=1 // pred_check
      _
    $region111: #{tpu_custom_call.1} parent=1 // pred_check_branch
      %283 = sbr.rel (0) target = $region113
    $region112: #{tpu_custom_call.1} parent=1 // pred_region
      %s285 = ssub.s32 16, 16
      %286 = vsyncadd [#allocation28], %s285
      %s288 = sshll.u32 [#allocation27], 4
      %s289 = int_to_ptr.vmem [resolvable:$true] %s288
      %291 = dma.hbm_to_vmem [thread:$0]  %s55, 16, %s289, [#allocation28]
    $region113: #{tpu_custom_call.1} parent=1 // pred_fallthru
      _
    // Predicated region
    $region114: #{tpu_custom_call.1} parent=1 // pred_check
      _
    $region115: #{tpu_custom_call.1} parent=1 // pred_check_branch
      %293 = sbr.rel (0) target = $region117
    $region116: #{tpu_custom_call.1} parent=1 // pred_region
      %s295 = ssub.s32 512, 512
      %296 = vsyncadd [#allocation28], %s295
      %s297 = sshll.u32 [#allocation29], 4
      %s298 = int_to_ptr.vmem [resolvable:$true] %s297
      %303 = dma.hbm_to_vmem [thread:$0]  %s57, 512, %s298, [#allocation28], 128, 128, 8
    $region117: #{tpu_custom_call.1} parent=1 // pred_fallthru
      _
    // Predicated region
    $region118: #{tpu_custom_call.1} parent=1 // pred_check
      _
    $region119: #{tpu_custom_call.1} parent=1 // pred_check_branch
      %305 = sbr.rel (0) target = $region121
    $region120: #{tpu_custom_call.1} parent=1 // pred_region
      _
    $region121: #{tpu_custom_call.1} parent=1 // pred_fallthru
      _
    // Predicated region
    $region122: #{tpu_custom_call.1} parent=1 // pred_check
      _
    $region123: #{tpu_custom_call.1} parent=1 // pred_check_branch
      %307 = sbr.rel (0) target = $region125
    $region124: #{tpu_custom_call.1} parent=1 // pred_region
      _
    $region125: #{tpu_custom_call.1} parent=1 // pred_fallthru
      _
    // Predicated region
    $region126: #{tpu_custom_call.1} parent=1 // pred_check
      _
    $region127: #{tpu_custom_call.1} parent=1 // pred_check_branch
      %309 = sbr.rel (0) target = $region129
    $region128: #{tpu_custom_call.1} parent=1 // pred_region
      _
    $region129: #{tpu_custom_call.1} parent=1 // pred_fallthru
      _
    // Predicated region
    $region130: #{tpu_custom_call.1} parent=1 // pred_check
      _
    $region131: #{tpu_custom_call.1} parent=1 // pred_check_branch
      %311 = sbr.rel (0) target = $region133
    $region132: #{tpu_custom_call.1} parent=1 // pred_region
      %312 = dma.done [#allocation4], 256
    $region133: #{tpu_custom_call.1} parent=1 // pred_fallthru
      _
    // Predicated region
    $region134: #{tpu_custom_call.1} parent=1 // pred_check
      _
    $region135: #{tpu_custom_call.1} parent=1 // pred_check_branch
      %314 = sbr.rel (0) target = $region137
    $region136: #{tpu_custom_call.1} parent=1 // pred_region
      %315 = dma.done [#allocation7], 256
    $region137: #{tpu_custom_call.1} parent=1 // pred_fallthru
      _
    // Predicated region
    $region138: #{tpu_custom_call.1} parent=1 // pred_check
      _
    $region139: #{tpu_custom_call.1} parent=1 // pred_check_branch
      %317 = sbr.rel (0) target = $region141
    $region140: #{tpu_custom_call.1} parent=1 // pred_region
      %318 = dma.done [#allocation7], 64
    $region141: #{tpu_custom_call.1} parent=1 // pred_fallthru
      _
    // Predicated region
    $region142: #{tpu_custom_call.1} parent=1 // pred_check
      _
    $region143: #{tpu_custom_call.1} parent=1 // pred_check_branch
      %320 = sbr.rel (0) target = $region145
    $region144: #{tpu_custom_call.1} parent=1 // pred_region
      %321 = dma.done [#allocation10], 16
    $region145: #{tpu_custom_call.1} parent=1 // pred_fallthru
      _
    // Predicated region
    $region146: #{tpu_custom_call.1} parent=1 // pred_check
      _
    $region147: #{tpu_custom_call.1} parent=1 // pred_check_branch
      %323 = sbr.rel (0) target = $region149
    $region148: #{tpu_custom_call.1} parent=1 // pred_region
      %324 = dma.done [#allocation10], 16
    $region149: #{tpu_custom_call.1} parent=1 // pred_fallthru
      _
    // Predicated region
    $region150: #{tpu_custom_call.1} parent=1 // pred_check
      _
    $region151: #{tpu_custom_call.1} parent=1 // pred_check_branch
      %326 = sbr.rel (0) target = $region153
    $region152: #{tpu_custom_call.1} parent=1 // pred_region
      %327 = dma.done [#allocation13], 32
    $region153: #{tpu_custom_call.1} parent=1 // pred_fallthru
      _
    // Predicated region
    $region154: #{tpu_custom_call.1} parent=1 // pred_check
      _
    $region155: #{tpu_custom_call.1} parent=1 // pred_check_branch
      %329 = sbr.rel (0) target = $region157
    $region156: #{tpu_custom_call.1} parent=1 // pred_region
      %330 = dma.done [#allocation13], 32
    $region157: #{tpu_custom_call.1} parent=1 // pred_fallthru
      _
    // Predicated region
    $region158: #{tpu_custom_call.1} parent=1 // pred_check
      _
    $region159: #{tpu_custom_call.1} parent=1 // pred_check_branch
      %332 = sbr.rel (0) target = $region161
    $region160: #{tpu_custom_call.1} parent=1 // pred_region
      %333 = dma.done [#allocation16], 32
    $region161: #{tpu_custom_call.1} parent=1 // pred_fallthru
      _
    // Predicated region
    $region162: #{tpu_custom_call.1} parent=1 // pred_check
      _
    $region163: #{tpu_custom_call.1} parent=1 // pred_check_branch
      %335 = sbr.rel (0) target = $region165
    $region164: #{tpu_custom_call.1} parent=1 // pred_region
      %336 = dma.done [#allocation16], 32
    $region165: #{tpu_custom_call.1} parent=1 // pred_fallthru
      _
    // Predicated region
    $region166: #{tpu_custom_call.1} parent=1 // pred_check
      _
    $region167: #{tpu_custom_call.1} parent=1 // pred_check_branch
      %338 = sbr.rel (0) target = $region169
    $region168: #{tpu_custom_call.1} parent=1 // pred_region
      %339 = dma.done [#allocation19], 32
    $region169: #{tpu_custom_call.1} parent=1 // pred_fallthru
      _
    // Predicated region
    $region170: #{tpu_custom_call.1} parent=1 // pred_check
      _
    $region171: #{tpu_custom_call.1} parent=1 // pred_check_branch
      %341 = sbr.rel (0) target = $region173
    $region172: #{tpu_custom_call.1} parent=1 // pred_region
      %342 = dma.done [#allocation19], 32
    $region173: #{tpu_custom_call.1} parent=1 // pred_fallthru
      _
    // Predicated region
    $region174: #{tpu_custom_call.1} parent=1 // pred_check
      _
    $region175: #{tpu_custom_call.1} parent=1 // pred_check_branch
      %344 = sbr.rel (0) target = $region177
    $region176: #{tpu_custom_call.1} parent=1 // pred_region
      %345 = dma.done [#allocation22], 32
    $region177: #{tpu_custom_call.1} parent=1 // pred_fallthru
      _
    // Predicated region
    $region178: #{tpu_custom_call.1} parent=1 // pred_check
      _
    $region179: #{tpu_custom_call.1} parent=1 // pred_check_branch
      %347 = sbr.rel (0) target = $region181
    $region180: #{tpu_custom_call.1} parent=1 // pred_region
      %348 = dma.done [#allocation22], 32
    $region181: #{tpu_custom_call.1} parent=1 // pred_fallthru
      _
    // Predicated region
    $region182: #{tpu_custom_call.1} parent=1 // pred_check
      _
    $region183: #{tpu_custom_call.1} parent=1 // pred_check_branch
      %350 = sbr.rel (0) target = $region185
    $region184: #{tpu_custom_call.1} parent=1 // pred_region
      %351 = dma.done [#allocation25], 32
    $region185: #{tpu_custom_call.1} parent=1 // pred_fallthru
      _
    // Predicated region
    $region186: #{tpu_custom_call.1} parent=1 // pred_check
      _
    $region187: #{tpu_custom_call.1} parent=1 // pred_check_branch
      %353 = sbr.rel (0) target = $region189
    $region188: #{tpu_custom_call.1} parent=1 // pred_region
      %354 = dma.done [#allocation25], 16
    $region189: #{tpu_custom_call.1} parent=1 // pred_fallthru
      _
    // Predicated region
    $region190: #{tpu_custom_call.1} parent=1 // pred_check
      _
    $region191: #{tpu_custom_call.1} parent=1 // pred_check_branch
      %356 = sbr.rel (0) target = $region193
    $region192: #{tpu_custom_call.1} parent=1 // pred_region
      %357 = dma.done [#allocation28], 16
    $region193: #{tpu_custom_call.1} parent=1 // pred_fallthru
      _
    // Predicated region
    $region194: #{tpu_custom_call.1} parent=1 // pred_check
      _
    $region195: #{tpu_custom_call.1} parent=1 // pred_check_branch
      %359 = sbr.rel (0) target = $region197
    $region196: #{tpu_custom_call.1} parent=1 // pred_region
      %360 = dma.done [#allocation28], 512
    $region197: #{tpu_custom_call.1} parent=1 // pred_fallthru
      _
    %v361 = vld [vmem:[#allocation6] sm:$0xff]
    %v362 = vld [vmem:[#allocation6 + $0x8] sm:$0xff]
    %v363 = vld [vmem:[%s5] sm:$0xff]
    %v364 = vld [vmem:[%s5 + $0x8] sm:$0xff]
    %v365 = vld [vmem:[%s5 + $0x10] sm:$0xff]
    %v366 = vld [vmem:[%s5 + $0x18] sm:$0xff]
    %v367 = vld [vmem:[%s5 + $0x20] sm:$0xff]
    %v368 = vld [vmem:[%s5 + $0x28] sm:$0xff]
    %v369 = vld [vmem:[%s5 + $0x30] sm:$0xff]
    %v370 = vld [vmem:[%s5 + $0x38] sm:$0xff]
    %v371 = vld [vmem:[%s7] sm:$0xff]
    %v372 = vld [vmem:[%s7 + $0x8] sm:$0xff]
    %v373 = vld [vmem:[%s7 + $0x10] sm:$0xff]
    %v374 = vld [vmem:[%s7 + $0x18] sm:$0xff]
    %v375 = vld [vmem:[%s7 + $0x20] sm:$0xff]
    %v376 = vld [vmem:[%s7 + $0x28] sm:$0xff]
    %v377 = vld [vmem:[%s7 + $0x30] sm:$0xff]
    %v378 = vld [vmem:[%s7 + $0x38] sm:$0xff]
    %v379 = vld [vmem:[%s9] sm:$0xff]
    %v380 = vld [vmem:[%s9 + $0x8] sm:$0xff]
    %v381 = vld [vmem:[%s9 + $0x10] sm:$0xff]
    %v382 = vld [vmem:[%s9 + $0x18] sm:$0xff]
    %v383 = vld [vmem:[%s9 + $0x20] sm:$0xff]
    %v384 = vld [vmem:[%s9 + $0x28] sm:$0xff]
    %v385 = vld [vmem:[%s9 + $0x30] sm:$0xff]
    %v386 = vld [vmem:[%s9 + $0x38] sm:$0xff]
    %v387 = vld [vmem:[#allocation3] sm:$0xff]
    %v388 = vld [vmem:[#allocation3 + $0x8] sm:$0xff]
    %v389 = vld [vmem:[#allocation9] sm:$0x1]
    %v390 = vld [vmem:[#allocation11] sm:$0x1]
    %vm391 = vcmask 261120
    %v392 = vsel %vm391, %v387, 0.0
    %393 = vadd.xlane.f32.xlu0 %v392
    %v394 = vpop.xlane.xlu0 %393
    %v395 = vsel %vm391, %v388, 0.0
    %396 = vadd.xlane.f32.xlu0 %v395
    %v397 = vpop.xlane.xlu0 %396
    %v398 = vrcp.pop 32.0
    %v399 = vmul.f32 %v394, %v398
    %v400 = vmul.f32 %v397, %v398
    %v401 = vsub.f32 %v387, %v399
    %v402 = vsub.f32 %v388, %v400
    %v403 = vmul.f32 %v401, %v401
    %v404 = vmul.f32 %v402, %v402
    %v405 = vsel %vm391, %v403, 0.0
    %406 = vadd.xlane.f32.xlu0 %v405
    %v407 = vpop.xlane.xlu0 %406
    %v408 = vsel %vm391, %v404, 0.0
    %409 = vadd.xlane.f32.xlu0 %v408
    %v410 = vpop.xlane.xlu0 %409
    %v411 = vmul.f32 %v407, %v398
    %v412 = vmul.f32 %v410, %v398
    %v413 = vadd.f32 %v411, 1e-12
    %v414 = vadd.f32 %v412, 1e-12
    %v415 = vrsqrt.pop %v413
    %v416 = vrsqrt.pop %v414
    %v417 = vmul.f32 %v401, %v415
    %v418 = vmul.f32 %v402, %v416
    %v420 = vlaneseq
    %v421 = vshrl.u32 %v420, 7
    %v422 = vsub.s32 0, %v421
    %v423 = vrot.slane %v389, %v422
    %v425 = vmul.f32 %v417, %v423
    %v426 = vmul.f32 %v418, %v423
    %v428 = vlaneseq
    %v429 = vshrl.u32 %v428, 7
    %v430 = vsub.s32 0, %v429
    %v431 = vrot.slane %v390, %v430
    %v433 = vadd.f32 %v425, %v431
    %v434 = vadd.f32 %v426, %v431
    %v435 = vld [vmem:[%s17] sm:$0xff]
    %v436 = vld [vmem:[%s17 + $0x8] sm:$0xff]
    %v437 = vld [vmem:[%s17 + $0x10] sm:$0xff]
    %v438 = vld [vmem:[%s17 + $0x18] sm:$0xff]
    %v439 = vld [vmem:[%s19] sm:$0x1]
    %v441 = vlaneseq
    %v442 = vshrl.u32 %v441, 7
    %v443 = vsub.s32 0, %v442
    %v444 = vrot.slane %v439, %v443
    %v447 = vsel %vm391, %v433, 0
    %v450 = vsel %vm391, %v434, 0
    %452 = vmatprep.subr.mxu0 0.0
    %453 = vmatpush1.msra.mxu0 %v435
    %454 = vmatprep.subr.mxu0 0.0
    %455 = vmatpush1.msra.mxu0 %v436
    %456 = vmatprep.subr.mxu0 0.0
    %457 = vmatpush1.msra.mxu0 %v437
    %458 = vmatprep.subr.mxu0 0.0
    %459 = vmatpush1.msra.mxu0 %v438
    %460 = vmatprep.subr.mxu0 0.0
    %461 = vmatpush1.msra.mxu0 0.0
    %462 = vmatprep.subr.mxu0 0.0
    %463 = vmatpush1.msra.mxu0 0.0
    %464 = vmatprep.subr.mxu0 0.0
    %465 = vmatpush1.msra.mxu0 0.0
    %466 = vmatprep.subr.mxu0 0.0
    %467 = vmatpush1.msra.mxu0 0.0
    %468 = vmatprep.subr.mxu0 0.0
    %469 = vmatpush1.msra.mxu0 0.0
    %470 = vmatprep.subr.mxu0 0.0
    %471 = vmatpush1.msra.mxu0 0.0
    %472 = vmatprep.subr.mxu0 0.0
    %473 = vmatpush1.msra.mxu0 0.0
    %474 = vmatprep.subr.mxu0 0.0
    %475 = vmatpush1.msra.mxu0 0.0
    %476 = vmatprep.subr.mxu0 0.0
    %477 = vmatpush1.msra.mxu0 0.0
    %478 = vmatprep.subr.mxu0 0.0
    %479 = vmatpush1.msra.mxu0 0.0
    %480 = vmatprep.subr.mxu0 0.0
    %481 = vmatpush1.msra.mxu0 0.0
    %482 = vmatprep.subr.mxu0 0.0
    %483 = vmatpush1.msra.mxu0 0.0
    %484 = vmatprep.subr.mxu0 0.0
    %485 = vmatpush1.msra.mxu0 0.0
    %486 = vmatprep.subr.mxu0 0.0
    %487 = vmatpush1.msra.mxu0 0.0
    %488 = vmatprep.subr.mxu0 0.0
    %489 = vmatpush1.msra.mxu0 0.0
    %490 = vmatprep.subr.mxu0 0.0
    %491 = vmatpush1.msra.mxu0 0.0
    %492 = vmatprep.subr.mxu0 0.0
    %493 = vmatpush1.msra.mxu0 0.0
    %494 = vmatprep.subr.mxu0 0.0
    %495 = vmatpush1.msra.mxu0 0.0
    %496 = vmatprep.subr.mxu0 0.0
    %497 = vmatpush1.msra.mxu0 0.0
    %498 = vmatprep.subr.mxu0 0.0
    %499 = vmatpush1.msra.mxu0 0.0
    %500 = vmatprep.subr.mxu0 0.0
    %501 = vmatpush1.msra.mxu0 0.0
    %502 = vmatprep.subr.mxu0 0.0
    %503 = vmatpush1.msra.mxu0 0.0
    %504 = vmatprep.subr.mxu0 0.0
    %505 = vmatpush1.msra.mxu0 0.0
    %506 = vmatprep.subr.mxu0 0.0
    %507 = vmatpush1.msra.mxu0 0.0
    %508 = vmatprep.subr.mxu0 0.0
    %509 = vmatpush1.msra.mxu0 0.0
    %510 = vmatprep.subr.mxu0 0.0
    %511 = vmatpush1.msra.mxu0 0.0
    %512 = vmatprep.subr.mxu0 0.0
    %513 = vmatpush1.msra.mxu0 0.0
    %514 = vmatprep.subr.mxu0 0.0
    %515 = vmatpush1.msra.mxu0 0.0
    %516 = vmatprep.mubr.f32.mxu0 0.0
    %517 = vmatmul.mubr.f32.gmra.mrb[0].mxu0 %v447
    %v518 = vpop.f32.mrb[0].mxu0
    %v519 = vadd.f32 %v444, %v518
    %v520 = vpop.f32.mrb[0].mxu0
    %521 = vmatprep.mubr.f32.mxu0 0.0
    %522 = vmatmul.mubr.f32.gmra.mrb[0].mxu0 %v450
    %v523 = vpop.f32.mrb[0].mxu0
    %v524 = vadd.f32 %v444, %v523
    %v525 = vpop.f32.mrb[0].mxu0
    %526 = vdwg.mxu0
    %vm527 = vcmask 130048
    %v529 = vsel %vm527, %v379, 0
    %v532 = vsel %vm527, %v380, 0
    %v535 = vsel %vm527, %v381, 0
    %v538 = vsel %vm527, %v382, 0
    %v541 = vsel %vm527, %v383, 0
    %v544 = vsel %vm527, %v384, 0
    %v547 = vsel %vm527, %v385, 0
    %v550 = vsel %vm527, %v386, 0
    %552 = vmatprep.subr.mxu0 0.0
    %553 = vmatpush1.msra.mxu0 %v433
    %554 = vmatprep.subr.mxu0 0.0
    %555 = vmatpush1.msra.mxu0 %v434
    %556 = vmatprep.subr.mxu0 0.0
    %557 = vmatpush1.msra.mxu0 0.0
    %558 = vmatprep.subr.mxu0 0.0
    %559 = vmatpush1.msra.mxu0 0.0
    %560 = vmatprep.subr.mxu0 0.0
    %561 = vmatpush1.msra.mxu0 0.0
    %562 = vmatprep.subr.mxu0 0.0
    %563 = vmatpush1.msra.mxu0 0.0
    %564 = vmatprep.subr.mxu0 0.0
    %565 = vmatpush1.msra.mxu0 0.0
    %566 = vmatprep.subr.mxu0 0.0
    %567 = vmatpush1.msra.mxu0 0.0
    %568 = vmatprep.subr.mxu0 0.0
    %569 = vmatpush1.msra.mxu0 0.0
    %570 = vmatprep.subr.mxu0 0.0
    %571 = vmatpush1.msra.mxu0 0.0
    %572 = vmatprep.subr.mxu0 0.0
    %573 = vmatpush1.msra.mxu0 0.0
    %574 = vmatprep.subr.mxu0 0.0
    %575 = vmatpush1.msra.mxu0 0.0
    %576 = vmatprep.subr.mxu0 0.0
    %577 = vmatpush1.msra.mxu0 0.0
    %578 = vmatprep.subr.mxu0 0.0
    %579 = vmatpush1.msra.mxu0 0.0
    %580 = vmatprep.subr.mxu0 0.0
    %581 = vmatpush1.msra.mxu0 0.0
    %582 = vmatprep.subr.mxu0 0.0
    %583 = vmatpush1.msra.mxu0 0.0
    %584 = vmatprep.subr.mxu0 0.0
    %585 = vmatpush1.msra.mxu0 0.0
    %586 = vmatprep.subr.mxu0 0.0
    %587 = vmatpush1.msra.mxu0 0.0
    %588 = vmatprep.subr.mxu0 0.0
    %589 = vmatpush1.msra.mxu0 0.0
    %590 = vmatprep.subr.mxu0 0.0
    %591 = vmatpush1.msra.mxu0 0.0
    %592 = vmatprep.subr.mxu0 0.0
    %593 = vmatpush1.msra.mxu0 0.0
    %594 = vmatprep.subr.mxu0 0.0
    %595 = vmatpush1.msra.mxu0 0.0
    %596 = vmatprep.subr.mxu0 0.0
    %597 = vmatpush1.msra.mxu0 0.0
    %598 = vmatprep.subr.mxu0 0.0
    %599 = vmatpush1.msra.mxu0 0.0
    %600 = vmatprep.subr.mxu0 0.0
    %601 = vmatpush1.msra.mxu0 0.0
    %602 = vmatprep.subr.mxu0 0.0
    %603 = vmatpush1.msra.mxu0 0.0
    %604 = vmatprep.subr.mxu0 0.0
    %605 = vmatpush1.msra.mxu0 0.0
    %606 = vmatprep.subr.mxu0 0.0
    %607 = vmatpush1.msra.mxu0 0.0
    %608 = vmatprep.subr.mxu0 0.0
    %609 = vmatpush1.msra.mxu0 0.0
    %610 = vmatprep.subr.mxu0 0.0
    %611 = vmatpush1.msra.mxu0 0.0
    %612 = vmatprep.subr.mxu0 0.0
    %613 = vmatpush1.msra.mxu0 0.0
    %614 = vmatprep.subr.mxu0 0.0
    %615 = vmatpush1.msra.mxu0 0.0
    %616 = vmatprep.mubr.f32.mxu0 0.0
    %617 = vmatmul.mubr.f32.gmra.mrb[0].mxu0 %v529
    %v618 = vpop.f32.mrb[0].mxu0
    %v619 = vadd.f32 0.0, %v618
    %v620 = vpop.f32.mrb[0].mxu0
    %621 = vmatprep.mubr.f32.mxu0 0.0
    %622 = vmatmul.mubr.f32.gmra.mrb[0].mxu0 %v532
    %v623 = vpop.f32.mrb[0].mxu0
    %v624 = vadd.f32 0.0, %v623
    %v625 = vpop.f32.mrb[0].mxu0
    %626 = vmatprep.mubr.f32.mxu0 0.0
    %627 = vmatmul.mubr.f32.gmra.mrb[0].mxu0 %v535
    %v628 = vpop.f32.mrb[0].mxu0
    %v629 = vadd.f32 0.0, %v628
    %v630 = vpop.f32.mrb[0].mxu0
    %631 = vmatprep.mubr.f32.mxu0 0.0
    %632 = vmatmul.mubr.f32.gmra.mrb[0].mxu0 %v538
    %v633 = vpop.f32.mrb[0].mxu0
    %v634 = vadd.f32 0.0, %v633
    %v635 = vpop.f32.mrb[0].mxu0
    %636 = vmatprep.mubr.f32.mxu0 0.0
    %637 = vmatmul.mubr.f32.gmra.mrb[0].mxu0 %v541
    %v638 = vpop.f32.mrb[0].mxu0
    %v639 = vadd.f32 0.0, %v638
    %v640 = vpop.f32.mrb[0].mxu0
    %641 = vmatprep.mubr.f32.mxu0 0.0
    %642 = vmatmul.mubr.f32.gmra.mrb[0].mxu0 %v544
    %v643 = vpop.f32.mrb[0].mxu0
    %v644 = vadd.f32 0.0, %v643
    %v645 = vpop.f32.mrb[0].mxu0
    %646 = vmatprep.mubr.f32.mxu0 0.0
    %647 = vmatmul.mubr.f32.gmra.mrb[0].mxu0 %v547
    %v648 = vpop.f32.mrb[0].mxu0
    %v649 = vadd.f32 0.0, %v648
    %v650 = vpop.f32.mrb[0].mxu0
    %651 = vmatprep.mubr.f32.mxu0 0.0
    %652 = vmatmul.mubr.f32.gmra.mrb[0].mxu0 %v550
    %v653 = vpop.f32.mrb[0].mxu0
    %v654 = vadd.f32 0.0, %v653
    %v655 = vpop.f32.mrb[0].mxu0
    %656 = vdwg.mxu0
    %v657 = vld [vmem:[%s21] sm:$0xff]
    %v658 = vld [vmem:[%s21 + $0x8] sm:$0xff]
    %v659 = vld [vmem:[%s21 + $0x10] sm:$0xff]
    %v660 = vld [vmem:[%s21 + $0x18] sm:$0xff]
    %v661 = vld [vmem:[#allocation12] sm:$0x1]
    %v663 = vlaneseq
    %v664 = vshrl.u32 %v663, 7
    %v665 = vsub.s32 0, %v664
    %v666 = vrot.slane %v661, %v665
    %v669 = vsel %vm391, %v619, 0
    %v672 = vsel %vm391, %v624, 0
    %v675 = vsel %vm391, %v629, 0
    %v678 = vsel %vm391, %v634, 0
    %v681 = vsel %vm391, %v639, 0
    %v684 = vsel %vm391, %v644, 0
    %v687 = vsel %vm391, %v649, 0
    %v690 = vsel %vm391, %v654, 0
    %692 = vmatprep.subr.mxu0 0.0
    %693 = vmatpush1.msra.mxu0 %v657
    %694 = vmatprep.subr.mxu0 0.0
    %695 = vmatpush1.msra.mxu0 %v658
    %696 = vmatprep.subr.mxu0 0.0
    %697 = vmatpush1.msra.mxu0 %v659
    %698 = vmatprep.subr.mxu0 0.0
    %699 = vmatpush1.msra.mxu0 %v660
    %700 = vmatprep.subr.mxu0 0.0
    %701 = vmatpush1.msra.mxu0 0.0
    %702 = vmatprep.subr.mxu0 0.0
    %703 = vmatpush1.msra.mxu0 0.0
    %704 = vmatprep.subr.mxu0 0.0
    %705 = vmatpush1.msra.mxu0 0.0
    %706 = vmatprep.subr.mxu0 0.0
    %707 = vmatpush1.msra.mxu0 0.0
    %708 = vmatprep.subr.mxu0 0.0
    %709 = vmatpush1.msra.mxu0 0.0
    %710 = vmatprep.subr.mxu0 0.0
    %711 = vmatpush1.msra.mxu0 0.0
    %712 = vmatprep.subr.mxu0 0.0
    %713 = vmatpush1.msra.mxu0 0.0
    %714 = vmatprep.subr.mxu0 0.0
    %715 = vmatpush1.msra.mxu0 0.0
    %716 = vmatprep.subr.mxu0 0.0
    %717 = vmatpush1.msra.mxu0 0.0
    %718 = vmatprep.subr.mxu0 0.0
    %719 = vmatpush1.msra.mxu0 0.0
    %720 = vmatprep.subr.mxu0 0.0
    %721 = vmatpush1.msra.mxu0 0.0
    %722 = vmatprep.subr.mxu0 0.0
    %723 = vmatpush1.msra.mxu0 0.0
    %724 = vmatprep.subr.mxu0 0.0
    %725 = vmatpush1.msra.mxu0 0.0
    %726 = vmatprep.subr.mxu0 0.0
    %727 = vmatpush1.msra.mxu0 0.0
    %728 = vmatprep.subr.mxu0 0.0
    %729 = vmatpush1.msra.mxu0 0.0
    %730 = vmatprep.subr.mxu0 0.0
    %731 = vmatpush1.msra.mxu0 0.0
    %732 = vmatprep.subr.mxu0 0.0
    %733 = vmatpush1.msra.mxu0 0.0
    %734 = vmatprep.subr.mxu0 0.0
    %735 = vmatpush1.msra.mxu0 0.0
    %736 = vmatprep.subr.mxu0 0.0
    %737 = vmatpush1.msra.mxu0 0.0
    %738 = vmatprep.subr.mxu0 0.0
    %739 = vmatpush1.msra.mxu0 0.0
    %740 = vmatprep.subr.mxu0 0.0
    %741 = vmatpush1.msra.mxu0 0.0
    %742 = vmatprep.subr.mxu0 0.0
    %743 = vmatpush1.msra.mxu0 0.0
    %744 = vmatprep.subr.mxu0 0.0
    %745 = vmatpush1.msra.mxu0 0.0
    %746 = vmatprep.subr.mxu0 0.0
    %747 = vmatpush1.msra.mxu0 0.0
    %748 = vmatprep.subr.mxu0 0.0
    %749 = vmatpush1.msra.mxu0 0.0
    %750 = vmatprep.subr.mxu0 0.0
    %751 = vmatpush1.msra.mxu0 0.0
    %752 = vmatprep.subr.mxu0 0.0
    %753 = vmatpush1.msra.mxu0 0.0
    %754 = vmatprep.subr.mxu0 0.0
    %755 = vmatpush1.msra.mxu0 0.0
    %756 = vmatprep.mubr.f32.mxu0 0.0
    %757 = vmatmul.mubr.f32.gmra.mrb[0].mxu0 %v669
    %v758 = vpop.f32.mrb[0].mxu0
    %v759 = vadd.f32 %v666, %v758
    %v760 = vpop.f32.mrb[0].mxu0
    %761 = vmatprep.mubr.f32.mxu0 0.0
    %762 = vmatmul.mubr.f32.gmra.mrb[0].mxu0 %v672
    %v763 = vpop.f32.mrb[0].mxu0
    %v764 = vadd.f32 %v666, %v763
    %v765 = vpop.f32.mrb[0].mxu0
    %766 = vmatprep.mubr.f32.mxu0 0.0
    %767 = vmatmul.mubr.f32.gmra.mrb[0].mxu0 %v675
    %v768 = vpop.f32.mrb[0].mxu0
    %v769 = vadd.f32 %v666, %v768
    %v770 = vpop.f32.mrb[0].mxu0
    %771 = vmatprep.mubr.f32.mxu0 0.0
    %772 = vmatmul.mubr.f32.gmra.mrb[0].mxu0 %v678
    %v773 = vpop.f32.mrb[0].mxu0
    %v774 = vadd.f32 %v666, %v773
    %v775 = vpop.f32.mrb[0].mxu0
    %776 = vmatprep.mubr.f32.mxu0 0.0
    %777 = vmatmul.mubr.f32.gmra.mrb[0].mxu0 %v681
    %v778 = vpop.f32.mrb[0].mxu0
    %v779 = vadd.f32 %v666, %v778
    %v780 = vpop.f32.mrb[0].mxu0
    %781 = vmatprep.mubr.f32.mxu0 0.0
    %782 = vmatmul.mubr.f32.gmra.mrb[0].mxu0 %v684
    %v783 = vpop.f32.mrb[0].mxu0
    %v784 = vadd.f32 %v666, %v783
    %v785 = vpop.f32.mrb[0].mxu0
    %786 = vmatprep.mubr.f32.mxu0 0.0
    %787 = vmatmul.mubr.f32.gmra.mrb[0].mxu0 %v687
    %v788 = vpop.f32.mrb[0].mxu0
    %v789 = vadd.f32 %v666, %v788
    %v790 = vpop.f32.mrb[0].mxu0
    %791 = vmatprep.mubr.f32.mxu0 0.0
    %792 = vmatmul.mubr.f32.gmra.mrb[0].mxu0 %v690
    %v793 = vpop.f32.mrb[0].mxu0
    %v794 = vadd.f32 %v666, %v793
    %v795 = vpop.f32.mrb[0].mxu0
    %796 = vdwg.mxu0
    %v797 = vmul.f32 %v759, %v363
    %v798 = vmul.f32 %v764, %v364
    %v799 = vmul.f32 %v769, %v365
    %v800 = vmul.f32 %v774, %v366
    %v801 = vmul.f32 %v779, %v367
    %v802 = vmul.f32 %v784, %v368
    %v803 = vmul.f32 %v789, %v369
    %v804 = vmul.f32 %v794, %v370
    %v805 = vld [vmem:[%s25] sm:$0xff]
    %v806 = vld [vmem:[%s25 + $0x8] sm:$0xff]
    %v807 = vld [vmem:[%s25 + $0x10] sm:$0xff]
    %v808 = vld [vmem:[%s25 + $0x18] sm:$0xff]
    %v809 = vld [vmem:[#allocation14] sm:$0x1]
    %v811 = vlaneseq
    %v812 = vshrl.u32 %v811, 7
    %v813 = vsub.s32 0, %v812
    %v814 = vrot.slane %v809, %v813
    %816 = vmatprep.subr.mxu0 0.0
    %817 = vmatpush1.msra.mxu0 %v805
    %818 = vmatprep.subr.mxu0 0.0
    %819 = vmatpush1.msra.mxu0 %v806
    %820 = vmatprep.subr.mxu0 0.0
    %821 = vmatpush1.msra.mxu0 %v807
    %822 = vmatprep.subr.mxu0 0.0
    %823 = vmatpush1.msra.mxu0 %v808
    %824 = vmatprep.subr.mxu0 0.0
    %825 = vmatpush1.msra.mxu0 0.0
    %826 = vmatprep.subr.mxu0 0.0
    %827 = vmatpush1.msra.mxu0 0.0
    %828 = vmatprep.subr.mxu0 0.0
    %829 = vmatpush1.msra.mxu0 0.0
    %830 = vmatprep.subr.mxu0 0.0
    %831 = vmatpush1.msra.mxu0 0.0
    %832 = vmatprep.subr.mxu0 0.0
    %833 = vmatpush1.msra.mxu0 0.0
    %834 = vmatprep.subr.mxu0 0.0
    %835 = vmatpush1.msra.mxu0 0.0
    %836 = vmatprep.subr.mxu0 0.0
    %837 = vmatpush1.msra.mxu0 0.0
    %838 = vmatprep.subr.mxu0 0.0
    %839 = vmatpush1.msra.mxu0 0.0
    %840 = vmatprep.subr.mxu0 0.0
    %841 = vmatpush1.msra.mxu0 0.0
    %842 = vmatprep.subr.mxu0 0.0
    %843 = vmatpush1.msra.mxu0 0.0
    %844 = vmatprep.subr.mxu0 0.0
    %845 = vmatpush1.msra.mxu0 0.0
    %846 = vmatprep.subr.mxu0 0.0
    %847 = vmatpush1.msra.mxu0 0.0
    %848 = vmatprep.subr.mxu0 0.0
    %849 = vmatpush1.msra.mxu0 0.0
    %850 = vmatprep.subr.mxu0 0.0
    %851 = vmatpush1.msra.mxu0 0.0
    %852 = vmatprep.subr.mxu0 0.0
    %853 = vmatpush1.msra.mxu0 0.0
    %854 = vmatprep.subr.mxu0 0.0
    %855 = vmatpush1.msra.mxu0 0.0
    %856 = vmatprep.subr.mxu0 0.0
    %857 = vmatpush1.msra.mxu0 0.0
    %858 = vmatprep.subr.mxu0 0.0
    %859 = vmatpush1.msra.mxu0 0.0
    %860 = vmatprep.subr.mxu0 0.0
    %861 = vmatpush1.msra.mxu0 0.0
    %862 = vmatprep.subr.mxu0 0.0
    %863 = vmatpush1.msra.mxu0 0.0
    %864 = vmatprep.subr.mxu0 0.0
    %865 = vmatpush1.msra.mxu0 0.0
    %866 = vmatprep.subr.mxu0 0.0
    %867 = vmatpush1.msra.mxu0 0.0
    %868 = vmatprep.subr.mxu0 0.0
    %869 = vmatpush1.msra.mxu0 0.0
    %870 = vmatprep.subr.mxu0 0.0
    %871 = vmatpush1.msra.mxu0 0.0
    %872 = vmatprep.subr.mxu0 0.0
    %873 = vmatpush1.msra.mxu0 0.0
    %874 = vmatprep.subr.mxu0 0.0
    %875 = vmatpush1.msra.mxu0 0.0
    %876 = vmatprep.subr.mxu0 0.0
    %877 = vmatpush1.msra.mxu0 0.0
    %878 = vmatprep.subr.mxu0 0.0
    %879 = vmatpush1.msra.mxu0 0.0
    %880 = vmatprep.mubr.f32.mxu0 0.0
    %881 = vmatmul.mubr.f32.gmra.mrb[0].mxu0 %v669
    %v882 = vpop.f32.mrb[0].mxu0
    %v883 = vadd.f32 %v814, %v882
    %v884 = vpop.f32.mrb[0].mxu0
    %885 = vmatprep.mubr.f32.mxu0 0.0
    %886 = vmatmul.mubr.f32.gmra.mrb[0].mxu0 %v672
    %v887 = vpop.f32.mrb[0].mxu0
    %v888 = vadd.f32 %v814, %v887
    %v889 = vpop.f32.mrb[0].mxu0
    %890 = vmatprep.mubr.f32.mxu0 0.0
    %891 = vmatmul.mubr.f32.gmra.mrb[0].mxu0 %v675
    %v892 = vpop.f32.mrb[0].mxu0
    %v893 = vadd.f32 %v814, %v892
    %v894 = vpop.f32.mrb[0].mxu0
    %895 = vmatprep.mubr.f32.mxu0 0.0
    %896 = vmatmul.mubr.f32.gmra.mrb[0].mxu0 %v678
    %v897 = vpop.f32.mrb[0].mxu0
    %v898 = vadd.f32 %v814, %v897
    %v899 = vpop.f32.mrb[0].mxu0
    %900 = vmatprep.mubr.f32.mxu0 0.0
    %901 = vmatmul.mubr.f32.gmra.mrb[0].mxu0 %v681
    %v902 = vpop.f32.mrb[0].mxu0
    %v903 = vadd.f32 %v814, %v902
    %v904 = vpop.f32.mrb[0].mxu0
    %905 = vmatprep.mubr.f32.mxu0 0.0
    %906 = vmatmul.mubr.f32.gmra.mrb[0].mxu0 %v684
    %v907 = vpop.f32.mrb[0].mxu0
    %v908 = vadd.f32 %v814, %v907
    %v909 = vpop.f32.mrb[0].mxu0
    %910 = vmatprep.mubr.f32.mxu0 0.0
    %911 = vmatmul.mubr.f32.gmra.mrb[0].mxu0 %v687
    %v912 = vpop.f32.mrb[0].mxu0
    %v913 = vadd.f32 %v814, %v912
    %v914 = vpop.f32.mrb[0].mxu0
    %915 = vmatprep.mubr.f32.mxu0 0.0
    %916 = vmatmul.mubr.f32.gmra.mrb[0].mxu0 %v690
    %v917 = vpop.f32.mrb[0].mxu0
    %v918 = vadd.f32 %v814, %v917
    %v919 = vpop.f32.mrb[0].mxu0
    %920 = vdwg.mxu0
    %v921 = vmul.f32 %v883, %v363
    %v922 = vmul.f32 %v888, %v364
    %v923 = vmul.f32 %v893, %v365
    %v924 = vmul.f32 %v898, %v366
    %v925 = vmul.f32 %v903, %v367
    %v926 = vmul.f32 %v908, %v368
    %v927 = vmul.f32 %v913, %v369
    %v928 = vmul.f32 %v918, %v370
    %v930 = vsel %vm391, %v519, 0
    %v933 = vsel %vm391, %v524, 0
    %v936 = vsel %vm391, %v797, 0
    %v939 = vsel %vm391, %v798, 0
    %v942 = vsel %vm391, %v799, 0
    %v945 = vsel %vm391, %v800, 0
    %v948 = vsel %vm391, %v801, 0
    %v951 = vsel %vm391, %v802, 0
    %v954 = vsel %vm391, %v803, 0
    %v957 = vsel %vm391, %v804, 0
    %959 = vmatprep.subr.mxu0 0.0
    %960 = vmatpush1.xpose.msra.mxu0 %v936
    %961 = vmatprep.subr.mxu0 0.0
    %962 = vmatpush1.xpose.msra.mxu0 %v939
    %963 = vmatprep.subr.mxu0 0.0
    %964 = vmatpush1.xpose.msra.mxu0 %v942
    %965 = vmatprep.subr.mxu0 0.0
    %966 = vmatpush1.xpose.msra.mxu0 %v945
    %967 = vmatprep.subr.mxu0 0.0
    %968 = vmatpush1.xpose.msra.mxu0 %v948
    %969 = vmatprep.subr.mxu0 0.0
    %970 = vmatpush1.xpose.msra.mxu0 %v951
    %971 = vmatprep.subr.mxu0 0.0
    %972 = vmatpush1.xpose.msra.mxu0 %v954
    %973 = vmatprep.subr.mxu0 0.0
    %974 = vmatpush1.xpose.msra.mxu0 %v957
    %975 = vmatprep.subr.mxu0 0.0
    %976 = vmatpush1.xpose.msra.mxu0 0.0
    %977 = vmatprep.subr.mxu0 0.0
    %978 = vmatpush1.xpose.msra.mxu0 0.0
    %979 = vmatprep.subr.mxu0 0.0
    %980 = vmatpush1.xpose.msra.mxu0 0.0
    %981 = vmatprep.subr.mxu0 0.0
    %982 = vmatpush1.xpose.msra.mxu0 0.0
    %983 = vmatprep.subr.mxu0 0.0
    %984 = vmatpush1.xpose.msra.mxu0 0.0
    %985 = vmatprep.subr.mxu0 0.0
    %986 = vmatpush1.xpose.msra.mxu0 0.0
    %987 = vmatprep.subr.mxu0 0.0
    %988 = vmatpush1.xpose.msra.mxu0 0.0
    %989 = vmatprep.subr.mxu0 0.0
    %990 = vmatpush1.xpose.msra.mxu0 0.0
    %991 = vmatprep.subr.mxu0 0.0
    %992 = vmatpush1.xpose.msra.mxu0 0.0
    %993 = vmatprep.subr.mxu0 0.0
    %994 = vmatpush1.xpose.msra.mxu0 0.0
    %995 = vmatprep.subr.mxu0 0.0
    %996 = vmatpush1.xpose.msra.mxu0 0.0
    %997 = vmatprep.subr.mxu0 0.0
    %998 = vmatpush1.xpose.msra.mxu0 0.0
    %999 = vmatprep.subr.mxu0 0.0
    %1000 = vmatpush1.xpose.msra.mxu0 0.0
    %1001 = vmatprep.subr.mxu0 0.0
    %1002 = vmatpush1.xpose.msra.mxu0 0.0
    %1003 = vmatprep.subr.mxu0 0.0
    %1004 = vmatpush1.xpose.msra.mxu0 0.0
    %1005 = vmatprep.subr.mxu0 0.0
    %1006 = vmatpush1.xpose.msra.mxu0 0.0
    %1007 = vmatprep.subr.mxu0 0.0
    %1008 = vmatpush1.xpose.msra.mxu0 0.0
    %1009 = vmatprep.subr.mxu0 0.0
    %1010 = vmatpush1.xpose.msra.mxu0 0.0
    %1011 = vmatprep.subr.mxu0 0.0
    %1012 = vmatpush1.xpose.msra.mxu0 0.0
    %1013 = vmatprep.subr.mxu0 0.0
    %1014 = vmatpush1.xpose.msra.mxu0 0.0
    %1015 = vmatprep.subr.mxu0 0.0
    %1016 = vmatpush1.xpose.msra.mxu0 0.0
    %1017 = vmatprep.subr.mxu0 0.0
    %1018 = vmatpush1.xpose.msra.mxu0 0.0
    %1019 = vmatprep.subr.mxu0 0.0
    %1020 = vmatpush1.xpose.msra.mxu0 0.0
    %1021 = vmatprep.subr.mxu0 0.0
    %1022 = vmatpush1.xpose.msra.mxu0 0.0
    %1023 = vmatprep.mubr.f32.mxu0 0.0
    %1024 = vmatmul.mubr.f32.gmra.mrb[0].mxu0 %v930
    %v1025 = vpop.f32.mrb[0].mxu0
    %v1026 = vadd.f32 0.0, %v1025
    %v1027 = vpop.f32.mrb[0].mxu0
    %1028 = vmatprep.mubr.f32.mxu0 0.0
    %1029 = vmatmul.mubr.f32.gmra.mrb[0].mxu0 %v933
    %v1030 = vpop.f32.mrb[0].mxu0
    %v1031 = vadd.f32 0.0, %v1030
    %v1032 = vpop.f32.mrb[0].mxu0
    %1033 = vdwg.mxu0
    %v1034 = vmul.f32 %v1026, 0.35355338
    %v1035 = vmul.f32 %v1031, 0.35355338
    %v1036 = vadd.f32 %v1034, %v361
    %v1037 = vadd.f32 %v1035, %v362
    %vm1038 = vcmask 523264
    %v1039 = vsel %vm1038, %v1036, -inf
    %1040 = vmax.xlane.f32.xlu0 %v1039
    %v1041 = vpop.xlane.xlu0 %1040
    %v1042 = vsel %vm1038, %v1037, -inf
    %1043 = vmax.xlane.f32.xlu0 %v1042
    %v1044 = vpop.xlane.xlu0 %1043
    %v1045 = vsub.f32 %v1036, %v1041
    %v1046 = vsub.f32 %v1037, %v1044
    %v1047 = vmul.f32 %v1045, 1.442695
    %v1048 = vpow.pop %v1047
    %v1049 = vmul.f32 %v1046, 1.442695
    %v1050 = vpow.pop %v1049
    %v1052 = vsel %vm1038, %v1048, 0
    %v1055 = vsel %vm1038, %v1050, 0
    %1057 = vmatprep.subr.mxu0 0.0
    %1058 = vmatpush1.msra.mxu0 %v371
    %1059 = vmatprep.subr.mxu0 0.0
    %1060 = vmatpush1.msra.mxu0 %v372
    %1061 = vmatprep.subr.mxu0 0.0
    %1062 = vmatpush1.msra.mxu0 %v373
    %1063 = vmatprep.subr.mxu0 0.0
    %1064 = vmatpush1.msra.mxu0 %v374
    %1065 = vmatprep.subr.mxu0 0.0
    %1066 = vmatpush1.msra.mxu0 %v375
    %1067 = vmatprep.subr.mxu0 0.0
    %1068 = vmatpush1.msra.mxu0 %v376
    %1069 = vmatprep.subr.mxu0 0.0
    %1070 = vmatpush1.msra.mxu0 %v377
    %1071 = vmatprep.subr.mxu0 0.0
    %1072 = vmatpush1.msra.mxu0 %v378
    %1073 = vmatprep.subr.mxu0 0.0
    %1074 = vmatpush1.msra.mxu0 0.0
    %1075 = vmatprep.subr.mxu0 0.0
    %1076 = vmatpush1.msra.mxu0 0.0
    %1077 = vmatprep.subr.mxu0 0.0
    %1078 = vmatpush1.msra.mxu0 0.0
    %1079 = vmatprep.subr.mxu0 0.0
    %1080 = vmatpush1.msra.mxu0 0.0
    %1081 = vmatprep.subr.mxu0 0.0
    %1082 = vmatpush1.msra.mxu0 0.0
    %1083 = vmatprep.subr.mxu0 0.0
    %1084 = vmatpush1.msra.mxu0 0.0
    %1085 = vmatprep.subr.mxu0 0.0
    %1086 = vmatpush1.msra.mxu0 0.0
    %1087 = vmatprep.subr.mxu0 0.0
    %1088 = vmatpush1.msra.mxu0 0.0
    %1089 = vmatprep.subr.mxu0 0.0
    %1090 = vmatpush1.msra.mxu0 0.0
    %1091 = vmatprep.subr.mxu0 0.0
    %1092 = vmatpush1.msra.mxu0 0.0
    %1093 = vmatprep.subr.mxu0 0.0
    %1094 = vmatpush1.msra.mxu0 0.0
    %1095 = vmatprep.subr.mxu0 0.0
    %1096 = vmatpush1.msra.mxu0 0.0
    %1097 = vmatprep.subr.mxu0 0.0
    %1098 = vmatpush1.msra.mxu0 0.0
    %1099 = vmatprep.subr.mxu0 0.0
    %1100 = vmatpush1.msra.mxu0 0.0
    %1101 = vmatprep.subr.mxu0 0.0
    %1102 = vmatpush1.msra.mxu0 0.0
    %1103 = vmatprep.subr.mxu0 0.0
    %1104 = vmatpush1.msra.mxu0 0.0
    %1105 = vmatprep.subr.mxu0 0.0
    %1106 = vmatpush1.msra.mxu0 0.0
    %1107 = vmatprep.subr.mxu0 0.0
    %1108 = vmatpush1.msra.mxu0 0.0
    %1109 = vmatprep.subr.mxu0 0.0
    %1110 = vmatpush1.msra.mxu0 0.0
    %1111 = vmatprep.subr.mxu0 0.0
    %1112 = vmatpush1.msra.mxu0 0.0
    %1113 = vmatprep.subr.mxu0 0.0
    %1114 = vmatpush1.msra.mxu0 0.0
    %1115 = vmatprep.subr.mxu0 0.0
    %1116 = vmatpush1.msra.mxu0 0.0
    %1117 = vmatprep.subr.mxu0 0.0
    %1118 = vmatpush1.msra.mxu0 0.0
    %1119 = vmatprep.subr.mxu0 0.0
    %1120 = vmatpush1.msra.mxu0 0.0
    %1121 = vmatprep.mubr.f32.mxu0 0.0
    %1122 = vmatmul.mubr.f32.gmra.mrb[0].mxu0 %v1052
    %v1123 = vpop.f32.mrb[0].mxu0
    %v1124 = vadd.f32 0.0, %v1123
    %v1125 = vpop.f32.mrb[0].mxu0
    %1126 = vmatprep.mubr.f32.mxu0 0.0
    %1127 = vmatmul.mubr.f32.gmra.mrb[0].mxu0 %v1055
    %v1128 = vpop.f32.mrb[0].mxu0
    %v1129 = vadd.f32 0.0, %v1128
    %v1130 = vpop.f32.mrb[0].mxu0
    %1131 = vdwg.mxu0
    %v1132 = vrcp.pop %v1124
    %v1133 = vrcp.pop %v1129
    %v1134 = vmul.f32 %v1048, %v1132
    %v1135 = vmul.f32 %v1050, %v1133
    %v1137 = vsel %vm1038, %v1134, 0
    %v1140 = vsel %vm1038, %v1135, 0
    %1142 = vmatprep.subr.mxu0 0.0
    %1143 = vmatpush1.msra.mxu0 %v921
    %1144 = vmatprep.subr.mxu0 0.0
    %1145 = vmatpush1.msra.mxu0 %v922
    %1146 = vmatprep.subr.mxu0 0.0
    %1147 = vmatpush1.msra.mxu0 %v923
    %1148 = vmatprep.subr.mxu0 0.0
    %1149 = vmatpush1.msra.mxu0 %v924
    %1150 = vmatprep.subr.mxu0 0.0
    %1151 = vmatpush1.msra.mxu0 %v925
    %1152 = vmatprep.subr.mxu0 0.0
    %1153 = vmatpush1.msra.mxu0 %v926
    %1154 = vmatprep.subr.mxu0 0.0
    %1155 = vmatpush1.msra.mxu0 %v927
    %1156 = vmatprep.subr.mxu0 0.0
    %1157 = vmatpush1.msra.mxu0 %v928
    %1158 = vmatprep.subr.mxu0 0.0
    %1159 = vmatpush1.msra.mxu0 0.0
    %1160 = vmatprep.subr.mxu0 0.0
    %1161 = vmatpush1.msra.mxu0 0.0
    %1162 = vmatprep.subr.mxu0 0.0
    %1163 = vmatpush1.msra.mxu0 0.0
    %1164 = vmatprep.subr.mxu0 0.0
    %1165 = vmatpush1.msra.mxu0 0.0
    %1166 = vmatprep.subr.mxu0 0.0
    %1167 = vmatpush1.msra.mxu0 0.0
    %1168 = vmatprep.subr.mxu0 0.0
    %1169 = vmatpush1.msra.mxu0 0.0
    %1170 = vmatprep.subr.mxu0 0.0
    %1171 = vmatpush1.msra.mxu0 0.0
    %1172 = vmatprep.subr.mxu0 0.0
    %1173 = vmatpush1.msra.mxu0 0.0
    %1174 = vmatprep.subr.mxu0 0.0
    %1175 = vmatpush1.msra.mxu0 0.0
    %1176 = vmatprep.subr.mxu0 0.0
    %1177 = vmatpush1.msra.mxu0 0.0
    %1178 = vmatprep.subr.mxu0 0.0
    %1179 = vmatpush1.msra.mxu0 0.0
    %1180 = vmatprep.subr.mxu0 0.0
    %1181 = vmatpush1.msra.mxu0 0.0
    %1182 = vmatprep.subr.mxu0 0.0
    %1183 = vmatpush1.msra.mxu0 0.0
    %1184 = vmatprep.subr.mxu0 0.0
    %1185 = vmatpush1.msra.mxu0 0.0
    %1186 = vmatprep.subr.mxu0 0.0
    %1187 = vmatpush1.msra.mxu0 0.0
    %1188 = vmatprep.subr.mxu0 0.0
    %1189 = vmatpush1.msra.mxu0 0.0
    %1190 = vmatprep.subr.mxu0 0.0
    %1191 = vmatpush1.msra.mxu0 0.0
    %1192 = vmatprep.subr.mxu0 0.0
    %1193 = vmatpush1.msra.mxu0 0.0
    %1194 = vmatprep.subr.mxu0 0.0
    %1195 = vmatpush1.msra.mxu0 0.0
    %1196 = vmatprep.subr.mxu0 0.0
    %1197 = vmatpush1.msra.mxu0 0.0
    %1198 = vmatprep.subr.mxu0 0.0
    %1199 = vmatpush1.msra.mxu0 0.0
    %1200 = vmatprep.subr.mxu0 0.0
    %1201 = vmatpush1.msra.mxu0 0.0
    %1202 = vmatprep.subr.mxu0 0.0
    %1203 = vmatpush1.msra.mxu0 0.0
    %1204 = vmatprep.subr.mxu0 0.0
    %1205 = vmatpush1.msra.mxu0 0.0
    %1206 = vmatprep.mubr.f32.mxu0 0.0
    %1207 = vmatmul.mubr.f32.gmra.mrb[0].mxu0 %v1137
    %v1208 = vpop.f32.mrb[0].mxu0
    %v1209 = vadd.f32 0.0, %v1208
    %v1210 = vpop.f32.mrb[0].mxu0
    %1211 = vmatprep.mubr.f32.mxu0 0.0
    %1212 = vmatmul.mubr.f32.gmra.mrb[0].mxu0 %v1140
    %v1213 = vpop.f32.mrb[0].mxu0
    %v1214 = vadd.f32 0.0, %v1213
    %v1215 = vpop.f32.mrb[0].mxu0
    %1216 = vdwg.mxu0
    %v1217 = vld [vmem:[%s29] sm:$0xff]
    %v1218 = vld [vmem:[%s29 + $0x8] sm:$0xff]
    %v1219 = vld [vmem:[%s29 + $0x10] sm:$0xff]
    %v1220 = vld [vmem:[%s29 + $0x18] sm:$0xff]
    %v1221 = vld [vmem:[#allocation15] sm:$0x1]
    %v1223 = vlaneseq
    %v1224 = vshrl.u32 %v1223, 7
    %v1225 = vsub.s32 0, %v1224
    %v1226 = vrot.slane %v1221, %v1225
    %v1229 = vsel %vm391, %v1209, 0
    %v1232 = vsel %vm391, %v1214, 0
    %1234 = vmatprep.subr.mxu0 0.0
    %1235 = vmatpush1.msra.mxu0 %v1217
    %1236 = vmatprep.subr.mxu0 0.0
    %1237 = vmatpush1.msra.mxu0 %v1218
    %1238 = vmatprep.subr.mxu0 0.0
    %1239 = vmatpush1.msra.mxu0 %v1219
    %1240 = vmatprep.subr.mxu0 0.0
    %1241 = vmatpush1.msra.mxu0 %v1220
    %1242 = vmatprep.subr.mxu0 0.0
    %1243 = vmatpush1.msra.mxu0 0.0
    %1244 = vmatprep.subr.mxu0 0.0
    %1245 = vmatpush1.msra.mxu0 0.0
    %1246 = vmatprep.subr.mxu0 0.0
    %1247 = vmatpush1.msra.mxu0 0.0
    %1248 = vmatprep.subr.mxu0 0.0
    %1249 = vmatpush1.msra.mxu0 0.0
    %1250 = vmatprep.subr.mxu0 0.0
    %1251 = vmatpush1.msra.mxu0 0.0
    %1252 = vmatprep.subr.mxu0 0.0
    %1253 = vmatpush1.msra.mxu0 0.0
    %1254 = vmatprep.subr.mxu0 0.0
    %1255 = vmatpush1.msra.mxu0 0.0
    %1256 = vmatprep.subr.mxu0 0.0
    %1257 = vmatpush1.msra.mxu0 0.0
    %1258 = vmatprep.subr.mxu0 0.0
    %1259 = vmatpush1.msra.mxu0 0.0
    %1260 = vmatprep.subr.mxu0 0.0
    %1261 = vmatpush1.msra.mxu0 0.0
    %1262 = vmatprep.subr.mxu0 0.0
    %1263 = vmatpush1.msra.mxu0 0.0
    %1264 = vmatprep.subr.mxu0 0.0
    %1265 = vmatpush1.msra.mxu0 0.0
    %1266 = vmatprep.subr.mxu0 0.0
    %1267 = vmatpush1.msra.mxu0 0.0
    %1268 = vmatprep.subr.mxu0 0.0
    %1269 = vmatpush1.msra.mxu0 0.0
    %1270 = vmatprep.subr.mxu0 0.0
    %1271 = vmatpush1.msra.mxu0 0.0
    %1272 = vmatprep.subr.mxu0 0.0
    %1273 = vmatpush1.msra.mxu0 0.0
    %1274 = vmatprep.subr.mxu0 0.0
    %1275 = vmatpush1.msra.mxu0 0.0
    %1276 = vmatprep.subr.mxu0 0.0
    %1277 = vmatpush1.msra.mxu0 0.0
    %1278 = vmatprep.subr.mxu0 0.0
    %1279 = vmatpush1.msra.mxu0 0.0
    %1280 = vmatprep.subr.mxu0 0.0
    %1281 = vmatpush1.msra.mxu0 0.0
    %1282 = vmatprep.subr.mxu0 0.0
    %1283 = vmatpush1.msra.mxu0 0.0
    %1284 = vmatprep.subr.mxu0 0.0
    %1285 = vmatpush1.msra.mxu0 0.0
    %1286 = vmatprep.subr.mxu0 0.0
    %1287 = vmatpush1.msra.mxu0 0.0
    %1288 = vmatprep.subr.mxu0 0.0
    %1289 = vmatpush1.msra.mxu0 0.0
    %1290 = vmatprep.subr.mxu0 0.0
    %1291 = vmatpush1.msra.mxu0 0.0
    %1292 = vmatprep.subr.mxu0 0.0
    %1293 = vmatpush1.msra.mxu0 0.0
    %1294 = vmatprep.subr.mxu0 0.0
    %1295 = vmatpush1.msra.mxu0 0.0
    %1296 = vmatprep.subr.mxu0 0.0
    %1297 = vmatpush1.msra.mxu0 0.0
    %1298 = vmatprep.mubr.f32.mxu0 0.0
    %1299 = vmatmul.mubr.f32.gmra.mrb[0].mxu0 %v1229
    %v1300 = vpop.f32.mrb[0].mxu0
    %v1301 = vadd.f32 %v1226, %v1300
    %v1302 = vpop.f32.mrb[0].mxu0
    %1303 = vmatprep.mubr.f32.mxu0 0.0
    %1304 = vmatmul.mubr.f32.gmra.mrb[0].mxu0 %v1232
    %v1305 = vpop.f32.mrb[0].mxu0
    %v1306 = vadd.f32 %v1226, %v1305
    %v1307 = vpop.f32.mrb[0].mxu0
    %1308 = vdwg.mxu0
    %v1309 = vadd.f32 %v433, %v1301
    %v1310 = vadd.f32 %v434, %v1306
    %v1311 = vld [vmem:[#allocation17] sm:$0x1]
    %v1312 = vld [vmem:[#allocation18] sm:$0x1]
    %v1313 = vsel %vm391, %v1309, 0.0
    %1314 = vadd.xlane.f32.xlu0 %v1313
    %v1315 = vpop.xlane.xlu0 %1314
    %v1316 = vsel %vm391, %v1310, 0.0
    %1317 = vadd.xlane.f32.xlu0 %v1316
    %v1318 = vpop.xlane.xlu0 %1317
    %v1319 = vmul.f32 %v1315, %v398
    %v1320 = vmul.f32 %v1318, %v398
    %v1321 = vsub.f32 %v1309, %v1319
    %v1322 = vsub.f32 %v1310, %v1320
    %v1323 = vmul.f32 %v1321, %v1321
    %v1324 = vmul.f32 %v1322, %v1322
    %v1325 = vsel %vm391, %v1323, 0.0
    %1326 = vadd.xlane.f32.xlu0 %v1325
    %v1327 = vpop.xlane.xlu0 %1326
    %v1328 = vsel %vm391, %v1324, 0.0
    %1329 = vadd.xlane.f32.xlu0 %v1328
    %v1330 = vpop.xlane.xlu0 %1329
    %v1331 = vmul.f32 %v1327, %v398
    %v1332 = vmul.f32 %v1330, %v398
    %v1333 = vadd.f32 %v1331, 1e-12
    %v1334 = vadd.f32 %v1332, 1e-12
    %v1335 = vrsqrt.pop %v1333
    %v1336 = vrsqrt.pop %v1334
    %v1337 = vmul.f32 %v1321, %v1335
    %v1338 = vmul.f32 %v1322, %v1336
    %v1340 = vlaneseq
    %v1341 = vshrl.u32 %v1340, 7
    %v1342 = vsub.s32 0, %v1341
    %v1343 = vrot.slane %v1311, %v1342
    %v1345 = vmul.f32 %v1337, %v1343
    %v1346 = vmul.f32 %v1338, %v1343
    %v1348 = vlaneseq
    %v1349 = vshrl.u32 %v1348, 7
    %v1350 = vsub.s32 0, %v1349
    %v1351 = vrot.slane %v1312, %v1350
    %v1353 = vadd.f32 %v1345, %v1351
    %v1354 = vadd.f32 %v1346, %v1351
    %v1355 = vld [vmem:[%s37] sm:$0xff]
    %v1356 = vld [vmem:[%s37 + $0x8] sm:$0xff]
    %v1357 = vld [vmem:[%s37 + $0x10] sm:$0xff]
    %v1358 = vld [vmem:[%s37 + $0x18] sm:$0xff]
    %v1359 = vld [vmem:[#allocation20] sm:$0x1]
    %v1361 = vlaneseq
    %v1362 = vshrl.u32 %v1361, 7
    %v1363 = vsub.s32 0, %v1362
    %v1364 = vrot.slane %v1359, %v1363
    %v1367 = vsel %vm391, %v1353, 0
    %v1370 = vsel %vm391, %v1354, 0
    %1372 = vmatprep.subr.mxu0 0.0
    %1373 = vmatpush1.msra.mxu0 %v1355
    %1374 = vmatprep.subr.mxu0 0.0
    %1375 = vmatpush1.msra.mxu0 %v1356
    %1376 = vmatprep.subr.mxu0 0.0
    %1377 = vmatpush1.msra.mxu0 %v1357
    %1378 = vmatprep.subr.mxu0 0.0
    %1379 = vmatpush1.msra.mxu0 %v1358
    %1380 = vmatprep.subr.mxu0 0.0
    %1381 = vmatpush1.msra.mxu0 0.0
    %1382 = vmatprep.subr.mxu0 0.0
    %1383 = vmatpush1.msra.mxu0 0.0
    %1384 = vmatprep.subr.mxu0 0.0
    %1385 = vmatpush1.msra.mxu0 0.0
    %1386 = vmatprep.subr.mxu0 0.0
    %1387 = vmatpush1.msra.mxu0 0.0
    %1388 = vmatprep.subr.mxu0 0.0
    %1389 = vmatpush1.msra.mxu0 0.0
    %1390 = vmatprep.subr.mxu0 0.0
    %1391 = vmatpush1.msra.mxu0 0.0
    %1392 = vmatprep.subr.mxu0 0.0
    %1393 = vmatpush1.msra.mxu0 0.0
    %1394 = vmatprep.subr.mxu0 0.0
    %1395 = vmatpush1.msra.mxu0 0.0
    %1396 = vmatprep.subr.mxu0 0.0
    %1397 = vmatpush1.msra.mxu0 0.0
    %1398 = vmatprep.subr.mxu0 0.0
    %1399 = vmatpush1.msra.mxu0 0.0
    %1400 = vmatprep.subr.mxu0 0.0
    %1401 = vmatpush1.msra.mxu0 0.0
    %1402 = vmatprep.subr.mxu0 0.0
    %1403 = vmatpush1.msra.mxu0 0.0
    %1404 = vmatprep.subr.mxu0 0.0
    %1405 = vmatpush1.msra.mxu0 0.0
    %1406 = vmatprep.subr.mxu0 0.0
    %1407 = vmatpush1.msra.mxu0 0.0
    %1408 = vmatprep.subr.mxu0 0.0
    %1409 = vmatpush1.msra.mxu0 0.0
    %1410 = vmatprep.subr.mxu0 0.0
    %1411 = vmatpush1.msra.mxu0 0.0
    %1412 = vmatprep.subr.mxu0 0.0
    %1413 = vmatpush1.msra.mxu0 0.0
    %1414 = vmatprep.subr.mxu0 0.0
    %1415 = vmatpush1.msra.mxu0 0.0
    %1416 = vmatprep.subr.mxu0 0.0
    %1417 = vmatpush1.msra.mxu0 0.0
    %1418 = vmatprep.subr.mxu0 0.0
    %1419 = vmatpush1.msra.mxu0 0.0
    %1420 = vmatprep.subr.mxu0 0.0
    %1421 = vmatpush1.msra.mxu0 0.0
    %1422 = vmatprep.subr.mxu0 0.0
    %1423 = vmatpush1.msra.mxu0 0.0
    %1424 = vmatprep.subr.mxu0 0.0
    %1425 = vmatpush1.msra.mxu0 0.0
    %1426 = vmatprep.subr.mxu0 0.0
    %1427 = vmatpush1.msra.mxu0 0.0
    %1428 = vmatprep.subr.mxu0 0.0
    %1429 = vmatpush1.msra.mxu0 0.0
    %1430 = vmatprep.subr.mxu0 0.0
    %1431 = vmatpush1.msra.mxu0 0.0
    %1432 = vmatprep.subr.mxu0 0.0
    %1433 = vmatpush1.msra.mxu0 0.0
    %1434 = vmatprep.subr.mxu0 0.0
    %1435 = vmatpush1.msra.mxu0 0.0
    %1436 = vmatprep.mubr.f32.mxu0 0.0
    %1437 = vmatmul.mubr.f32.gmra.mrb[0].mxu0 %v1367
    %v1438 = vpop.f32.mrb[0].mxu0
    %v1439 = vadd.f32 %v1364, %v1438
    %v1440 = vpop.f32.mrb[0].mxu0
    %1441 = vmatprep.mubr.f32.mxu0 0.0
    %1442 = vmatmul.mubr.f32.gmra.mrb[0].mxu0 %v1370
    %v1443 = vpop.f32.mrb[0].mxu0
    %v1444 = vadd.f32 %v1364, %v1443
    %v1445 = vpop.f32.mrb[0].mxu0
    %1446 = vdwg.mxu0
    %v1447 = vmul.f32 %v1439, 0.5
    %v1448 = vmul.f32 %v1444, 0.5
    %v1449 = vmul.f32 %v1439, 0.044715
    %v1450 = vmul.f32 %v1444, 0.044715
    %v1451 = vmul.f32 %v1449, %v1439
    %v1452 = vmul.f32 %v1450, %v1444
    %v1453 = vmul.f32 %v1451, %v1439
    %v1454 = vmul.f32 %v1452, %v1444
    %v1455 = vadd.f32 %v1439, %v1453
    %v1456 = vadd.f32 %v1444, %v1454
    %v1457 = vmul.f32 %v1455, 0.7978846
    %v1458 = vmul.f32 %v1456, 0.7978846
    %v1459 = vtanh.pop %v1457
    %v1460 = vtanh.pop %v1458
    %v1461 = vadd.f32 %v1459, 1.0
    %v1462 = vadd.f32 %v1460, 1.0
    %v1463 = vmul.f32 %v1447, %v1461
    %v1464 = vmul.f32 %v1448, %v1462
    %v1465 = vld [vmem:[%s41] sm:$0xff]
    %v1466 = vld [vmem:[%s41 + $0x8] sm:$0xff]
    %v1467 = vld [vmem:[%s41 + $0x10] sm:$0xff]
    %v1468 = vld [vmem:[%s41 + $0x18] sm:$0xff]
    %v1469 = vld [vmem:[%s41 + $0x20] sm:$0xff]
    %v1470 = vld [vmem:[%s41 + $0x28] sm:$0xff]
    %v1471 = vld [vmem:[%s41 + $0x30] sm:$0xff]
    %v1472 = vld [vmem:[%s41 + $0x38] sm:$0xff]
    %v1473 = vld [vmem:[#allocation21] sm:$0x1]
    %v1475 = vlaneseq
    %v1476 = vshrl.u32 %v1475, 7
    %v1477 = vsub.s32 0, %v1476
    %v1478 = vrot.slane %v1473, %v1477
    %v1481 = vsel %vm1038, %v1463, 0
    %v1484 = vsel %vm1038, %v1464, 0
    %1486 = vmatprep.subr.mxu0 0.0
    %1487 = vmatpush1.msra.mxu0 %v1465
    %1488 = vmatprep.subr.mxu0 0.0
    %1489 = vmatpush1.msra.mxu0 %v1466
    %1490 = vmatprep.subr.mxu0 0.0
    %1491 = vmatpush1.msra.mxu0 %v1467
    %1492 = vmatprep.subr.mxu0 0.0
    %1493 = vmatpush1.msra.mxu0 %v1468
    %1494 = vmatprep.subr.mxu0 0.0
    %1495 = vmatpush1.msra.mxu0 %v1469
    %1496 = vmatprep.subr.mxu0 0.0
    %1497 = vmatpush1.msra.mxu0 %v1470
    %1498 = vmatprep.subr.mxu0 0.0
    %1499 = vmatpush1.msra.mxu0 %v1471
    %1500 = vmatprep.subr.mxu0 0.0
    %1501 = vmatpush1.msra.mxu0 %v1472
    %1502 = vmatprep.subr.mxu0 0.0
    %1503 = vmatpush1.msra.mxu0 0.0
    %1504 = vmatprep.subr.mxu0 0.0
    %1505 = vmatpush1.msra.mxu0 0.0
    %1506 = vmatprep.subr.mxu0 0.0
    %1507 = vmatpush1.msra.mxu0 0.0
    %1508 = vmatprep.subr.mxu0 0.0
    %1509 = vmatpush1.msra.mxu0 0.0
    %1510 = vmatprep.subr.mxu0 0.0
    %1511 = vmatpush1.msra.mxu0 0.0
    %1512 = vmatprep.subr.mxu0 0.0
    %1513 = vmatpush1.msra.mxu0 0.0
    %1514 = vmatprep.subr.mxu0 0.0
    %1515 = vmatpush1.msra.mxu0 0.0
    %1516 = vmatprep.subr.mxu0 0.0
    %1517 = vmatpush1.msra.mxu0 0.0
    %1518 = vmatprep.subr.mxu0 0.0
    %1519 = vmatpush1.msra.mxu0 0.0
    %1520 = vmatprep.subr.mxu0 0.0
    %1521 = vmatpush1.msra.mxu0 0.0
    %1522 = vmatprep.subr.mxu0 0.0
    %1523 = vmatpush1.msra.mxu0 0.0
    %1524 = vmatprep.subr.mxu0 0.0
    %1525 = vmatpush1.msra.mxu0 0.0
    %1526 = vmatprep.subr.mxu0 0.0
    %1527 = vmatpush1.msra.mxu0 0.0
    %1528 = vmatprep.subr.mxu0 0.0
    %1529 = vmatpush1.msra.mxu0 0.0
    %1530 = vmatprep.subr.mxu0 0.0
    %1531 = vmatpush1.msra.mxu0 0.0
    %1532 = vmatprep.subr.mxu0 0.0
    %1533 = vmatpush1.msra.mxu0 0.0
    %1534 = vmatprep.subr.mxu0 0.0
    %1535 = vmatpush1.msra.mxu0 0.0
    %1536 = vmatprep.subr.mxu0 0.0
    %1537 = vmatpush1.msra.mxu0 0.0
    %1538 = vmatprep.subr.mxu0 0.0
    %1539 = vmatpush1.msra.mxu0 0.0
    %1540 = vmatprep.subr.mxu0 0.0
    %1541 = vmatpush1.msra.mxu0 0.0
    %1542 = vmatprep.subr.mxu0 0.0
    %1543 = vmatpush1.msra.mxu0 0.0
    %1544 = vmatprep.subr.mxu0 0.0
    %1545 = vmatpush1.msra.mxu0 0.0
    %1546 = vmatprep.subr.mxu0 0.0
    %1547 = vmatpush1.msra.mxu0 0.0
    %1548 = vmatprep.subr.mxu0 0.0
    %1549 = vmatpush1.msra.mxu0 0.0
    %1550 = vmatprep.mubr.f32.mxu0 0.0
    %1551 = vmatmul.mubr.f32.gmra.mrb[0].mxu0 %v1481
    %v1552 = vpop.f32.mrb[0].mxu0
    %v1553 = vadd.f32 %v1478, %v1552
    %v1554 = vpop.f32.mrb[0].mxu0
    %1555 = vmatprep.mubr.f32.mxu0 0.0
    %1556 = vmatmul.mubr.f32.gmra.mrb[0].mxu0 %v1484
    %v1557 = vpop.f32.mrb[0].mxu0
    %v1558 = vadd.f32 %v1478, %v1557
    %v1559 = vpop.f32.mrb[0].mxu0
    %1560 = vdwg.mxu0
    %v1561 = vadd.f32 %v1353, %v1553
    %v1562 = vadd.f32 %v1354, %v1558
    %v1563 = vld [vmem:[#allocation23] sm:$0x1]
    %v1564 = vld [vmem:[#allocation24] sm:$0x1]
    %v1565 = vsel %vm391, %v1561, 0.0
    %1566 = vadd.xlane.f32.xlu0 %v1565
    %v1567 = vpop.xlane.xlu0 %1566
    %v1568 = vsel %vm391, %v1562, 0.0
    %1569 = vadd.xlane.f32.xlu0 %v1568
    %v1570 = vpop.xlane.xlu0 %1569
    %v1571 = vmul.f32 %v1567, %v398
    %v1572 = vmul.f32 %v1570, %v398
    %v1573 = vsub.f32 %v1561, %v1571
    %v1574 = vsub.f32 %v1562, %v1572
    %v1575 = vmul.f32 %v1573, %v1573
    %v1576 = vmul.f32 %v1574, %v1574
    %v1577 = vsel %vm391, %v1575, 0.0
    %1578 = vadd.xlane.f32.xlu0 %v1577
    %v1579 = vpop.xlane.xlu0 %1578
    %v1580 = vsel %vm391, %v1576, 0.0
    %1581 = vadd.xlane.f32.xlu0 %v1580
    %v1582 = vpop.xlane.xlu0 %1581
    %v1583 = vmul.f32 %v1579, %v398
    %v1584 = vmul.f32 %v1582, %v398
    %v1585 = vadd.f32 %v1583, 1e-12
    %v1586 = vadd.f32 %v1584, 1e-12
    %v1587 = vrsqrt.pop %v1585
    %v1588 = vrsqrt.pop %v1586
    %v1589 = vmul.f32 %v1573, %v1587
    %v1590 = vmul.f32 %v1574, %v1588
    %v1592 = vlaneseq
    %v1593 = vshrl.u32 %v1592, 7
    %v1594 = vsub.s32 0, %v1593
    %v1595 = vrot.slane %v1563, %v1594
    %v1597 = vmul.f32 %v1589, %v1595
    %v1598 = vmul.f32 %v1590, %v1595
    %v1600 = vlaneseq
    %v1601 = vshrl.u32 %v1600, 7
    %v1602 = vsub.s32 0, %v1601
    %v1603 = vrot.slane %v1564, %v1602
    %v1605 = vadd.f32 %v1597, %v1603
    %v1606 = vadd.f32 %v1598, %v1603
    %s1607 = scalar_lea.vmem %s17, 32
    %v1608 = vld [vmem:[%s1607] sm:$0xff]
    %v1609 = vld [vmem:[%s1607 + $0x8] sm:$0xff]
    %v1610 = vld [vmem:[%s1607 + $0x10] sm:$0xff]
    %v1611 = vld [vmem:[%s1607 + $0x18] sm:$0xff]
    %s1612 = scalar_lea.vmem %s19, 1
    %v1613 = vld [vmem:[%s1612] sm:$0x1]
    %v1615 = vlaneseq
    %v1616 = vshrl.u32 %v1615, 7
    %v1617 = vsub.s32 0, %v1616
    %v1618 = vrot.slane %v1613, %v1617
    %v1621 = vsel %vm391, %v1605, 0
    %v1624 = vsel %vm391, %v1606, 0
    %1626 = vmatprep.subr.mxu0 0.0
    %1627 = vmatpush1.msra.mxu0 %v1608
    %1628 = vmatprep.subr.mxu0 0.0
    %1629 = vmatpush1.msra.mxu0 %v1609
    %1630 = vmatprep.subr.mxu0 0.0
    %1631 = vmatpush1.msra.mxu0 %v1610
    %1632 = vmatprep.subr.mxu0 0.0
    %1633 = vmatpush1.msra.mxu0 %v1611
    %1634 = vmatprep.subr.mxu0 0.0
    %1635 = vmatpush1.msra.mxu0 0.0
    %1636 = vmatprep.subr.mxu0 0.0
    %1637 = vmatpush1.msra.mxu0 0.0
    %1638 = vmatprep.subr.mxu0 0.0
    %1639 = vmatpush1.msra.mxu0 0.0
    %1640 = vmatprep.subr.mxu0 0.0
    %1641 = vmatpush1.msra.mxu0 0.0
    %1642 = vmatprep.subr.mxu0 0.0
    %1643 = vmatpush1.msra.mxu0 0.0
    %1644 = vmatprep.subr.mxu0 0.0
    %1645 = vmatpush1.msra.mxu0 0.0
    %1646 = vmatprep.subr.mxu0 0.0
    %1647 = vmatpush1.msra.mxu0 0.0
    %1648 = vmatprep.subr.mxu0 0.0
    %1649 = vmatpush1.msra.mxu0 0.0
    %1650 = vmatprep.subr.mxu0 0.0
    %1651 = vmatpush1.msra.mxu0 0.0
    %1652 = vmatprep.subr.mxu0 0.0
    %1653 = vmatpush1.msra.mxu0 0.0
    %1654 = vmatprep.subr.mxu0 0.0
    %1655 = vmatpush1.msra.mxu0 0.0
    %1656 = vmatprep.subr.mxu0 0.0
    %1657 = vmatpush1.msra.mxu0 0.0
    %1658 = vmatprep.subr.mxu0 0.0
    %1659 = vmatpush1.msra.mxu0 0.0
    %1660 = vmatprep.subr.mxu0 0.0
    %1661 = vmatpush1.msra.mxu0 0.0
    %1662 = vmatprep.subr.mxu0 0.0
    %1663 = vmatpush1.msra.mxu0 0.0
    %1664 = vmatprep.subr.mxu0 0.0
    %1665 = vmatpush1.msra.mxu0 0.0
    %1666 = vmatprep.subr.mxu0 0.0
    %1667 = vmatpush1.msra.mxu0 0.0
    %1668 = vmatprep.subr.mxu0 0.0
    %1669 = vmatpush1.msra.mxu0 0.0
    %1670 = vmatprep.subr.mxu0 0.0
    %1671 = vmatpush1.msra.mxu0 0.0
    %1672 = vmatprep.subr.mxu0 0.0
    %1673 = vmatpush1.msra.mxu0 0.0
    %1674 = vmatprep.subr.mxu0 0.0
    %1675 = vmatpush1.msra.mxu0 0.0
    %1676 = vmatprep.subr.mxu0 0.0
    %1677 = vmatpush1.msra.mxu0 0.0
    %1678 = vmatprep.subr.mxu0 0.0
    %1679 = vmatpush1.msra.mxu0 0.0
    %1680 = vmatprep.subr.mxu0 0.0
    %1681 = vmatpush1.msra.mxu0 0.0
    %1682 = vmatprep.subr.mxu0 0.0
    %1683 = vmatpush1.msra.mxu0 0.0
    %1684 = vmatprep.subr.mxu0 0.0
    %1685 = vmatpush1.msra.mxu0 0.0
    %1686 = vmatprep.subr.mxu0 0.0
    %1687 = vmatpush1.msra.mxu0 0.0
    %1688 = vmatprep.subr.mxu0 0.0
    %1689 = vmatpush1.msra.mxu0 0.0
    %1690 = vmatprep.mubr.f32.mxu0 0.0
    %1691 = vmatmul.mubr.f32.gmra.mrb[0].mxu0 %v1621
    %v1692 = vpop.f32.mrb[0].mxu0
    %v1693 = vadd.f32 %v1618, %v1692
    %v1694 = vpop.f32.mrb[0].mxu0
    %1695 = vmatprep.mubr.f32.mxu0 0.0
    %1696 = vmatmul.mubr.f32.gmra.mrb[0].mxu0 %v1624
    %v1697 = vpop.f32.mrb[0].mxu0
    %v1698 = vadd.f32 %v1618, %v1697
    %v1699 = vpop.f32.mrb[0].mxu0
    %1700 = vdwg.mxu0
    %1701 = vmatprep.subr.mxu0 0.0
    %1702 = vmatpush1.msra.mxu0 %v1605
    %1703 = vmatprep.subr.mxu0 0.0
    %1704 = vmatpush1.msra.mxu0 %v1606
    %1705 = vmatprep.subr.mxu0 0.0
    %1706 = vmatpush1.msra.mxu0 0.0
    %1707 = vmatprep.subr.mxu0 0.0
    %1708 = vmatpush1.msra.mxu0 0.0
    %1709 = vmatprep.subr.mxu0 0.0
    %1710 = vmatpush1.msra.mxu0 0.0
    %1711 = vmatprep.subr.mxu0 0.0
    %1712 = vmatpush1.msra.mxu0 0.0
    %1713 = vmatprep.subr.mxu0 0.0
    %1714 = vmatpush1.msra.mxu0 0.0
    %1715 = vmatprep.subr.mxu0 0.0
    %1716 = vmatpush1.msra.mxu0 0.0
    %1717 = vmatprep.subr.mxu0 0.0
    %1718 = vmatpush1.msra.mxu0 0.0
    %1719 = vmatprep.subr.mxu0 0.0
    %1720 = vmatpush1.msra.mxu0 0.0
    %1721 = vmatprep.subr.mxu0 0.0
    %1722 = vmatpush1.msra.mxu0 0.0
    %1723 = vmatprep.subr.mxu0 0.0
    %1724 = vmatpush1.msra.mxu0 0.0
    %1725 = vmatprep.subr.mxu0 0.0
    %1726 = vmatpush1.msra.mxu0 0.0
    %1727 = vmatprep.subr.mxu0 0.0
    %1728 = vmatpush1.msra.mxu0 0.0
    %1729 = vmatprep.subr.mxu0 0.0
    %1730 = vmatpush1.msra.mxu0 0.0
    %1731 = vmatprep.subr.mxu0 0.0
    %1732 = vmatpush1.msra.mxu0 0.0
    %1733 = vmatprep.subr.mxu0 0.0
    %1734 = vmatpush1.msra.mxu0 0.0
    %1735 = vmatprep.subr.mxu0 0.0
    %1736 = vmatpush1.msra.mxu0 0.0
    %1737 = vmatprep.subr.mxu0 0.0
    %1738 = vmatpush1.msra.mxu0 0.0
    %1739 = vmatprep.subr.mxu0 0.0
    %1740 = vmatpush1.msra.mxu0 0.0
    %1741 = vmatprep.subr.mxu0 0.0
    %1742 = vmatpush1.msra.mxu0 0.0
    %1743 = vmatprep.subr.mxu0 0.0
    %1744 = vmatpush1.msra.mxu0 0.0
    %1745 = vmatprep.subr.mxu0 0.0
    %1746 = vmatpush1.msra.mxu0 0.0
    %1747 = vmatprep.subr.mxu0 0.0
    %1748 = vmatpush1.msra.mxu0 0.0
    %1749 = vmatprep.subr.mxu0 0.0
    %1750 = vmatpush1.msra.mxu0 0.0
    %1751 = vmatprep.subr.mxu0 0.0
    %1752 = vmatpush1.msra.mxu0 0.0
    %1753 = vmatprep.subr.mxu0 0.0
    %1754 = vmatpush1.msra.mxu0 0.0
    %1755 = vmatprep.subr.mxu0 0.0
    %1756 = vmatpush1.msra.mxu0 0.0
    %1757 = vmatprep.subr.mxu0 0.0
    %1758 = vmatpush1.msra.mxu0 0.0
    %1759 = vmatprep.subr.mxu0 0.0
    %1760 = vmatpush1.msra.mxu0 0.0
    %1761 = vmatprep.subr.mxu0 0.0
    %1762 = vmatpush1.msra.mxu0 0.0
    %1763 = vmatprep.subr.mxu0 0.0
    %1764 = vmatpush1.msra.mxu0 0.0
    %1765 = vmatprep.mubr.f32.mxu0 0.0
    %1766 = vmatmul.mubr.f32.gmra.mrb[0].mxu0 %v529
    %v1767 = vpop.f32.mrb[0].mxu0
    %v1768 = vadd.f32 0.0, %v1767
    %v1769 = vpop.f32.mrb[0].mxu0
    %1770 = vmatprep.mubr.f32.mxu0 0.0
    %1771 = vmatmul.mubr.f32.gmra.mrb[0].mxu0 %v532
    %v1772 = vpop.f32.mrb[0].mxu0
    %v1773 = vadd.f32 0.0, %v1772
    %v1774 = vpop.f32.mrb[0].mxu0
    %1775 = vmatprep.mubr.f32.mxu0 0.0
    %1776 = vmatmul.mubr.f32.gmra.mrb[0].mxu0 %v535
    %v1777 = vpop.f32.mrb[0].mxu0
    %v1778 = vadd.f32 0.0, %v1777
    %v1779 = vpop.f32.mrb[0].mxu0
    %1780 = vmatprep.mubr.f32.mxu0 0.0
    %1781 = vmatmul.mubr.f32.gmra.mrb[0].mxu0 %v538
    %v1782 = vpop.f32.mrb[0].mxu0
    %v1783 = vadd.f32 0.0, %v1782
    %v1784 = vpop.f32.mrb[0].mxu0
    %1785 = vmatprep.mubr.f32.mxu0 0.0
    %1786 = vmatmul.mubr.f32.gmra.mrb[0].mxu0 %v541
    %v1787 = vpop.f32.mrb[0].mxu0
    %v1788 = vadd.f32 0.0, %v1787
    %v1789 = vpop.f32.mrb[0].mxu0
    %1790 = vmatprep.mubr.f32.mxu0 0.0
    %1791 = vmatmul.mubr.f32.gmra.mrb[0].mxu0 %v544
    %v1792 = vpop.f32.mrb[0].mxu0
    %v1793 = vadd.f32 0.0, %v1792
    %v1794 = vpop.f32.mrb[0].mxu0
    %1795 = vmatprep.mubr.f32.mxu0 0.0
    %1796 = vmatmul.mubr.f32.gmra.mrb[0].mxu0 %v547
    %v1797 = vpop.f32.mrb[0].mxu0
    %v1798 = vadd.f32 0.0, %v1797
    %v1799 = vpop.f32.mrb[0].mxu0
    %1800 = vmatprep.mubr.f32.mxu0 0.0
    %1801 = vmatmul.mubr.f32.gmra.mrb[0].mxu0 %v550
    %v1802 = vpop.f32.mrb[0].mxu0
    %v1803 = vadd.f32 0.0, %v1802
    %v1804 = vpop.f32.mrb[0].mxu0
    %1805 = vdwg.mxu0
    %s1806 = scalar_lea.vmem %s21, 32
    %v1807 = vld [vmem:[%s1806] sm:$0xff]
    %v1808 = vld [vmem:[%s1806 + $0x8] sm:$0xff]
    %v1809 = vld [vmem:[%s1806 + $0x10] sm:$0xff]
    %v1810 = vld [vmem:[%s1806 + $0x18] sm:$0xff]
    %s1811 = scalar_lea.vmem [#allocation12], 1
    %v1812 = vld [vmem:[%s1811] sm:$0x1]
    %v1814 = vlaneseq
    %v1815 = vshrl.u32 %v1814, 7
    %v1816 = vsub.s32 0, %v1815
    %v1817 = vrot.slane %v1812, %v1816
    %v1820 = vsel %vm391, %v1768, 0
    %v1823 = vsel %vm391, %v1773, 0
    %v1826 = vsel %vm391, %v1778, 0
    %v1829 = vsel %vm391, %v1783, 0
    %v1832 = vsel %vm391, %v1788, 0
    %v1835 = vsel %vm391, %v1793, 0
    %v1838 = vsel %vm391, %v1798, 0
    %v1841 = vsel %vm391, %v1803, 0
    %1843 = vmatprep.subr.mxu0 0.0
    %1844 = vmatpush1.msra.mxu0 %v1807
    %1845 = vmatprep.subr.mxu0 0.0
    %1846 = vmatpush1.msra.mxu0 %v1808
    %1847 = vmatprep.subr.mxu0 0.0
    %1848 = vmatpush1.msra.mxu0 %v1809
    %1849 = vmatprep.subr.mxu0 0.0
    %1850 = vmatpush1.msra.mxu0 %v1810
    %1851 = vmatprep.subr.mxu0 0.0
    %1852 = vmatpush1.msra.mxu0 0.0
    %1853 = vmatprep.subr.mxu0 0.0
    %1854 = vmatpush1.msra.mxu0 0.0
    %1855 = vmatprep.subr.mxu0 0.0
    %1856 = vmatpush1.msra.mxu0 0.0
    %1857 = vmatprep.subr.mxu0 0.0
    %1858 = vmatpush1.msra.mxu0 0.0
    %1859 = vmatprep.subr.mxu0 0.0
    %1860 = vmatpush1.msra.mxu0 0.0
    %1861 = vmatprep.subr.mxu0 0.0
    %1862 = vmatpush1.msra.mxu0 0.0
    %1863 = vmatprep.subr.mxu0 0.0
    %1864 = vmatpush1.msra.mxu0 0.0
    %1865 = vmatprep.subr.mxu0 0.0
    %1866 = vmatpush1.msra.mxu0 0.0
    %1867 = vmatprep.subr.mxu0 0.0
    %1868 = vmatpush1.msra.mxu0 0.0
    %1869 = vmatprep.subr.mxu0 0.0
    %1870 = vmatpush1.msra.mxu0 0.0
    %1871 = vmatprep.subr.mxu0 0.0
    %1872 = vmatpush1.msra.mxu0 0.0
    %1873 = vmatprep.subr.mxu0 0.0
    %1874 = vmatpush1.msra.mxu0 0.0
    %1875 = vmatprep.subr.mxu0 0.0
    %1876 = vmatpush1.msra.mxu0 0.0
    %1877 = vmatprep.subr.mxu0 0.0
    %1878 = vmatpush1.msra.mxu0 0.0
    %1879 = vmatprep.subr.mxu0 0.0
    %1880 = vmatpush1.msra.mxu0 0.0
    %1881 = vmatprep.subr.mxu0 0.0
    %1882 = vmatpush1.msra.mxu0 0.0
    %1883 = vmatprep.subr.mxu0 0.0
    %1884 = vmatpush1.msra.mxu0 0.0
    %1885 = vmatprep.subr.mxu0 0.0
    %1886 = vmatpush1.msra.mxu0 0.0
    %1887 = vmatprep.subr.mxu0 0.0
    %1888 = vmatpush1.msra.mxu0 0.0
    %1889 = vmatprep.subr.mxu0 0.0
    %1890 = vmatpush1.msra.mxu0 0.0
    %1891 = vmatprep.subr.mxu0 0.0
    %1892 = vmatpush1.msra.mxu0 0.0
    %1893 = vmatprep.subr.mxu0 0.0
    %1894 = vmatpush1.msra.mxu0 0.0
    %1895 = vmatprep.subr.mxu0 0.0
    %1896 = vmatpush1.msra.mxu0 0.0
    %1897 = vmatprep.subr.mxu0 0.0
    %1898 = vmatpush1.msra.mxu0 0.0
    %1899 = vmatprep.subr.mxu0 0.0
    %1900 = vmatpush1.msra.mxu0 0.0
    %1901 = vmatprep.subr.mxu0 0.0
    %1902 = vmatpush1.msra.mxu0 0.0
    %1903 = vmatprep.subr.mxu0 0.0
    %1904 = vmatpush1.msra.mxu0 0.0
    %1905 = vmatprep.subr.mxu0 0.0
    %1906 = vmatpush1.msra.mxu0 0.0
    %1907 = vmatprep.mubr.f32.mxu0 0.0
    %1908 = vmatmul.mubr.f32.gmra.mrb[0].mxu0 %v1820
    %v1909 = vpop.f32.mrb[0].mxu0
    %v1910 = vadd.f32 %v1817, %v1909
    %v1911 = vpop.f32.mrb[0].mxu0
    %1912 = vmatprep.mubr.f32.mxu0 0.0
    %1913 = vmatmul.mubr.f32.gmra.mrb[0].mxu0 %v1823
    %v1914 = vpop.f32.mrb[0].mxu0
    %v1915 = vadd.f32 %v1817, %v1914
    %v1916 = vpop.f32.mrb[0].mxu0
    %1917 = vmatprep.mubr.f32.mxu0 0.0
    %1918 = vmatmul.mubr.f32.gmra.mrb[0].mxu0 %v1826
    %v1919 = vpop.f32.mrb[0].mxu0
    %v1920 = vadd.f32 %v1817, %v1919
    %v1921 = vpop.f32.mrb[0].mxu0
    %1922 = vmatprep.mubr.f32.mxu0 0.0
    %1923 = vmatmul.mubr.f32.gmra.mrb[0].mxu0 %v1829
    %v1924 = vpop.f32.mrb[0].mxu0
    %v1925 = vadd.f32 %v1817, %v1924
    %v1926 = vpop.f32.mrb[0].mxu0
    %1927 = vmatprep.mubr.f32.mxu0 0.0
    %1928 = vmatmul.mubr.f32.gmra.mrb[0].mxu0 %v1832
    %v1929 = vpop.f32.mrb[0].mxu0
    %v1930 = vadd.f32 %v1817, %v1929
    %v1931 = vpop.f32.mrb[0].mxu0
    %1932 = vmatprep.mubr.f32.mxu0 0.0
    %1933 = vmatmul.mubr.f32.gmra.mrb[0].mxu0 %v1835
    %v1934 = vpop.f32.mrb[0].mxu0
    %v1935 = vadd.f32 %v1817, %v1934
    %v1936 = vpop.f32.mrb[0].mxu0
    %1937 = vmatprep.mubr.f32.mxu0 0.0
    %1938 = vmatmul.mubr.f32.gmra.mrb[0].mxu0 %v1838
    %v1939 = vpop.f32.mrb[0].mxu0
    %v1940 = vadd.f32 %v1817, %v1939
    %v1941 = vpop.f32.mrb[0].mxu0
    %1942 = vmatprep.mubr.f32.mxu0 0.0
    %1943 = vmatmul.mubr.f32.gmra.mrb[0].mxu0 %v1841
    %v1944 = vpop.f32.mrb[0].mxu0
    %v1945 = vadd.f32 %v1817, %v1944
    %v1946 = vpop.f32.mrb[0].mxu0
    %1947 = vdwg.mxu0
    %v1948 = vmul.f32 %v1910, %v363
    %v1949 = vmul.f32 %v1915, %v364
    %v1950 = vmul.f32 %v1920, %v365
    %v1951 = vmul.f32 %v1925, %v366
    %v1952 = vmul.f32 %v1930, %v367
    %v1953 = vmul.f32 %v1935, %v368
    %v1954 = vmul.f32 %v1940, %v369
    %v1955 = vmul.f32 %v1945, %v370
    %s1956 = scalar_lea.vmem %s25, 32
    %v1957 = vld [vmem:[%s1956] sm:$0xff]
    %v1958 = vld [vmem:[%s1956 + $0x8] sm:$0xff]
    %v1959 = vld [vmem:[%s1956 + $0x10] sm:$0xff]
    %v1960 = vld [vmem:[%s1956 + $0x18] sm:$0xff]
    %s1961 = scalar_lea.vmem [#allocation14], 1
    %v1962 = vld [vmem:[%s1961] sm:$0x1]
    %v1964 = vlaneseq
    %v1965 = vshrl.u32 %v1964, 7
    %v1966 = vsub.s32 0, %v1965
    %v1967 = vrot.slane %v1962, %v1966
    %1969 = vmatprep.subr.mxu0 0.0
    %1970 = vmatpush1.msra.mxu0 %v1957
    %1971 = vmatprep.subr.mxu0 0.0
    %1972 = vmatpush1.msra.mxu0 %v1958
    %1973 = vmatprep.subr.mxu0 0.0
    %1974 = vmatpush1.msra.mxu0 %v1959
    %1975 = vmatprep.subr.mxu0 0.0
    %1976 = vmatpush1.msra.mxu0 %v1960
    %1977 = vmatprep.subr.mxu0 0.0
    %1978 = vmatpush1.msra.mxu0 0.0
    %1979 = vmatprep.subr.mxu0 0.0
    %1980 = vmatpush1.msra.mxu0 0.0
    %1981 = vmatprep.subr.mxu0 0.0
    %1982 = vmatpush1.msra.mxu0 0.0
    %1983 = vmatprep.subr.mxu0 0.0
    %1984 = vmatpush1.msra.mxu0 0.0
    %1985 = vmatprep.subr.mxu0 0.0
    %1986 = vmatpush1.msra.mxu0 0.0
    %1987 = vmatprep.subr.mxu0 0.0
    %1988 = vmatpush1.msra.mxu0 0.0
    %1989 = vmatprep.subr.mxu0 0.0
    %1990 = vmatpush1.msra.mxu0 0.0
    %1991 = vmatprep.subr.mxu0 0.0
    %1992 = vmatpush1.msra.mxu0 0.0
    %1993 = vmatprep.subr.mxu0 0.0
    %1994 = vmatpush1.msra.mxu0 0.0
    %1995 = vmatprep.subr.mxu0 0.0
    %1996 = vmatpush1.msra.mxu0 0.0
    %1997 = vmatprep.subr.mxu0 0.0
    %1998 = vmatpush1.msra.mxu0 0.0
    %1999 = vmatprep.subr.mxu0 0.0
    %2000 = vmatpush1.msra.mxu0 0.0
    %2001 = vmatprep.subr.mxu0 0.0
    %2002 = vmatpush1.msra.mxu0 0.0
    %2003 = vmatprep.subr.mxu0 0.0
    %2004 = vmatpush1.msra.mxu0 0.0
    %2005 = vmatprep.subr.mxu0 0.0
    %2006 = vmatpush1.msra.mxu0 0.0
    %2007 = vmatprep.subr.mxu0 0.0
    %2008 = vmatpush1.msra.mxu0 0.0
    %2009 = vmatprep.subr.mxu0 0.0
    %2010 = vmatpush1.msra.mxu0 0.0
    %2011 = vmatprep.subr.mxu0 0.0
    %2012 = vmatpush1.msra.mxu0 0.0
    %2013 = vmatprep.subr.mxu0 0.0
    %2014 = vmatpush1.msra.mxu0 0.0
    %2015 = vmatprep.subr.mxu0 0.0
    %2016 = vmatpush1.msra.mxu0 0.0
    %2017 = vmatprep.subr.mxu0 0.0
    %2018 = vmatpush1.msra.mxu0 0.0
    %2019 = vmatprep.subr.mxu0 0.0
    %2020 = vmatpush1.msra.mxu0 0.0
    %2021 = vmatprep.subr.mxu0 0.0
    %2022 = vmatpush1.msra.mxu0 0.0
    %2023 = vmatprep.subr.mxu0 0.0
    %2024 = vmatpush1.msra.mxu0 0.0
    %2025 = vmatprep.subr.mxu0 0.0
    %2026 = vmatpush1.msra.mxu0 0.0
    %2027 = vmatprep.subr.mxu0 0.0
    %2028 = vmatpush1.msra.mxu0 0.0
    %2029 = vmatprep.subr.mxu0 0.0
    %2030 = vmatpush1.msra.mxu0 0.0
    %2031 = vmatprep.subr.mxu0 0.0
    %2032 = vmatpush1.msra.mxu0 0.0
    %2033 = vmatprep.mubr.f32.mxu0 0.0
    %2034 = vmatmul.mubr.f32.gmra.mrb[0].mxu0 %v1820
    %v2035 = vpop.f32.mrb[0].mxu0
    %v2036 = vadd.f32 %v1967, %v2035
    %v2037 = vpop.f32.mrb[0].mxu0
    %2038 = vmatprep.mubr.f32.mxu0 0.0
    %2039 = vmatmul.mubr.f32.gmra.mrb[0].mxu0 %v1823
    %v2040 = vpop.f32.mrb[0].mxu0
    %v2041 = vadd.f32 %v1967, %v2040
    %v2042 = vpop.f32.mrb[0].mxu0
    %2043 = vmatprep.mubr.f32.mxu0 0.0
    %2044 = vmatmul.mubr.f32.gmra.mrb[0].mxu0 %v1826
    %v2045 = vpop.f32.mrb[0].mxu0
    %v2046 = vadd.f32 %v1967, %v2045
    %v2047 = vpop.f32.mrb[0].mxu0
    %2048 = vmatprep.mubr.f32.mxu0 0.0
    %2049 = vmatmul.mubr.f32.gmra.mrb[0].mxu0 %v1829
    %v2050 = vpop.f32.mrb[0].mxu0
    %v2051 = vadd.f32 %v1967, %v2050
    %v2052 = vpop.f32.mrb[0].mxu0
    %2053 = vmatprep.mubr.f32.mxu0 0.0
    %2054 = vmatmul.mubr.f32.gmra.mrb[0].mxu0 %v1832
    %v2055 = vpop.f32.mrb[0].mxu0
    %v2056 = vadd.f32 %v1967, %v2055
    %v2057 = vpop.f32.mrb[0].mxu0
    %2058 = vmatprep.mubr.f32.mxu0 0.0
    %2059 = vmatmul.mubr.f32.gmra.mrb[0].mxu0 %v1835
    %v2060 = vpop.f32.mrb[0].mxu0
    %v2061 = vadd.f32 %v1967, %v2060
    %v2062 = vpop.f32.mrb[0].mxu0
    %2063 = vmatprep.mubr.f32.mxu0 0.0
    %2064 = vmatmul.mubr.f32.gmra.mrb[0].mxu0 %v1838
    %v2065 = vpop.f32.mrb[0].mxu0
    %v2066 = vadd.f32 %v1967, %v2065
    %v2067 = vpop.f32.mrb[0].mxu0
    %2068 = vmatprep.mubr.f32.mxu0 0.0
    %2069 = vmatmul.mubr.f32.gmra.mrb[0].mxu0 %v1841
    %v2070 = vpop.f32.mrb[0].mxu0
    %v2071 = vadd.f32 %v1967, %v2070
    %v2072 = vpop.f32.mrb[0].mxu0
    %2073 = vdwg.mxu0
    %v2074 = vmul.f32 %v2036, %v363
    %v2075 = vmul.f32 %v2041, %v364
    %v2076 = vmul.f32 %v2046, %v365
    %v2077 = vmul.f32 %v2051, %v366
    %v2078 = vmul.f32 %v2056, %v367
    %v2079 = vmul.f32 %v2061, %v368
    %v2080 = vmul.f32 %v2066, %v369
    %v2081 = vmul.f32 %v2071, %v370
    %v2083 = vsel %vm391, %v1693, 0
    %v2086 = vsel %vm391, %v1698, 0
    %v2089 = vsel %vm391, %v1948, 0
    %v2092 = vsel %vm391, %v1949, 0
    %v2095 = vsel %vm391, %v1950, 0
    %v2098 = vsel %vm391, %v1951, 0
    %v2101 = vsel %vm391, %v1952, 0
    %v2104 = vsel %vm391, %v1953, 0
    %v2107 = vsel %vm391, %v1954, 0
    %v2110 = vsel %vm391, %v1955, 0
    %2112 = vmatprep.subr.mxu0 0.0
    %2113 = vmatpush1.xpose.msra.mxu0 %v2089
    %2114 = vmatprep.subr.mxu0 0.0
    %2115 = vmatpush1.xpose.msra.mxu0 %v2092
    %2116 = vmatprep.subr.mxu0 0.0
    %2117 = vmatpush1.xpose.msra.mxu0 %v2095
    %2118 = vmatprep.subr.mxu0 0.0
    %2119 = vmatpush1.xpose.msra.mxu0 %v2098
    %2120 = vmatprep.subr.mxu0 0.0
    %2121 = vmatpush1.xpose.msra.mxu0 %v2101
    %2122 = vmatprep.subr.mxu0 0.0
    %2123 = vmatpush1.xpose.msra.mxu0 %v2104
    %2124 = vmatprep.subr.mxu0 0.0
    %2125 = vmatpush1.xpose.msra.mxu0 %v2107
    %2126 = vmatprep.subr.mxu0 0.0
    %2127 = vmatpush1.xpose.msra.mxu0 %v2110
    %2128 = vmatprep.subr.mxu0 0.0
    %2129 = vmatpush1.xpose.msra.mxu0 0.0
    %2130 = vmatprep.subr.mxu0 0.0
    %2131 = vmatpush1.xpose.msra.mxu0 0.0
    %2132 = vmatprep.subr.mxu0 0.0
    %2133 = vmatpush1.xpose.msra.mxu0 0.0
    %2134 = vmatprep.subr.mxu0 0.0
    %2135 = vmatpush1.xpose.msra.mxu0 0.0
    %2136 = vmatprep.subr.mxu0 0.0
    %2137 = vmatpush1.xpose.msra.mxu0 0.0
    %2138 = vmatprep.subr.mxu0 0.0
    %2139 = vmatpush1.xpose.msra.mxu0 0.0
    %2140 = vmatprep.subr.mxu0 0.0
    %2141 = vmatpush1.xpose.msra.mxu0 0.0
    %2142 = vmatprep.subr.mxu0 0.0
    %2143 = vmatpush1.xpose.msra.mxu0 0.0
    %2144 = vmatprep.subr.mxu0 0.0
    %2145 = vmatpush1.xpose.msra.mxu0 0.0
    %2146 = vmatprep.subr.mxu0 0.0
    %2147 = vmatpush1.xpose.msra.mxu0 0.0
    %2148 = vmatprep.subr.mxu0 0.0
    %2149 = vmatpush1.xpose.msra.mxu0 0.0
    %2150 = vmatprep.subr.mxu0 0.0
    %2151 = vmatpush1.xpose.msra.mxu0 0.0
    %2152 = vmatprep.subr.mxu0 0.0
    %2153 = vmatpush1.xpose.msra.mxu0 0.0
    %2154 = vmatprep.subr.mxu0 0.0
    %2155 = vmatpush1.xpose.msra.mxu0 0.0
    %2156 = vmatprep.subr.mxu0 0.0
    %2157 = vmatpush1.xpose.msra.mxu0 0.0
    %2158 = vmatprep.subr.mxu0 0.0
    %2159 = vmatpush1.xpose.msra.mxu0 0.0
    %2160 = vmatprep.subr.mxu0 0.0
    %2161 = vmatpush1.xpose.msra.mxu0 0.0
    %2162 = vmatprep.subr.mxu0 0.0
    %2163 = vmatpush1.xpose.msra.mxu0 0.0
    %2164 = vmatprep.subr.mxu0 0.0
    %2165 = vmatpush1.xpose.msra.mxu0 0.0
    %2166 = vmatprep.subr.mxu0 0.0
    %2167 = vmatpush1.xpose.msra.mxu0 0.0
    %2168 = vmatprep.subr.mxu0 0.0
    %2169 = vmatpush1.xpose.msra.mxu0 0.0
    %2170 = vmatprep.subr.mxu0 0.0
    %2171 = vmatpush1.xpose.msra.mxu0 0.0
    %2172 = vmatprep.subr.mxu0 0.0
    %2173 = vmatpush1.xpose.msra.mxu0 0.0
    %2174 = vmatprep.subr.mxu0 0.0
    %2175 = vmatpush1.xpose.msra.mxu0 0.0
    %2176 = vmatprep.mubr.f32.mxu0 0.0
    %2177 = vmatmul.mubr.f32.gmra.mrb[0].mxu0 %v2083
    %v2178 = vpop.f32.mrb[0].mxu0
    %v2179 = vadd.f32 0.0, %v2178
    %v2180 = vpop.f32.mrb[0].mxu0
    %2181 = vmatprep.mubr.f32.mxu0 0.0
    %2182 = vmatmul.mubr.f32.gmra.mrb[0].mxu0 %v2086
    %v2183 = vpop.f32.mrb[0].mxu0
    %v2184 = vadd.f32 0.0, %v2183
    %v2185 = vpop.f32.mrb[0].mxu0
    %2186 = vdwg.mxu0
    %v2187 = vmul.f32 %v2179, 0.35355338
    %v2188 = vmul.f32 %v2184, 0.35355338
    %v2189 = vadd.f32 %v2187, %v361
    %v2190 = vadd.f32 %v2188, %v362
    %v2191 = vsel %vm1038, %v2189, -inf
    %2192 = vmax.xlane.f32.xlu0 %v2191
    %v2193 = vpop.xlane.xlu0 %2192
    %v2194 = vsel %vm1038, %v2190, -inf
    %2195 = vmax.xlane.f32.xlu0 %v2194
    %v2196 = vpop.xlane.xlu0 %2195
    %v2197 = vsub.f32 %v2189, %v2193
    %v2198 = vsub.f32 %v2190, %v2196
    %v2199 = vmul.f32 %v2197, 1.442695
    %v2200 = vpow.pop %v2199
    %v2201 = vmul.f32 %v2198, 1.442695
    %v2202 = vpow.pop %v2201
    %v2204 = vsel %vm1038, %v2200, 0
    %v2207 = vsel %vm1038, %v2202, 0
    %2209 = vmatprep.subr.mxu0 0.0
    %2210 = vmatpush1.msra.mxu0 %v371
    %2211 = vmatprep.subr.mxu0 0.0
    %2212 = vmatpush1.msra.mxu0 %v372
    %2213 = vmatprep.subr.mxu0 0.0
    %2214 = vmatpush1.msra.mxu0 %v373
    %2215 = vmatprep.subr.mxu0 0.0
    %2216 = vmatpush1.msra.mxu0 %v374
    %2217 = vmatprep.subr.mxu0 0.0
    %2218 = vmatpush1.msra.mxu0 %v375
    %2219 = vmatprep.subr.mxu0 0.0
    %2220 = vmatpush1.msra.mxu0 %v376
    %2221 = vmatprep.subr.mxu0 0.0
    %2222 = vmatpush1.msra.mxu0 %v377
    %2223 = vmatprep.subr.mxu0 0.0
    %2224 = vmatpush1.msra.mxu0 %v378
    %2225 = vmatprep.subr.mxu0 0.0
    %2226 = vmatpush1.msra.mxu0 0.0
    %2227 = vmatprep.subr.mxu0 0.0
    %2228 = vmatpush1.msra.mxu0 0.0
    %2229 = vmatprep.subr.mxu0 0.0
    %2230 = vmatpush1.msra.mxu0 0.0
    %2231 = vmatprep.subr.mxu0 0.0
    %2232 = vmatpush1.msra.mxu0 0.0
    %2233 = vmatprep.subr.mxu0 0.0
    %2234 = vmatpush1.msra.mxu0 0.0
    %2235 = vmatprep.subr.mxu0 0.0
    %2236 = vmatpush1.msra.mxu0 0.0
    %2237 = vmatprep.subr.mxu0 0.0
    %2238 = vmatpush1.msra.mxu0 0.0
    %2239 = vmatprep.subr.mxu0 0.0
    %2240 = vmatpush1.msra.mxu0 0.0
    %2241 = vmatprep.subr.mxu0 0.0
    %2242 = vmatpush1.msra.mxu0 0.0
    %2243 = vmatprep.subr.mxu0 0.0
    %2244 = vmatpush1.msra.mxu0 0.0
    %2245 = vmatprep.subr.mxu0 0.0
    %2246 = vmatpush1.msra.mxu0 0.0
    %2247 = vmatprep.subr.mxu0 0.0
    %2248 = vmatpush1.msra.mxu0 0.0
    %2249 = vmatprep.subr.mxu0 0.0
    %2250 = vmatpush1.msra.mxu0 0.0
    %2251 = vmatprep.subr.mxu0 0.0
    %2252 = vmatpush1.msra.mxu0 0.0
    %2253 = vmatprep.subr.mxu0 0.0
    %2254 = vmatpush1.msra.mxu0 0.0
    %2255 = vmatprep.subr.mxu0 0.0
    %2256 = vmatpush1.msra.mxu0 0.0
    %2257 = vmatprep.subr.mxu0 0.0
    %2258 = vmatpush1.msra.mxu0 0.0
    %2259 = vmatprep.subr.mxu0 0.0
    %2260 = vmatpush1.msra.mxu0 0.0
    %2261 = vmatprep.subr.mxu0 0.0
    %2262 = vmatpush1.msra.mxu0 0.0
    %2263 = vmatprep.subr.mxu0 0.0
    %2264 = vmatpush1.msra.mxu0 0.0
    %2265 = vmatprep.subr.mxu0 0.0
    %2266 = vmatpush1.msra.mxu0 0.0
    %2267 = vmatprep.subr.mxu0 0.0
    %2268 = vmatpush1.msra.mxu0 0.0
    %2269 = vmatprep.subr.mxu0 0.0
    %2270 = vmatpush1.msra.mxu0 0.0
    %2271 = vmatprep.subr.mxu0 0.0
    %2272 = vmatpush1.msra.mxu0 0.0
    %2273 = vmatprep.mubr.f32.mxu0 0.0
    %2274 = vmatmul.mubr.f32.gmra.mrb[0].mxu0 %v2204
    %v2275 = vpop.f32.mrb[0].mxu0
    %v2276 = vadd.f32 0.0, %v2275
    %v2277 = vpop.f32.mrb[0].mxu0
    %2278 = vmatprep.mubr.f32.mxu0 0.0
    %2279 = vmatmul.mubr.f32.gmra.mrb[0].mxu0 %v2207
    %v2280 = vpop.f32.mrb[0].mxu0
    %v2281 = vadd.f32 0.0, %v2280
    %v2282 = vpop.f32.mrb[0].mxu0
    %2283 = vdwg.mxu0
    %v2284 = vrcp.pop %v2276
    %v2285 = vrcp.pop %v2281
    %v2286 = vmul.f32 %v2200, %v2284
    %v2287 = vmul.f32 %v2202, %v2285
    %v2289 = vsel %vm1038, %v2286, 0
    %v2292 = vsel %vm1038, %v2287, 0
    %2294 = vmatprep.subr.mxu0 0.0
    %2295 = vmatpush1.msra.mxu0 %v2074
    %2296 = vmatprep.subr.mxu0 0.0
    %2297 = vmatpush1.msra.mxu0 %v2075
    %2298 = vmatprep.subr.mxu0 0.0
    %2299 = vmatpush1.msra.mxu0 %v2076
    %2300 = vmatprep.subr.mxu0 0.0
    %2301 = vmatpush1.msra.mxu0 %v2077
    %2302 = vmatprep.subr.mxu0 0.0
    %2303 = vmatpush1.msra.mxu0 %v2078
    %2304 = vmatprep.subr.mxu0 0.0
    %2305 = vmatpush1.msra.mxu0 %v2079
    %2306 = vmatprep.subr.mxu0 0.0
    %2307 = vmatpush1.msra.mxu0 %v2080
    %2308 = vmatprep.subr.mxu0 0.0
    %2309 = vmatpush1.msra.mxu0 %v2081
    %2310 = vmatprep.subr.mxu0 0.0
    %2311 = vmatpush1.msra.mxu0 0.0
    %2312 = vmatprep.subr.mxu0 0.0
    %2313 = vmatpush1.msra.mxu0 0.0
    %2314 = vmatprep.subr.mxu0 0.0
    %2315 = vmatpush1.msra.mxu0 0.0
    %2316 = vmatprep.subr.mxu0 0.0
    %2317 = vmatpush1.msra.mxu0 0.0
    %2318 = vmatprep.subr.mxu0 0.0
    %2319 = vmatpush1.msra.mxu0 0.0
    %2320 = vmatprep.subr.mxu0 0.0
    %2321 = vmatpush1.msra.mxu0 0.0
    %2322 = vmatprep.subr.mxu0 0.0
    %2323 = vmatpush1.msra.mxu0 0.0
    %2324 = vmatprep.subr.mxu0 0.0
    %2325 = vmatpush1.msra.mxu0 0.0
    %2326 = vmatprep.subr.mxu0 0.0
    %2327 = vmatpush1.msra.mxu0 0.0
    %2328 = vmatprep.subr.mxu0 0.0
    %2329 = vmatpush1.msra.mxu0 0.0
    %2330 = vmatprep.subr.mxu0 0.0
    %2331 = vmatpush1.msra.mxu0 0.0
    %2332 = vmatprep.subr.mxu0 0.0
    %2333 = vmatpush1.msra.mxu0 0.0
    %2334 = vmatprep.subr.mxu0 0.0
    %2335 = vmatpush1.msra.mxu0 0.0
    %2336 = vmatprep.subr.mxu0 0.0
    %2337 = vmatpush1.msra.mxu0 0.0
    %2338 = vmatprep.subr.mxu0 0.0
    %2339 = vmatpush1.msra.mxu0 0.0
    %2340 = vmatprep.subr.mxu0 0.0
    %2341 = vmatpush1.msra.mxu0 0.0
    %2342 = vmatprep.subr.mxu0 0.0
    %2343 = vmatpush1.msra.mxu0 0.0
    %2344 = vmatprep.subr.mxu0 0.0
    %2345 = vmatpush1.msra.mxu0 0.0
    %2346 = vmatprep.subr.mxu0 0.0
    %2347 = vmatpush1.msra.mxu0 0.0
    %2348 = vmatprep.subr.mxu0 0.0
    %2349 = vmatpush1.msra.mxu0 0.0
    %2350 = vmatprep.subr.mxu0 0.0
    %2351 = vmatpush1.msra.mxu0 0.0
    %2352 = vmatprep.subr.mxu0 0.0
    %2353 = vmatpush1.msra.mxu0 0.0
    %2354 = vmatprep.subr.mxu0 0.0
    %2355 = vmatpush1.msra.mxu0 0.0
    %2356 = vmatprep.subr.mxu0 0.0
    %2357 = vmatpush1.msra.mxu0 0.0
    %2358 = vmatprep.mubr.f32.mxu0 0.0
    %2359 = vmatmul.mubr.f32.gmra.mrb[0].mxu0 %v2289
    %v2360 = vpop.f32.mrb[0].mxu0
    %v2361 = vadd.f32 0.0, %v2360
    %v2362 = vpop.f32.mrb[0].mxu0
    %2363 = vmatprep.mubr.f32.mxu0 0.0
    %2364 = vmatmul.mubr.f32.gmra.mrb[0].mxu0 %v2292
    %v2365 = vpop.f32.mrb[0].mxu0
    %v2366 = vadd.f32 0.0, %v2365
    %v2367 = vpop.f32.mrb[0].mxu0
    %2368 = vdwg.mxu0
    %s2369 = scalar_lea.vmem %s29, 32
    %v2370 = vld [vmem:[%s2369] sm:$0xff]
    %v2371 = vld [vmem:[%s2369 + $0x8] sm:$0xff]
    %v2372 = vld [vmem:[%s2369 + $0x10] sm:$0xff]
    %v2373 = vld [vmem:[%s2369 + $0x18] sm:$0xff]
    %s2374 = scalar_lea.vmem [#allocation15], 1
    %v2375 = vld [vmem:[%s2374] sm:$0x1]
    %v2377 = vlaneseq
    %v2378 = vshrl.u32 %v2377, 7
    %v2379 = vsub.s32 0, %v2378
    %v2380 = vrot.slane %v2375, %v2379
    %v2383 = vsel %vm391, %v2361, 0
    %v2386 = vsel %vm391, %v2366, 0
    %2388 = vmatprep.subr.mxu0 0.0
    %2389 = vmatpush1.msra.mxu0 %v2370
    %2390 = vmatprep.subr.mxu0 0.0
    %2391 = vmatpush1.msra.mxu0 %v2371
    %2392 = vmatprep.subr.mxu0 0.0
    %2393 = vmatpush1.msra.mxu0 %v2372
    %2394 = vmatprep.subr.mxu0 0.0
    %2395 = vmatpush1.msra.mxu0 %v2373
    %2396 = vmatprep.subr.mxu0 0.0
    %2397 = vmatpush1.msra.mxu0 0.0
    %2398 = vmatprep.subr.mxu0 0.0
    %2399 = vmatpush1.msra.mxu0 0.0
    %2400 = vmatprep.subr.mxu0 0.0
    %2401 = vmatpush1.msra.mxu0 0.0
    %2402 = vmatprep.subr.mxu0 0.0
    %2403 = vmatpush1.msra.mxu0 0.0
    %2404 = vmatprep.subr.mxu0 0.0
    %2405 = vmatpush1.msra.mxu0 0.0
    %2406 = vmatprep.subr.mxu0 0.0
    %2407 = vmatpush1.msra.mxu0 0.0
    %2408 = vmatprep.subr.mxu0 0.0
    %2409 = vmatpush1.msra.mxu0 0.0
    %2410 = vmatprep.subr.mxu0 0.0
    %2411 = vmatpush1.msra.mxu0 0.0
    %2412 = vmatprep.subr.mxu0 0.0
    %2413 = vmatpush1.msra.mxu0 0.0
    %2414 = vmatprep.subr.mxu0 0.0
    %2415 = vmatpush1.msra.mxu0 0.0
    %2416 = vmatprep.subr.mxu0 0.0
    %2417 = vmatpush1.msra.mxu0 0.0
    %2418 = vmatprep.subr.mxu0 0.0
    %2419 = vmatpush1.msra.mxu0 0.0
    %2420 = vmatprep.subr.mxu0 0.0
    %2421 = vmatpush1.msra.mxu0 0.0
    %2422 = vmatprep.subr.mxu0 0.0
    %2423 = vmatpush1.msra.mxu0 0.0
    %2424 = vmatprep.subr.mxu0 0.0
    %2425 = vmatpush1.msra.mxu0 0.0
    %2426 = vmatprep.subr.mxu0 0.0
    %2427 = vmatpush1.msra.mxu0 0.0
    %2428 = vmatprep.subr.mxu0 0.0
    %2429 = vmatpush1.msra.mxu0 0.0
    %2430 = vmatprep.subr.mxu0 0.0
    %2431 = vmatpush1.msra.mxu0 0.0
    %2432 = vmatprep.subr.mxu0 0.0
    %2433 = vmatpush1.msra.mxu0 0.0
    %2434 = vmatprep.subr.mxu0 0.0
    %2435 = vmatpush1.msra.mxu0 0.0
    %2436 = vmatprep.subr.mxu0 0.0
    %2437 = vmatpush1.msra.mxu0 0.0
    %2438 = vmatprep.subr.mxu0 0.0
    %2439 = vmatpush1.msra.mxu0 0.0
    %2440 = vmatprep.subr.mxu0 0.0
    %2441 = vmatpush1.msra.mxu0 0.0
    %2442 = vmatprep.subr.mxu0 0.0
    %2443 = vmatpush1.msra.mxu0 0.0
    %2444 = vmatprep.subr.mxu0 0.0
    %2445 = vmatpush1.msra.mxu0 0.0
    %2446 = vmatprep.subr.mxu0 0.0
    %2447 = vmatpush1.msra.mxu0 0.0
    %2448 = vmatprep.subr.mxu0 0.0
    %2449 = vmatpush1.msra.mxu0 0.0
    %2450 = vmatprep.subr.mxu0 0.0
    %2451 = vmatpush1.msra.mxu0 0.0
    %2452 = vmatprep.mubr.f32.mxu0 0.0
    %2453 = vmatmul.mubr.f32.gmra.mrb[0].mxu0 %v2383
    %v2454 = vpop.f32.mrb[0].mxu0
    %v2455 = vadd.f32 %v2380, %v2454
    %v2456 = vpop.f32.mrb[0].mxu0
    %2457 = vmatprep.mubr.f32.mxu0 0.0
    %2458 = vmatmul.mubr.f32.gmra.mrb[0].mxu0 %v2386
    %v2459 = vpop.f32.mrb[0].mxu0
    %v2460 = vadd.f32 %v2380, %v2459
    %v2461 = vpop.f32.mrb[0].mxu0
    %2462 = vdwg.mxu0
    %v2463 = vadd.f32 %v1605, %v2455
    %v2464 = vadd.f32 %v1606, %v2460
    %s2465 = scalar_lea.vmem [#allocation17], 1
    %v2466 = vld [vmem:[%s2465] sm:$0x1]
    %s2467 = scalar_lea.vmem [#allocation18], 1
    %v2468 = vld [vmem:[%s2467] sm:$0x1]
    %v2469 = vsel %vm391, %v2463, 0.0
    %2470 = vadd.xlane.f32.xlu0 %v2469
    %v2471 = vpop.xlane.xlu0 %2470
    %v2472 = vsel %vm391, %v2464, 0.0
    %2473 = vadd.xlane.f32.xlu0 %v2472
    %v2474 = vpop.xlane.xlu0 %2473
    %v2475 = vmul.f32 %v2471, %v398
    %v2476 = vmul.f32 %v2474, %v398
    %v2477 = vsub.f32 %v2463, %v2475
    %v2478 = vsub.f32 %v2464, %v2476
    %v2479 = vmul.f32 %v2477, %v2477
    %v2480 = vmul.f32 %v2478, %v2478
    %v2481 = vsel %vm391, %v2479, 0.0
    %2482 = vadd.xlane.f32.xlu0 %v2481
    %v2483 = vpop.xlane.xlu0 %2482
    %v2484 = vsel %vm391, %v2480, 0.0
    %2485 = vadd.xlane.f32.xlu0 %v2484
    %v2486 = vpop.xlane.xlu0 %2485
    %v2487 = vmul.f32 %v2483, %v398
    %v2488 = vmul.f32 %v2486, %v398
    %v2489 = vadd.f32 %v2487, 1e-12
    %v2490 = vadd.f32 %v2488, 1e-12
    %v2491 = vrsqrt.pop %v2489
    %v2492 = vrsqrt.pop %v2490
    %v2493 = vmul.f32 %v2477, %v2491
    %v2494 = vmul.f32 %v2478, %v2492
    %v2496 = vlaneseq
    %v2497 = vshrl.u32 %v2496, 7
    %v2498 = vsub.s32 0, %v2497
    %v2499 = vrot.slane %v2466, %v2498
    %v2501 = vmul.f32 %v2493, %v2499
    %v2502 = vmul.f32 %v2494, %v2499
    %v2504 = vlaneseq
    %v2505 = vshrl.u32 %v2504, 7
    %v2506 = vsub.s32 0, %v2505
    %v2507 = vrot.slane %v2468, %v2506
    %v2509 = vadd.f32 %v2501, %v2507
    %v2510 = vadd.f32 %v2502, %v2507
    %s2511 = scalar_lea.vmem %s37, 32
    %v2512 = vld [vmem:[%s2511] sm:$0xff]
    %v2513 = vld [vmem:[%s2511 + $0x8] sm:$0xff]
    %v2514 = vld [vmem:[%s2511 + $0x10] sm:$0xff]
    %v2515 = vld [vmem:[%s2511 + $0x18] sm:$0xff]
    %s2516 = scalar_lea.vmem [#allocation20], 1
    %v2517 = vld [vmem:[%s2516] sm:$0x1]
    %v2519 = vlaneseq
    %v2520 = vshrl.u32 %v2519, 7
    %v2521 = vsub.s32 0, %v2520
    %v2522 = vrot.slane %v2517, %v2521
    %v2525 = vsel %vm391, %v2509, 0
    %v2528 = vsel %vm391, %v2510, 0
    %2530 = vmatprep.subr.mxu0 0.0
    %2531 = vmatpush1.msra.mxu0 %v2512
    %2532 = vmatprep.subr.mxu0 0.0
    %2533 = vmatpush1.msra.mxu0 %v2513
    %2534 = vmatprep.subr.mxu0 0.0
    %2535 = vmatpush1.msra.mxu0 %v2514
    %2536 = vmatprep.subr.mxu0 0.0
    %2537 = vmatpush1.msra.mxu0 %v2515
    %2538 = vmatprep.subr.mxu0 0.0
    %2539 = vmatpush1.msra.mxu0 0.0
    %2540 = vmatprep.subr.mxu0 0.0
    %2541 = vmatpush1.msra.mxu0 0.0
    %2542 = vmatprep.subr.mxu0 0.0
    %2543 = vmatpush1.msra.mxu0 0.0
    %2544 = vmatprep.subr.mxu0 0.0
    %2545 = vmatpush1.msra.mxu0 0.0
    %2546 = vmatprep.subr.mxu0 0.0
    %2547 = vmatpush1.msra.mxu0 0.0
    %2548 = vmatprep.subr.mxu0 0.0
    %2549 = vmatpush1.msra.mxu0 0.0
    %2550 = vmatprep.subr.mxu0 0.0
    %2551 = vmatpush1.msra.mxu0 0.0
    %2552 = vmatprep.subr.mxu0 0.0
    %2553 = vmatpush1.msra.mxu0 0.0
    %2554 = vmatprep.subr.mxu0 0.0
    %2555 = vmatpush1.msra.mxu0 0.0
    %2556 = vmatprep.subr.mxu0 0.0
    %2557 = vmatpush1.msra.mxu0 0.0
    %2558 = vmatprep.subr.mxu0 0.0
    %2559 = vmatpush1.msra.mxu0 0.0
    %2560 = vmatprep.subr.mxu0 0.0
    %2561 = vmatpush1.msra.mxu0 0.0
    %2562 = vmatprep.subr.mxu0 0.0
    %2563 = vmatpush1.msra.mxu0 0.0
    %2564 = vmatprep.subr.mxu0 0.0
    %2565 = vmatpush1.msra.mxu0 0.0
    %2566 = vmatprep.subr.mxu0 0.0
    %2567 = vmatpush1.msra.mxu0 0.0
    %2568 = vmatprep.subr.mxu0 0.0
    %2569 = vmatpush1.msra.mxu0 0.0
    %2570 = vmatprep.subr.mxu0 0.0
    %2571 = vmatpush1.msra.mxu0 0.0
    %2572 = vmatprep.subr.mxu0 0.0
    %2573 = vmatpush1.msra.mxu0 0.0
    %2574 = vmatprep.subr.mxu0 0.0
    %2575 = vmatpush1.msra.mxu0 0.0
    %2576 = vmatprep.subr.mxu0 0.0
    %2577 = vmatpush1.msra.mxu0 0.0
    %2578 = vmatprep.subr.mxu0 0.0
    %2579 = vmatpush1.msra.mxu0 0.0
    %2580 = vmatprep.subr.mxu0 0.0
    %2581 = vmatpush1.msra.mxu0 0.0
    %2582 = vmatprep.subr.mxu0 0.0
    %2583 = vmatpush1.msra.mxu0 0.0
    %2584 = vmatprep.subr.mxu0 0.0
    %2585 = vmatpush1.msra.mxu0 0.0
    %2586 = vmatprep.subr.mxu0 0.0
    %2587 = vmatpush1.msra.mxu0 0.0
    %2588 = vmatprep.subr.mxu0 0.0
    %2589 = vmatpush1.msra.mxu0 0.0
    %2590 = vmatprep.subr.mxu0 0.0
    %2591 = vmatpush1.msra.mxu0 0.0
    %2592 = vmatprep.subr.mxu0 0.0
    %2593 = vmatpush1.msra.mxu0 0.0
    %2594 = vmatprep.mubr.f32.mxu0 0.0
    %2595 = vmatmul.mubr.f32.gmra.mrb[0].mxu0 %v2525
    %v2596 = vpop.f32.mrb[0].mxu0
    %v2597 = vadd.f32 %v2522, %v2596
    %v2598 = vpop.f32.mrb[0].mxu0
    %2599 = vmatprep.mubr.f32.mxu0 0.0
    %2600 = vmatmul.mubr.f32.gmra.mrb[0].mxu0 %v2528
    %v2601 = vpop.f32.mrb[0].mxu0
    %v2602 = vadd.f32 %v2522, %v2601
    %v2603 = vpop.f32.mrb[0].mxu0
    %2604 = vdwg.mxu0
    %v2605 = vmul.f32 %v2597, 0.5
    %v2606 = vmul.f32 %v2602, 0.5
    %v2607 = vmul.f32 %v2597, 0.044715
    %v2608 = vmul.f32 %v2602, 0.044715
    %v2609 = vmul.f32 %v2607, %v2597
    %v2610 = vmul.f32 %v2608, %v2602
    %v2611 = vmul.f32 %v2609, %v2597
    %v2612 = vmul.f32 %v2610, %v2602
    %v2613 = vadd.f32 %v2597, %v2611
    %v2614 = vadd.f32 %v2602, %v2612
    %v2615 = vmul.f32 %v2613, 0.7978846
    %v2616 = vmul.f32 %v2614, 0.7978846
    %v2617 = vtanh.pop %v2615
    %v2618 = vtanh.pop %v2616
    %v2619 = vadd.f32 %v2617, 1.0
    %v2620 = vadd.f32 %v2618, 1.0
    %v2621 = vmul.f32 %v2605, %v2619
    %v2622 = vmul.f32 %v2606, %v2620
    %s2623 = scalar_lea.vmem %s41, 64
    %v2624 = vld [vmem:[%s2623] sm:$0xff]
    %v2625 = vld [vmem:[%s2623 + $0x8] sm:$0xff]
    %v2626 = vld [vmem:[%s2623 + $0x10] sm:$0xff]
    %v2627 = vld [vmem:[%s2623 + $0x18] sm:$0xff]
    %v2628 = vld [vmem:[%s2623 + $0x20] sm:$0xff]
    %v2629 = vld [vmem:[%s2623 + $0x28] sm:$0xff]
    %v2630 = vld [vmem:[%s2623 + $0x30] sm:$0xff]
    %v2631 = vld [vmem:[%s2623 + $0x38] sm:$0xff]
    %s2632 = scalar_lea.vmem [#allocation21], 1
    %v2633 = vld [vmem:[%s2632] sm:$0x1]
    %v2635 = vlaneseq
    %v2636 = vshrl.u32 %v2635, 7
    %v2637 = vsub.s32 0, %v2636
    %v2638 = vrot.slane %v2633, %v2637
    %v2641 = vsel %vm1038, %v2621, 0
    %v2644 = vsel %vm1038, %v2622, 0
    %2646 = vmatprep.subr.mxu0 0.0
    %2647 = vmatpush1.msra.mxu0 %v2624
    %2648 = vmatprep.subr.mxu0 0.0
    %2649 = vmatpush1.msra.mxu0 %v2625
    %2650 = vmatprep.subr.mxu0 0.0
    %2651 = vmatpush1.msra.mxu0 %v2626
    %2652 = vmatprep.subr.mxu0 0.0
    %2653 = vmatpush1.msra.mxu0 %v2627
    %2654 = vmatprep.subr.mxu0 0.0
    %2655 = vmatpush1.msra.mxu0 %v2628
    %2656 = vmatprep.subr.mxu0 0.0
    %2657 = vmatpush1.msra.mxu0 %v2629
    %2658 = vmatprep.subr.mxu0 0.0
    %2659 = vmatpush1.msra.mxu0 %v2630
    %2660 = vmatprep.subr.mxu0 0.0
    %2661 = vmatpush1.msra.mxu0 %v2631
    %2662 = vmatprep.subr.mxu0 0.0
    %2663 = vmatpush1.msra.mxu0 0.0
    %2664 = vmatprep.subr.mxu0 0.0
    %2665 = vmatpush1.msra.mxu0 0.0
    %2666 = vmatprep.subr.mxu0 0.0
    %2667 = vmatpush1.msra.mxu0 0.0
    %2668 = vmatprep.subr.mxu0 0.0
    %2669 = vmatpush1.msra.mxu0 0.0
    %2670 = vmatprep.subr.mxu0 0.0
    %2671 = vmatpush1.msra.mxu0 0.0
    %2672 = vmatprep.subr.mxu0 0.0
    %2673 = vmatpush1.msra.mxu0 0.0
    %2674 = vmatprep.subr.mxu0 0.0
    %2675 = vmatpush1.msra.mxu0 0.0
    %2676 = vmatprep.subr.mxu0 0.0
    %2677 = vmatpush1.msra.mxu0 0.0
    %2678 = vmatprep.subr.mxu0 0.0
    %2679 = vmatpush1.msra.mxu0 0.0
    %2680 = vmatprep.subr.mxu0 0.0
    %2681 = vmatpush1.msra.mxu0 0.0
    %2682 = vmatprep.subr.mxu0 0.0
    %2683 = vmatpush1.msra.mxu0 0.0
    %2684 = vmatprep.subr.mxu0 0.0
    %2685 = vmatpush1.msra.mxu0 0.0
    %2686 = vmatprep.subr.mxu0 0.0
    %2687 = vmatpush1.msra.mxu0 0.0
    %2688 = vmatprep.subr.mxu0 0.0
    %2689 = vmatpush1.msra.mxu0 0.0
    %2690 = vmatprep.subr.mxu0 0.0
    %2691 = vmatpush1.msra.mxu0 0.0
    %2692 = vmatprep.subr.mxu0 0.0
    %2693 = vmatpush1.msra.mxu0 0.0
    %2694 = vmatprep.subr.mxu0 0.0
    %2695 = vmatpush1.msra.mxu0 0.0
    %2696 = vmatprep.subr.mxu0 0.0
    %2697 = vmatpush1.msra.mxu0 0.0
    %2698 = vmatprep.subr.mxu0 0.0
    %2699 = vmatpush1.msra.mxu0 0.0
    %2700 = vmatprep.subr.mxu0 0.0
    %2701 = vmatpush1.msra.mxu0 0.0
    %2702 = vmatprep.subr.mxu0 0.0
    %2703 = vmatpush1.msra.mxu0 0.0
    %2704 = vmatprep.subr.mxu0 0.0
    %2705 = vmatpush1.msra.mxu0 0.0
    %2706 = vmatprep.subr.mxu0 0.0
    %2707 = vmatpush1.msra.mxu0 0.0
    %2708 = vmatprep.subr.mxu0 0.0
    %2709 = vmatpush1.msra.mxu0 0.0
    %2710 = vmatprep.mubr.f32.mxu0 0.0
    %2711 = vmatmul.mubr.f32.gmra.mrb[0].mxu0 %v2641
    %v2712 = vpop.f32.mrb[0].mxu0
    %v2713 = vadd.f32 %v2638, %v2712
    %v2714 = vpop.f32.mrb[0].mxu0
    %2715 = vmatprep.mubr.f32.mxu0 0.0
    %2716 = vmatmul.mubr.f32.gmra.mrb[0].mxu0 %v2644
    %v2717 = vpop.f32.mrb[0].mxu0
    %v2718 = vadd.f32 %v2638, %v2717
    %v2719 = vpop.f32.mrb[0].mxu0
    %2720 = vdwg.mxu0
    %v2721 = vadd.f32 %v2509, %v2713
    %v2722 = vadd.f32 %v2510, %v2718
    %s2723 = scalar_lea.vmem [#allocation23], 1
    %v2724 = vld [vmem:[%s2723] sm:$0x1]
    %s2725 = scalar_lea.vmem [#allocation24], 1
    %v2726 = vld [vmem:[%s2725] sm:$0x1]
    %v2727 = vsel %vm391, %v2721, 0.0
    %2728 = vadd.xlane.f32.xlu0 %v2727
    %v2729 = vpop.xlane.xlu0 %2728
    %v2730 = vsel %vm391, %v2722, 0.0
    %2731 = vadd.xlane.f32.xlu0 %v2730
    %v2732 = vpop.xlane.xlu0 %2731
    %v2733 = vmul.f32 %v2729, %v398
    %v2734 = vmul.f32 %v2732, %v398
    %v2735 = vsub.f32 %v2721, %v2733
    %v2736 = vsub.f32 %v2722, %v2734
    %v2737 = vmul.f32 %v2735, %v2735
    %v2738 = vmul.f32 %v2736, %v2736
    %v2739 = vsel %vm391, %v2737, 0.0
    %2740 = vadd.xlane.f32.xlu0 %v2739
    %v2741 = vpop.xlane.xlu0 %2740
    %v2742 = vsel %vm391, %v2738, 0.0
    %2743 = vadd.xlane.f32.xlu0 %v2742
    %v2744 = vpop.xlane.xlu0 %2743
    %v2745 = vmul.f32 %v2741, %v398
    %v2746 = vmul.f32 %v2744, %v398
    %v2747 = vadd.f32 %v2745, 1e-12
    %v2748 = vadd.f32 %v2746, 1e-12
    %v2749 = vrsqrt.pop %v2747
    %v2750 = vrsqrt.pop %v2748
    %v2751 = vmul.f32 %v2735, %v2749
    %v2752 = vmul.f32 %v2736, %v2750
    %v2754 = vlaneseq
    %v2755 = vshrl.u32 %v2754, 7
    %v2756 = vsub.s32 0, %v2755
    %v2757 = vrot.slane %v2724, %v2756
    %v2759 = vmul.f32 %v2751, %v2757
    %v2760 = vmul.f32 %v2752, %v2757
    %v2762 = vlaneseq
    %v2763 = vshrl.u32 %v2762, 7
    %v2764 = vsub.s32 0, %v2763
    %v2765 = vrot.slane %v2726, %v2764
    %v2767 = vadd.f32 %v2759, %v2765
    %v2768 = vadd.f32 %v2760, %v2765
    %2769 = vst.msk [vmem:[#allocation30] sm:$0xff] %vm391, %v2767
    %2770 = vst.msk [vmem:[#allocation30 + $0x8] sm:$0xff] %vm391, %v2768
    %v2771 = vld [vmem:[#allocation8] sm:$0x7]
    %v2773 = vsel %vm527, %v2771, 0
    %2775 = vmatprep.subr.mxu0 0.0
    %2776 = vmatpush1.msra.mxu0 %v2767
    %2777 = vmatprep.subr.mxu0 0.0
    %2778 = vmatpush1.msra.mxu0 %v2768
    %2779 = vmatprep.subr.mxu0 0.0
    %2780 = vmatpush1.msra.mxu0 0.0
    %2781 = vmatprep.subr.mxu0 0.0
    %2782 = vmatpush1.msra.mxu0 0.0
    %2783 = vmatprep.subr.mxu0 0.0
    %2784 = vmatpush1.msra.mxu0 0.0
    %2785 = vmatprep.subr.mxu0 0.0
    %2786 = vmatpush1.msra.mxu0 0.0
    %2787 = vmatprep.subr.mxu0 0.0
    %2788 = vmatpush1.msra.mxu0 0.0
    %2789 = vmatprep.subr.mxu0 0.0
    %2790 = vmatpush1.msra.mxu0 0.0
    %2791 = vmatprep.subr.mxu0 0.0
    %2792 = vmatpush1.msra.mxu0 0.0
    %2793 = vmatprep.subr.mxu0 0.0
    %2794 = vmatpush1.msra.mxu0 0.0
    %2795 = vmatprep.subr.mxu0 0.0
    %2796 = vmatpush1.msra.mxu0 0.0
    %2797 = vmatprep.subr.mxu0 0.0
    %2798 = vmatpush1.msra.mxu0 0.0
    %2799 = vmatprep.subr.mxu0 0.0
    %2800 = vmatpush1.msra.mxu0 0.0
    %2801 = vmatprep.subr.mxu0 0.0
    %2802 = vmatpush1.msra.mxu0 0.0
    %2803 = vmatprep.subr.mxu0 0.0
    %2804 = vmatpush1.msra.mxu0 0.0
    %2805 = vmatprep.subr.mxu0 0.0
    %2806 = vmatpush1.msra.mxu0 0.0
    %2807 = vmatprep.subr.mxu0 0.0
    %2808 = vmatpush1.msra.mxu0 0.0
    %2809 = vmatprep.subr.mxu0 0.0
    %2810 = vmatpush1.msra.mxu0 0.0
    %2811 = vmatprep.subr.mxu0 0.0
    %2812 = vmatpush1.msra.mxu0 0.0
    %2813 = vmatprep.subr.mxu0 0.0
    %2814 = vmatpush1.msra.mxu0 0.0
    %2815 = vmatprep.subr.mxu0 0.0
    %2816 = vmatpush1.msra.mxu0 0.0
    %2817 = vmatprep.subr.mxu0 0.0
    %2818 = vmatpush1.msra.mxu0 0.0
    %2819 = vmatprep.subr.mxu0 0.0
    %2820 = vmatpush1.msra.mxu0 0.0
    %2821 = vmatprep.subr.mxu0 0.0
    %2822 = vmatpush1.msra.mxu0 0.0
    %2823 = vmatprep.subr.mxu0 0.0
    %2824 = vmatpush1.msra.mxu0 0.0
    %2825 = vmatprep.subr.mxu0 0.0
    %2826 = vmatpush1.msra.mxu0 0.0
    %2827 = vmatprep.subr.mxu0 0.0
    %2828 = vmatpush1.msra.mxu0 0.0
    %2829 = vmatprep.subr.mxu0 0.0
    %2830 = vmatpush1.msra.mxu0 0.0
    %2831 = vmatprep.subr.mxu0 0.0
    %2832 = vmatpush1.msra.mxu0 0.0
    %2833 = vmatprep.subr.mxu0 0.0
    %2834 = vmatpush1.msra.mxu0 0.0
    %2835 = vmatprep.subr.mxu0 0.0
    %2836 = vmatpush1.msra.mxu0 0.0
    %2837 = vmatprep.subr.mxu0 0.0
    %2838 = vmatpush1.msra.mxu0 0.0
    %2839 = vmatprep.mubr.f32.mxu0 0.0
    %2840 = vmatmul.mubr.f32.gmra.mrb[0].mxu0 %v2773
    %v2841 = vpop.f32.mrb[0].mxu0
    %v2842 = vadd.f32 0.0, %v2841
    %v2843 = vpop.f32.mrb[0].mxu0
    %2844 = vdwg.mxu0
    %v2845 = vld [vmem:[%s49] sm:$0xff]
    %v2846 = vld [vmem:[%s49 + $0x8] sm:$0xff]
    %v2847 = vld [vmem:[%s49 + $0x10] sm:$0xff]
    %v2848 = vld [vmem:[%s49 + $0x18] sm:$0xff]
    %v2849 = vld [vmem:[#allocation26] sm:$0x1]
    %v2851 = vlaneseq
    %v2852 = vshrl.u32 %v2851, 7
    %v2853 = vsub.s32 0, %v2852
    %v2854 = vrot.slane %v2849, %v2853
    %v2857 = vsel %vm391, %v2842, 0
    %2859 = vmatprep.subr.mxu0 0.0
    %2860 = vmatpush1.msra.mxu0 %v2845
    %2861 = vmatprep.subr.mxu0 0.0
    %2862 = vmatpush1.msra.mxu0 %v2846
    %2863 = vmatprep.subr.mxu0 0.0
    %2864 = vmatpush1.msra.mxu0 %v2847
    %2865 = vmatprep.subr.mxu0 0.0
    %2866 = vmatpush1.msra.mxu0 %v2848
    %2867 = vmatprep.subr.mxu0 0.0
    %2868 = vmatpush1.msra.mxu0 0.0
    %2869 = vmatprep.subr.mxu0 0.0
    %2870 = vmatpush1.msra.mxu0 0.0
    %2871 = vmatprep.subr.mxu0 0.0
    %2872 = vmatpush1.msra.mxu0 0.0
    %2873 = vmatprep.subr.mxu0 0.0
    %2874 = vmatpush1.msra.mxu0 0.0
    %2875 = vmatprep.subr.mxu0 0.0
    %2876 = vmatpush1.msra.mxu0 0.0
    %2877 = vmatprep.subr.mxu0 0.0
    %2878 = vmatpush1.msra.mxu0 0.0
    %2879 = vmatprep.subr.mxu0 0.0
    %2880 = vmatpush1.msra.mxu0 0.0
    %2881 = vmatprep.subr.mxu0 0.0
    %2882 = vmatpush1.msra.mxu0 0.0
    %2883 = vmatprep.subr.mxu0 0.0
    %2884 = vmatpush1.msra.mxu0 0.0
    %2885 = vmatprep.subr.mxu0 0.0
    %2886 = vmatpush1.msra.mxu0 0.0
    %2887 = vmatprep.subr.mxu0 0.0
    %2888 = vmatpush1.msra.mxu0 0.0
    %2889 = vmatprep.subr.mxu0 0.0
    %2890 = vmatpush1.msra.mxu0 0.0
    %2891 = vmatprep.subr.mxu0 0.0
    %2892 = vmatpush1.msra.mxu0 0.0
    %2893 = vmatprep.subr.mxu0 0.0
    %2894 = vmatpush1.msra.mxu0 0.0
    %2895 = vmatprep.subr.mxu0 0.0
    %2896 = vmatpush1.msra.mxu0 0.0
    %2897 = vmatprep.subr.mxu0 0.0
    %2898 = vmatpush1.msra.mxu0 0.0
    %2899 = vmatprep.subr.mxu0 0.0
    %2900 = vmatpush1.msra.mxu0 0.0
    %2901 = vmatprep.subr.mxu0 0.0
    %2902 = vmatpush1.msra.mxu0 0.0
    %2903 = vmatprep.subr.mxu0 0.0
    %2904 = vmatpush1.msra.mxu0 0.0
    %2905 = vmatprep.subr.mxu0 0.0
    %2906 = vmatpush1.msra.mxu0 0.0
    %2907 = vmatprep.subr.mxu0 0.0
    %2908 = vmatpush1.msra.mxu0 0.0
    %2909 = vmatprep.subr.mxu0 0.0
    %2910 = vmatpush1.msra.mxu0 0.0
    %2911 = vmatprep.subr.mxu0 0.0
    %2912 = vmatpush1.msra.mxu0 0.0
    %2913 = vmatprep.subr.mxu0 0.0
    %2914 = vmatpush1.msra.mxu0 0.0
    %2915 = vmatprep.subr.mxu0 0.0
    %2916 = vmatpush1.msra.mxu0 0.0
    %2917 = vmatprep.subr.mxu0 0.0
    %2918 = vmatpush1.msra.mxu0 0.0
    %2919 = vmatprep.subr.mxu0 0.0
    %2920 = vmatpush1.msra.mxu0 0.0
    %2921 = vmatprep.subr.mxu0 0.0
    %2922 = vmatpush1.msra.mxu0 0.0
    %2923 = vmatprep.mubr.f32.mxu0 0.0
    %2924 = vmatmul.mubr.f32.gmra.mrb[0].mxu0 %v2857
    %v2925 = vpop.f32.mrb[0].mxu0
    %v2926 = vadd.f32 %v2854, %v2925
    %v2927 = vpop.f32.mrb[0].mxu0
    %2928 = vdwg.mxu0
    %v2929 = vld [vmem:[%s51] sm:$0xff]
    %v2930 = vld [vmem:[%s51 + $0x8] sm:$0xff]
    %v2931 = vld [vmem:[%s51 + $0x10] sm:$0xff]
    %v2932 = vld [vmem:[%s51 + $0x18] sm:$0xff]
    %v2933 = vld [vmem:[#allocation27] sm:$0x1]
    %v2935 = vsel %vm391, 0.0, 0
    %2937 = vmatprep.subr.mxu0 0.0
    %2938 = vmatpush1.msra.mxu0 %v2929
    %2939 = vmatprep.subr.mxu0 0.0
    %2940 = vmatpush1.msra.mxu0 %v2930
    %2941 = vmatprep.subr.mxu0 0.0
    %2942 = vmatpush1.msra.mxu0 %v2931
    %2943 = vmatprep.subr.mxu0 0.0
    %2944 = vmatpush1.msra.mxu0 %v2932
    %2945 = vmatprep.subr.mxu0 0.0
    %2946 = vmatpush1.msra.mxu0 0.0
    %2947 = vmatprep.subr.mxu0 0.0
    %2948 = vmatpush1.msra.mxu0 0.0
    %2949 = vmatprep.subr.mxu0 0.0
    %2950 = vmatpush1.msra.mxu0 0.0
    %2951 = vmatprep.subr.mxu0 0.0
    %2952 = vmatpush1.msra.mxu0 0.0
    %2953 = vmatprep.subr.mxu0 0.0
    %2954 = vmatpush1.msra.mxu0 0.0
    %2955 = vmatprep.subr.mxu0 0.0
    %2956 = vmatpush1.msra.mxu0 0.0
    %2957 = vmatprep.subr.mxu0 0.0
    %2958 = vmatpush1.msra.mxu0 0.0
    %2959 = vmatprep.subr.mxu0 0.0
    %2960 = vmatpush1.msra.mxu0 0.0
    %2961 = vmatprep.subr.mxu0 0.0
    %2962 = vmatpush1.msra.mxu0 0.0
    %2963 = vmatprep.subr.mxu0 0.0
    %2964 = vmatpush1.msra.mxu0 0.0
    %2965 = vmatprep.subr.mxu0 0.0
    %2966 = vmatpush1.msra.mxu0 0.0
    %2967 = vmatprep.subr.mxu0 0.0
    %2968 = vmatpush1.msra.mxu0 0.0
    %2969 = vmatprep.subr.mxu0 0.0
    %2970 = vmatpush1.msra.mxu0 0.0
    %2971 = vmatprep.subr.mxu0 0.0
    %2972 = vmatpush1.msra.mxu0 0.0
    %2973 = vmatprep.subr.mxu0 0.0
    %2974 = vmatpush1.msra.mxu0 0.0
    %2975 = vmatprep.subr.mxu0 0.0
    %2976 = vmatpush1.msra.mxu0 0.0
    %2977 = vmatprep.subr.mxu0 0.0
    %2978 = vmatpush1.msra.mxu0 0.0
    %2979 = vmatprep.subr.mxu0 0.0
    %2980 = vmatpush1.msra.mxu0 0.0
    %2981 = vmatprep.subr.mxu0 0.0
    %2982 = vmatpush1.msra.mxu0 0.0
    %2983 = vmatprep.subr.mxu0 0.0
    %2984 = vmatpush1.msra.mxu0 0.0
    %2985 = vmatprep.subr.mxu0 0.0
    %2986 = vmatpush1.msra.mxu0 0.0
    %2987 = vmatprep.subr.mxu0 0.0
    %2988 = vmatpush1.msra.mxu0 0.0
    %2989 = vmatprep.subr.mxu0 0.0
    %2990 = vmatpush1.msra.mxu0 0.0
    %2991 = vmatprep.subr.mxu0 0.0
    %2992 = vmatpush1.msra.mxu0 0.0
    %2993 = vmatprep.subr.mxu0 0.0
    %2994 = vmatpush1.msra.mxu0 0.0
    %2995 = vmatprep.subr.mxu0 0.0
    %2996 = vmatpush1.msra.mxu0 0.0
    %2997 = vmatprep.subr.mxu0 0.0
    %2998 = vmatpush1.msra.mxu0 0.0
    %2999 = vmatprep.subr.mxu0 0.0
    %3000 = vmatpush1.msra.mxu0 0.0
    %3001 = vmatprep.mubr.f32.mxu0 0.0
    %3002 = vmatmul.mubr.f32.gmra.mrb[0].mxu0 %v2935
    %v3003 = vpop.f32.mrb[0].mxu0
    %v3004 = vadd.f32 %v2933, %v3003
    %v3005 = vpop.f32.mrb[0].mxu0
    %3006 = vdwg.mxu0
    %v3007 = vadd.f32 %v2926, %v3004
    %v3008 = vxor.u32 %v3007, 2147483648
    %v3009 = vmul.f32 %v3008, 1.442695
    %v3010 = vpow.pop %v3009
    %v3011 = vadd.f32 %v3010, 1.0
    %v3012 = vrcp.pop %v3011
    %v3013 = vmul.f32 1.0, %v3012
    %3015 = vrot.lane.b32.xlu0 %v3004, 64
    %v3016 = vpop.permute.xlu0 %3015
    %v3018 = vmul.f32 %v3013, %v3016
    %3020 = vrot.lane.b32.xlu0 %v3018, 64
    %v3021 = vpop.permute.xlu0 %3020
    %v3023 = vadd.f32 %v2926, %v3021
    %v3024 = vtanh.pop %v3023
    %v3025 = vsub.f32 1.0, %v3013
    %3027 = vrot.lane.b32.xlu0 %v3024, 96
    %v3028 = vpop.permute.xlu0 %3027
    %v3030 = vmul.f32 %v3025, %v3028
    %v3031 = vmul.f32 %v3013, 0.0
    %v3032 = vadd.f32 %v3030, %v3031
    %3034 = vrot.lane.b32.xlu0 %v3032, 96
    %v3035 = vpop.permute.xlu0 %3034
    %vm3037 = vcmask 253952
    %3038 = vst.msk [vmem:[#allocation2] sm:$0x1] %vm3037, %v3035
    %v3039 = vld [vmem:[%s51] sm:$0xff]
    %v3040 = vld [vmem:[%s51 + $0x8] sm:$0xff]
    %v3041 = vld [vmem:[%s51 + $0x10] sm:$0xff]
    %v3042 = vld [vmem:[%s51 + $0x18] sm:$0xff]
    %v3043 = vld [vmem:[#allocation27] sm:$0x1]
    %v3044 = vsel %vm391, %v3035, 0
    %3046 = vmatprep.subr.mxu0 0.0
    %3047 = vmatpush1.msra.mxu0 %v3039
    %3048 = vmatprep.subr.mxu0 0.0
    %3049 = vmatpush1.msra.mxu0 %v3040
    %3050 = vmatprep.subr.mxu0 0.0
    %3051 = vmatpush1.msra.mxu0 %v3041
    %3052 = vmatprep.subr.mxu0 0.0
    %3053 = vmatpush1.msra.mxu0 %v3042
    %3054 = vmatprep.subr.mxu0 0.0
    %3055 = vmatpush1.msra.mxu0 0.0
    %3056 = vmatprep.subr.mxu0 0.0
    %3057 = vmatpush1.msra.mxu0 0.0
    %3058 = vmatprep.subr.mxu0 0.0
    %3059 = vmatpush1.msra.mxu0 0.0
    %3060 = vmatprep.subr.mxu0 0.0
    %3061 = vmatpush1.msra.mxu0 0.0
    %3062 = vmatprep.subr.mxu0 0.0
    %3063 = vmatpush1.msra.mxu0 0.0
    %3064 = vmatprep.subr.mxu0 0.0
    %3065 = vmatpush1.msra.mxu0 0.0
    %3066 = vmatprep.subr.mxu0 0.0
    %3067 = vmatpush1.msra.mxu0 0.0
    %3068 = vmatprep.subr.mxu0 0.0
    %3069 = vmatpush1.msra.mxu0 0.0
    %3070 = vmatprep.subr.mxu0 0.0
    %3071 = vmatpush1.msra.mxu0 0.0
    %3072 = vmatprep.subr.mxu0 0.0
    %3073 = vmatpush1.msra.mxu0 0.0
    %3074 = vmatprep.subr.mxu0 0.0
    %3075 = vmatpush1.msra.mxu0 0.0
    %3076 = vmatprep.subr.mxu0 0.0
    %3077 = vmatpush1.msra.mxu0 0.0
    %3078 = vmatprep.subr.mxu0 0.0
    %3079 = vmatpush1.msra.mxu0 0.0
    %3080 = vmatprep.subr.mxu0 0.0
    %3081 = vmatpush1.msra.mxu0 0.0
    %3082 = vmatprep.subr.mxu0 0.0
    %3083 = vmatpush1.msra.mxu0 0.0
    %3084 = vmatprep.subr.mxu0 0.0
    %3085 = vmatpush1.msra.mxu0 0.0
    %3086 = vmatprep.subr.mxu0 0.0
    %3087 = vmatpush1.msra.mxu0 0.0
    %3088 = vmatprep.subr.mxu0 0.0
    %3089 = vmatpush1.msra.mxu0 0.0
    %3090 = vmatprep.subr.mxu0 0.0
    %3091 = vmatpush1.msra.mxu0 0.0
    %3092 = vmatprep.subr.mxu0 0.0
    %3093 = vmatpush1.msra.mxu0 0.0
    %3094 = vmatprep.subr.mxu0 0.0
    %3095 = vmatpush1.msra.mxu0 0.0
    %3096 = vmatprep.subr.mxu0 0.0
    %3097 = vmatpush1.msra.mxu0 0.0
    %3098 = vmatprep.subr.mxu0 0.0
    %3099 = vmatpush1.msra.mxu0 0.0
    %3100 = vmatprep.subr.mxu0 0.0
    %3101 = vmatpush1.msra.mxu0 0.0
    %3102 = vmatprep.subr.mxu0 0.0
    %3103 = vmatpush1.msra.mxu0 0.0
    %3104 = vmatprep.subr.mxu0 0.0
    %3105 = vmatpush1.msra.mxu0 0.0
    %3106 = vmatprep.subr.mxu0 0.0
    %3107 = vmatpush1.msra.mxu0 0.0
    %3108 = vmatprep.subr.mxu0 0.0
    %3109 = vmatpush1.msra.mxu0 0.0
    %3110 = vmatprep.mubr.f32.mxu0 0.0
    %3111 = vmatmul.mubr.f32.gmra.mrb[0].mxu0 %v3044
    %v3112 = vpop.f32.mrb[0].mxu0
    %v3113 = vadd.f32 %v3043, %v3112
    %v3114 = vpop.f32.mrb[0].mxu0
    %3115 = vdwg.mxu0
    %v3117 = vrot.slane %v3113, 7
    %v3119 = vadd.f32 %v2926, %v3117
    %v3120 = vxor.u32 %v3119, 2147483648
    %v3121 = vmul.f32 %v3120, 1.442695
    %v3122 = vpow.pop %v3121
    %v3123 = vadd.f32 %v3122, 1.0
    %v3124 = vrcp.pop %v3123
    %v3125 = vmul.f32 1.0, %v3124
    %3126 = vrot.lane.b32.xlu0 %v3117, 64
    %v3127 = vpop.permute.xlu0 %3126
    %v3129 = vmul.f32 %v3125, %v3127
    %3131 = vrot.lane.b32.xlu0 %v3129, 64
    %v3132 = vpop.permute.xlu0 %3131
    %v3134 = vadd.f32 %v2926, %v3132
    %v3135 = vtanh.pop %v3134
    %v3136 = vsub.f32 1.0, %v3125
    %3138 = vrot.lane.b32.xlu0 %v3135, 96
    %v3139 = vpop.permute.xlu0 %3138
    %v3141 = vmul.f32 %v3136, %v3139
    %v3142 = vrot.slane %v3032, 7
    %v3144 = vmul.f32 %v3125, %v3142
    %v3145 = vadd.f32 %v3141, %v3144
    %3147 = vrot.lane.b32.xlu0 %v3145, 96
    %v3148 = vpop.permute.xlu0 %3147
    %vm3150 = vcmask 254977
    %3151 = vst.msk [vmem:[#allocation2] sm:$0x2] %vm3150, %v3148
    %v3152 = vld [vmem:[%s51] sm:$0xff]
    %v3153 = vld [vmem:[%s51 + $0x8] sm:$0xff]
    %v3154 = vld [vmem:[%s51 + $0x10] sm:$0xff]
    %v3155 = vld [vmem:[%s51 + $0x18] sm:$0xff]
    %v3156 = vld [vmem:[#allocation27] sm:$0x1]
    %v3157 = vrot.slane %v3145, 1
    %3158 = vrot.lane.b32.xlu0 %v3157, 96
    %v3159 = vpop.permute.xlu0 %3158
    %v3160 = vsel %vm391, %v3159, 0
    %3162 = vmatprep.subr.mxu0 0.0
    %3163 = vmatpush1.msra.mxu0 %v3152
    %3164 = vmatprep.subr.mxu0 0.0
    %3165 = vmatpush1.msra.mxu0 %v3153
    %3166 = vmatprep.subr.mxu0 0.0
    %3167 = vmatpush1.msra.mxu0 %v3154
    %3168 = vmatprep.subr.mxu0 0.0
    %3169 = vmatpush1.msra.mxu0 %v3155
    %3170 = vmatprep.subr.mxu0 0.0
    %3171 = vmatpush1.msra.mxu0 0.0
    %3172 = vmatprep.subr.mxu0 0.0
    %3173 = vmatpush1.msra.mxu0 0.0
    %3174 = vmatprep.subr.mxu0 0.0
    %3175 = vmatpush1.msra.mxu0 0.0
    %3176 = vmatprep.subr.mxu0 0.0
    %3177 = vmatpush1.msra.mxu0 0.0
    %3178 = vmatprep.subr.mxu0 0.0
    %3179 = vmatpush1.msra.mxu0 0.0
    %3180 = vmatprep.subr.mxu0 0.0
    %3181 = vmatpush1.msra.mxu0 0.0
    %3182 = vmatprep.subr.mxu0 0.0
    %3183 = vmatpush1.msra.mxu0 0.0
    %3184 = vmatprep.subr.mxu0 0.0
    %3185 = vmatpush1.msra.mxu0 0.0
    %3186 = vmatprep.subr.mxu0 0.0
    %3187 = vmatpush1.msra.mxu0 0.0
    %3188 = vmatprep.subr.mxu0 0.0
    %3189 = vmatpush1.msra.mxu0 0.0
    %3190 = vmatprep.subr.mxu0 0.0
    %3191 = vmatpush1.msra.mxu0 0.0
    %3192 = vmatprep.subr.mxu0 0.0
    %3193 = vmatpush1.msra.mxu0 0.0
    %3194 = vmatprep.subr.mxu0 0.0
    %3195 = vmatpush1.msra.mxu0 0.0
    %3196 = vmatprep.subr.mxu0 0.0
    %3197 = vmatpush1.msra.mxu0 0.0
    %3198 = vmatprep.subr.mxu0 0.0
    %3199 = vmatpush1.msra.mxu0 0.0
    %3200 = vmatprep.subr.mxu0 0.0
    %3201 = vmatpush1.msra.mxu0 0.0
    %3202 = vmatprep.subr.mxu0 0.0
    %3203 = vmatpush1.msra.mxu0 0.0
    %3204 = vmatprep.subr.mxu0 0.0
    %3205 = vmatpush1.msra.mxu0 0.0
    %3206 = vmatprep.subr.mxu0 0.0
    %3207 = vmatpush1.msra.mxu0 0.0
    %3208 = vmatprep.subr.mxu0 0.0
    %3209 = vmatpush1.msra.mxu0 0.0
    %3210 = vmatprep.subr.mxu0 0.0
    %3211 = vmatpush1.msra.mxu0 0.0
    %3212 = vmatprep.subr.mxu0 0.0
    %3213 = vmatpush1.msra.mxu0 0.0
    %3214 = vmatprep.subr.mxu0 0.0
    %3215 = vmatpush1.msra.mxu0 0.0
    %3216 = vmatprep.subr.mxu0 0.0
    %3217 = vmatpush1.msra.mxu0 0.0
    %3218 = vmatprep.subr.mxu0 0.0
    %3219 = vmatpush1.msra.mxu0 0.0
    %3220 = vmatprep.subr.mxu0 0.0
    %3221 = vmatpush1.msra.mxu0 0.0
    %3222 = vmatprep.subr.mxu0 0.0
    %3223 = vmatpush1.msra.mxu0 0.0
    %3224 = vmatprep.subr.mxu0 0.0
    %3225 = vmatpush1.msra.mxu0 0.0
    %3226 = vmatprep.mubr.f32.mxu0 0.0
    %3227 = vmatmul.mubr.f32.gmra.mrb[0].mxu0 %v3160
    %v3228 = vpop.f32.mrb[0].mxu0
    %v3229 = vadd.f32 %v3156, %v3228
    %v3230 = vpop.f32.mrb[0].mxu0
    %3231 = vdwg.mxu0
    %v3233 = vrot.slane %v3229, 6
    %v3235 = vadd.f32 %v2926, %v3233
    %v3236 = vxor.u32 %v3235, 2147483648
    %v3237 = vmul.f32 %v3236, 1.442695
    %v3238 = vpow.pop %v3237
    %v3239 = vadd.f32 %v3238, 1.0
    %v3240 = vrcp.pop %v3239
    %v3241 = vmul.f32 1.0, %v3240
    %3242 = vrot.lane.b32.xlu0 %v3233, 64
    %v3243 = vpop.permute.xlu0 %3242
    %v3245 = vmul.f32 %v3241, %v3243
    %3247 = vrot.lane.b32.xlu0 %v3245, 64
    %v3248 = vpop.permute.xlu0 %3247
    %v3250 = vadd.f32 %v2926, %v3248
    %v3251 = vtanh.pop %v3250
    %v3252 = vsub.f32 1.0, %v3241
    %3254 = vrot.lane.b32.xlu0 %v3251, 96
    %v3255 = vpop.permute.xlu0 %3254
    %v3257 = vmul.f32 %v3252, %v3255
    %v3258 = vrot.slane %v3145, 7
    %v3260 = vmul.f32 %v3241, %v3258
    %v3261 = vadd.f32 %v3257, %v3260
    %3263 = vrot.lane.b32.xlu0 %v3261, 96
    %v3264 = vpop.permute.xlu0 %3263
    %vm3266 = vcmask 256002
    %3267 = vst.msk [vmem:[#allocation2] sm:$0x4] %vm3266, %v3264
    %3268 = vst.msk [vmem:[#allocation33 - $0x2] sm:$0x4] %vm3266, %v3264
    %v3269 = vld [vmem:[#allocation2] sm:$0x7]
    %v3270 = vld [vmem:[#allocation29] sm:$0xff]
    %v3271 = vld [vmem:[#allocation29 + $0x8] sm:$0xff]
    %v3272 = vld [vmem:[#allocation29 + $0x10] sm:$0xff]
    %v3273 = vld [vmem:[#allocation29 + $0x18] sm:$0xff]
    %v3274 = vld [vmem:[%s59] sm:$0x1]
    %v3276 = vlaneseq
    %v3277 = vshrl.u32 %v3276, 7
    %v3278 = vsub.s32 0, %v3277
    %v3279 = vrot.slane %v3274, %v3278
    %v3282 = vsel %vm391, %v3269, 0
    %3284 = vmatprep.subr.mxu0 0.0
    %3285 = vmatpush1.msra.mxu0 %v3270
    %3286 = vmatprep.subr.mxu0 0.0
    %3287 = vmatpush1.msra.mxu0 %v3271
    %3288 = vmatprep.subr.mxu0 0.0
    %3289 = vmatpush1.msra.mxu0 %v3272
    %3290 = vmatprep.subr.mxu0 0.0
    %3291 = vmatpush1.msra.mxu0 %v3273
    %3292 = vmatprep.subr.mxu0 0.0
    %3293 = vmatpush1.msra.mxu0 0.0
    %3294 = vmatprep.subr.mxu0 0.0
    %3295 = vmatpush1.msra.mxu0 0.0
    %3296 = vmatprep.subr.mxu0 0.0
    %3297 = vmatpush1.msra.mxu0 0.0
    %3298 = vmatprep.subr.mxu0 0.0
    %3299 = vmatpush1.msra.mxu0 0.0
    %3300 = vmatprep.subr.mxu0 0.0
    %3301 = vmatpush1.msra.mxu0 0.0
    %3302 = vmatprep.subr.mxu0 0.0
    %3303 = vmatpush1.msra.mxu0 0.0
    %3304 = vmatprep.subr.mxu0 0.0
    %3305 = vmatpush1.msra.mxu0 0.0
    %3306 = vmatprep.subr.mxu0 0.0
    %3307 = vmatpush1.msra.mxu0 0.0
    %3308 = vmatprep.subr.mxu0 0.0
    %3309 = vmatpush1.msra.mxu0 0.0
    %3310 = vmatprep.subr.mxu0 0.0
    %3311 = vmatpush1.msra.mxu0 0.0
    %3312 = vmatprep.subr.mxu0 0.0
    %3313 = vmatpush1.msra.mxu0 0.0
    %3314 = vmatprep.subr.mxu0 0.0
    %3315 = vmatpush1.msra.mxu0 0.0
    %3316 = vmatprep.subr.mxu0 0.0
    %3317 = vmatpush1.msra.mxu0 0.0
    %3318 = vmatprep.subr.mxu0 0.0
    %3319 = vmatpush1.msra.mxu0 0.0
    %3320 = vmatprep.subr.mxu0 0.0
    %3321 = vmatpush1.msra.mxu0 0.0
    %3322 = vmatprep.subr.mxu0 0.0
    %3323 = vmatpush1.msra.mxu0 0.0
    %3324 = vmatprep.subr.mxu0 0.0
    %3325 = vmatpush1.msra.mxu0 0.0
    %3326 = vmatprep.subr.mxu0 0.0
    %3327 = vmatpush1.msra.mxu0 0.0
    %3328 = vmatprep.subr.mxu0 0.0
    %3329 = vmatpush1.msra.mxu0 0.0
    %3330 = vmatprep.subr.mxu0 0.0
    %3331 = vmatpush1.msra.mxu0 0.0
    %3332 = vmatprep.subr.mxu0 0.0
    %3333 = vmatpush1.msra.mxu0 0.0
    %3334 = vmatprep.subr.mxu0 0.0
    %3335 = vmatpush1.msra.mxu0 0.0
    %3336 = vmatprep.subr.mxu0 0.0
    %3337 = vmatpush1.msra.mxu0 0.0
    %3338 = vmatprep.subr.mxu0 0.0
    %3339 = vmatpush1.msra.mxu0 0.0
    %3340 = vmatprep.subr.mxu0 0.0
    %3341 = vmatpush1.msra.mxu0 0.0
    %3342 = vmatprep.subr.mxu0 0.0
    %3343 = vmatpush1.msra.mxu0 0.0
    %3344 = vmatprep.subr.mxu0 0.0
    %3345 = vmatpush1.msra.mxu0 0.0
    %3346 = vmatprep.subr.mxu0 0.0
    %3347 = vmatpush1.msra.mxu0 0.0
    %3348 = vmatprep.mubr.f32.mxu0 0.0
    %3349 = vmatmul.mubr.f32.gmra.mrb[0].mxu0 %v3282
    %v3350 = vpop.f32.mrb[0].mxu0
    %v3351 = vadd.f32 %v3279, %v3350
    %v3352 = vpop.f32.mrb[0].mxu0
    %3353 = vdwg.mxu0
    %vm3354 = vcmp.gt.f32.partialorder %v3351, 0.0
    %v3355 = vmin.f32 %v3351, 0.0
    %v3356 = vmul.f32 %v3355, 1.442695
    %v3357 = vpow.pop %v3356
    %v3358 = vsub.f32 %v3357, 1.0
    %v3359 = vsel %vm3354, %v3351, %v3358
    %v3360 = vld [vmem:[%s61] sm:$0xff]
    %v3361 = vld [vmem:[%s61 + $0x8] sm:$0xff]
    %v3362 = vld [vmem:[%s61 + $0x10] sm:$0xff]
    %v3363 = vld [vmem:[%s61 + $0x18] sm:$0xff]
    %v3364 = vld [vmem:[%s61 + $0x20] sm:$0xff]
    %v3365 = vld [vmem:[%s61 + $0x28] sm:$0xff]
    %v3366 = vld [vmem:[%s63] sm:$0x1]
    %v3368 = vlaneseq
    %v3369 = vshrl.u32 %v3368, 7
    %v3370 = vsub.s32 0, %v3369
    %v3371 = vrot.slane %v3366, %v3370
    %vm3373 = vcmask 392192
    %v3375 = vsel %vm3373, %v3359, 0
    %3377 = vmatprep.subr.mxu0 0.0
    %3378 = vmatpush1.msra.mxu0 %v3360
    %3379 = vmatprep.subr.mxu0 0.0
    %3380 = vmatpush1.msra.mxu0 %v3361
    %3381 = vmatprep.subr.mxu0 0.0
    %3382 = vmatpush1.msra.mxu0 %v3362
    %3383 = vmatprep.subr.mxu0 0.0
    %3384 = vmatpush1.msra.mxu0 %v3363
    %3385 = vmatprep.subr.mxu0 0.0
    %3386 = vmatpush1.msra.mxu0 %v3364
    %3387 = vmatprep.subr.mxu0 0.0
    %3388 = vmatpush1.msra.mxu0 %v3365
    %3389 = vmatprep.subr.mxu0 0.0
    %3390 = vmatpush1.msra.mxu0 0.0
    %3391 = vmatprep.subr.mxu0 0.0
    %3392 = vmatpush1.msra.mxu0 0.0
    %3393 = vmatprep.subr.mxu0 0.0
    %3394 = vmatpush1.msra.mxu0 0.0
    %3395 = vmatprep.subr.mxu0 0.0
    %3396 = vmatpush1.msra.mxu0 0.0
    %3397 = vmatprep.subr.mxu0 0.0
    %3398 = vmatpush1.msra.mxu0 0.0
    %3399 = vmatprep.subr.mxu0 0.0
    %3400 = vmatpush1.msra.mxu0 0.0
    %3401 = vmatprep.subr.mxu0 0.0
    %3402 = vmatpush1.msra.mxu0 0.0
    %3403 = vmatprep.subr.mxu0 0.0
    %3404 = vmatpush1.msra.mxu0 0.0
    %3405 = vmatprep.subr.mxu0 0.0
    %3406 = vmatpush1.msra.mxu0 0.0
    %3407 = vmatprep.subr.mxu0 0.0
    %3408 = vmatpush1.msra.mxu0 0.0
    %3409 = vmatprep.subr.mxu0 0.0
    %3410 = vmatpush1.msra.mxu0 0.0
    %3411 = vmatprep.subr.mxu0 0.0
    %3412 = vmatpush1.msra.mxu0 0.0
    %3413 = vmatprep.subr.mxu0 0.0
    %3414 = vmatpush1.msra.mxu0 0.0
    %3415 = vmatprep.subr.mxu0 0.0
    %3416 = vmatpush1.msra.mxu0 0.0
    %3417 = vmatprep.subr.mxu0 0.0
    %3418 = vmatpush1.msra.mxu0 0.0
    %3419 = vmatprep.subr.mxu0 0.0
    %3420 = vmatpush1.msra.mxu0 0.0
    %3421 = vmatprep.subr.mxu0 0.0
    %3422 = vmatpush1.msra.mxu0 0.0
    %3423 = vmatprep.subr.mxu0 0.0
    %3424 = vmatpush1.msra.mxu0 0.0
    %3425 = vmatprep.subr.mxu0 0.0
    %3426 = vmatpush1.msra.mxu0 0.0
    %3427 = vmatprep.subr.mxu0 0.0
    %3428 = vmatpush1.msra.mxu0 0.0
    %3429 = vmatprep.subr.mxu0 0.0
    %3430 = vmatpush1.msra.mxu0 0.0
    %3431 = vmatprep.subr.mxu0 0.0
    %3432 = vmatpush1.msra.mxu0 0.0
    %3433 = vmatprep.subr.mxu0 0.0
    %3434 = vmatpush1.msra.mxu0 0.0
    %3435 = vmatprep.subr.mxu0 0.0
    %3436 = vmatpush1.msra.mxu0 0.0
    %3437 = vmatprep.subr.mxu0 0.0
    %3438 = vmatpush1.msra.mxu0 0.0
    %3439 = vmatprep.subr.mxu0 0.0
    %3440 = vmatpush1.msra.mxu0 0.0
    %3441 = vmatprep.mubr.f32.mxu0 0.0
    %3442 = vmatmul.mubr.f32.gmra.mrb[0].mxu0 %v3375
    %v3443 = vpop.f32.mrb[0].mxu0
    %v3444 = vadd.f32 %v3371, %v3443
    %v3445 = vpop.f32.mrb[0].mxu0
    %3446 = vdwg.mxu0
    %vm3447 = vcmask 124928
    %3448 = vst.msk [vmem:[#allocation31] sm:$0x7] %vm3447, %v3444
    // Predicated region
    $region198: #{tpu_custom_call.1} parent=1 // pred_check
      _
    $region199: #{tpu_custom_call.1} parent=1 // pred_check_branch
      %3450 = sbr.rel (0) target = $region201
    $region200: #{tpu_custom_call.1} parent=1 // pred_region
      %s3452 = ssub.s32 256, 256
      %3453 = vsyncadd [#allocation5], %s3452
      %s3454 = sshll.u32 [#allocation30], 4
      %s3455 = int_to_ptr.vmem [resolvable:$true] %s3454
      %3460 = dma.vmem_to_hbm [thread:$0]  %s3455, 256, %s65, [#allocation5], 128, 128, 8
    $region201: #{tpu_custom_call.1} parent=1 // pred_fallthru
      _
    // Predicated region
    $region202: #{tpu_custom_call.1} parent=1 // pred_check
      _
    $region203: #{tpu_custom_call.1} parent=1 // pred_check_branch
      %3462 = sbr.rel (0) target = $region205
    $region204: #{tpu_custom_call.1} parent=1 // pred_region
      %s3464 = ssub.s32 64, 64
      %3465 = vsyncadd [#allocation32], %s3464
      %s3467 = sshll.u32 [#allocation31], 4
      %s3468 = int_to_ptr.vmem [resolvable:$true] %s3467
      %3470 = dma.vmem_to_hbm [thread:$0]  %s3468, 64, %s67, [#allocation32]
    $region205: #{tpu_custom_call.1} parent=1 // pred_fallthru
      _
    // Predicated region
    $region206: #{tpu_custom_call.1} parent=1 // pred_check
      _
    $region207: #{tpu_custom_call.1} parent=1 // pred_check_branch
      %3472 = sbr.rel (0) target = $region209
    $region208: #{tpu_custom_call.1} parent=1 // pred_region
      %s3474 = ssub.s32 16, 16
      %3475 = vsyncadd [#allocation32], %s3474
      %s3477 = sshll.u32 [#allocation33], 4
      %s3478 = int_to_ptr.vmem [resolvable:$true] %s3477
      %3480 = dma.vmem_to_hbm [thread:$0]  %s3478, 16, %s69, [#allocation32]
    $region209: #{tpu_custom_call.1} parent=1 // pred_fallthru
      _
    // Predicated region
    $region210: #{tpu_custom_call.1} parent=1 // pred_check
      _
    $region211: #{tpu_custom_call.1} parent=1 // pred_check_branch
      %3482 = sbr.rel (0) target = $region213
    $region212: #{tpu_custom_call.1} parent=1 // pred_region
      %3483 = dma.done [#allocation5], 256
    $region213: #{tpu_custom_call.1} parent=1 // pred_fallthru
      _
    // Predicated region
    $region214: #{tpu_custom_call.1} parent=1 // pred_check
      _
    $region215: #{tpu_custom_call.1} parent=1 // pred_check_branch
      %3485 = sbr.rel (0) target = $region217
    $region216: #{tpu_custom_call.1} parent=1 // pred_region
      %3486 = dma.done [#allocation32], 64
    $region217: #{tpu_custom_call.1} parent=1 // pred_fallthru
      _
    // Predicated region
    $region218: #{tpu_custom_call.1} parent=1 // pred_check
      _
    $region219: #{tpu_custom_call.1} parent=1 // pred_check_branch
      %3488 = sbr.rel (0) target = $region221
    $region220: #{tpu_custom_call.1} parent=1 // pred_region
      %3489 = dma.done [#allocation32], 16
    $region221: #{tpu_custom_call.1} parent=1 // pred_fallthru
      _
    %3490 = vsyncpa [#allocation4], 1
    %3491 = vsyncpa [#allocation7], 1
    %3492 = vsyncpa [#allocation10], 1
    %3493 = vsyncpa [#allocation13], 1
    %3494 = vsyncpa [#allocation16], 1
    %3495 = vsyncpa [#allocation19], 1
    %3496 = vsyncpa [#allocation22], 1
    %3497 = vsyncpa [#allocation25], 1
    %3498 = vsyncpa [#allocation28], 1
    %3499 = vsyncpa [#allocation5], 1
    %3500 = vsyncpa [#allocation32], 1

</llo_original>
